<compile_context>
chip_gen: v5e
topology: v5e:2x2
jax: 0.10.0
libtpu: 0.0.40
codegen_flags: <defaults>
</compile_context>

<pallas_src>
import jax
import jax.numpy as jnp
from jax.experimental import pallas as pl
from jax.experimental.pallas import tpu as pltpu

# ----------------------------------------------------------------------------
# Model dimensions
# ----------------------------------------------------------------------------
C_IN, H_IN, W_IN = 3, 32, 64
KS = 5
C1, H1, W1 = 6, H_IN - KS + 1, W_IN - KS + 1      # 6, 28, 60
H1P, W1P = H1 // 2, W1 // 2                        # 14, 30
C2, H2, W2 = 16, H1P - KS + 1, W1P - KS + 1        # 16, 10, 26
H2P, W2P = H2 // 2, W2 // 2                        # 5, 13
N_FLAT = C2 * H2P * W2P                            # 1040
N_FC1, N_FC2, N_FC3 = 120, 84, 3
PAD = 128                                          # padded FC lane width


# ----------------------------------------------------------------------------
# Fused forward-pass kernel (one image per grid step)
# ----------------------------------------------------------------------------
def _net_kernel(x_ref, a1m_ref, b1_ref, p1_ref, s1_ref,
                a2m_ref, b2_ref, p2_ref, s2_ref,
                fc1w_ref, fc1b_ref, fc2w_ref, fc2b_ref, fc3w_ref, fc3b_ref,
                out_ref, flat_ref):
    bf16 = jnp.bfloat16
    f32 = jnp.float32

    # ---------------- conv1 + bias + relu (banded matmuls on the MXU) -------
    # x: (C_IN*H_IN, W_IN) = (96, 64); rows are (c, h'), lanes are w.
    x = x_ref[0].astype(bf16)
    s1 = jnp.dot(a1m_ref[0], x[:, 0:W1], preferred_element_type=f32)
    for j in range(1, KS):
        s1 = s1 + jnp.dot(a1m_ref[j], x[:, j:j + W1], preferred_element_type=f32)
    s1 = jnp.maximum(s1 + b1_ref[...], 0.0)        # (C1*H1, W1) = (168, 60)

    # ---------------- maxpool 2x2 (exact 0/1 selection matmuls + max) -------
    s1b = s1.astype(bf16)
    h1 = jnp.maximum(jnp.dot(p1_ref[0], s1b, preferred_element_type=f32),
                     jnp.dot(p1_ref[1], s1b, preferred_element_type=f32))
    h1b = h1.astype(bf16)                          # (C1*H1P, W1) = (84, 60)
    a1 = jnp.maximum(jnp.dot(h1b, s1_ref[0], preferred_element_type=f32),
                     jnp.dot(h1b, s1_ref[1], preferred_element_type=f32))
    # a1: (C1*H1P, W1P) = (84, 30); row order (c, h) matches conv2's input.

    # ---------------- conv2 + bias + relu -----------------------------------
    a1b = a1.astype(bf16)
    s2 = jnp.dot(a2m_ref[0], a1b[:, 0:W2], preferred_element_type=f32)
    for j in range(1, KS):
        s2 = s2 + jnp.dot(a2m_ref[j], a1b[:, j:j + W2], preferred_element_type=f32)
    s2 = jnp.maximum(s2 + b2_ref[...], 0.0)        # (C2*H2, W2) = (160, 26)

    # ---------------- maxpool 2x2 -------------------------------------------
    s2b = s2.astype(bf16)
    h2 = jnp.maximum(jnp.dot(p2_ref[0], s2b, preferred_element_type=f32),
                     jnp.dot(p2_ref[1], s2b, preferred_element_type=f32))
    h2b = h2.astype(bf16)                          # (C2*H2P, W2) = (80, 26)
    a2 = jnp.maximum(jnp.dot(h2b, s2_ref[0], preferred_element_type=f32),
                     jnp.dot(h2b, s2_ref[1], preferred_element_type=f32))
    # a2: (C2*H2P, W2P) = (80, 13); row-major flatten == torch (C, H, W) order.

    # ---------------- flatten into a single lane-dense row ------------------
    for r in range(C2 * H2P):                      # 80 small static VMEM stores
        flat_ref[:, r * W2P:(r + 1) * W2P] = a2[r:r + 1, :]

    # ---------------- fc1 / fc2 / fc3 (pre-transposed, 128-padded weights) --
    f = flat_ref[...].astype(bf16)                                    # (1, 1040)
    z = jnp.maximum(jnp.dot(f, fc1w_ref[...],
                            preferred_element_type=f32) + fc1b_ref[...], 0.0)
    z = jnp.maximum(jnp.dot(z.astype(bf16), fc2w_ref[...],
                            preferred_element_type=f32) + fc2b_ref[...], 0.0)
    z = jnp.dot(z.astype(bf16), fc3w_ref[...],
                preferred_element_type=f32) + fc3b_ref[...]           # (1, 128)
    out_ref[0] = z


# ----------------------------------------------------------------------------
# Parameters (PyTorch-default-style uniform init, PyTorch weight layouts)
# ----------------------------------------------------------------------------
def init_params(key):
    def uniform(k, shape, fan_in):
        bound = 1.0 / jnp.sqrt(jnp.float32(fan_in))
        return jax.random.uniform(k, shape, jnp.float32, -bound, bound)

    ks = jax.random.split(key, 10)
    return {
        "conv1_w": uniform(ks[0], (C1, C_IN, KS, KS), C_IN * KS * KS),
        "conv1_b": uniform(ks[1], (C1,), C_IN * KS * KS),
        "conv2_w": uniform(ks[2], (C2, C1, KS, KS), C1 * KS * KS),
        "conv2_b": uniform(ks[3], (C2,), C1 * KS * KS),
        "fc1_w": uniform(ks[4], (N_FC1, N_FLAT), N_FLAT),
        "fc1_b": uniform(ks[5], (N_FC1,), N_FLAT),
        "fc2_w": uniform(ks[6], (N_FC2, N_FC1), N_FC1),
        "fc2_b": uniform(ks[7], (N_FC2,), N_FC1),
        "fc3_w": uniform(ks[8], (N_FC3, N_FC2), N_FC2),
        "fc3_b": uniform(ks[9], (N_FC3,), N_FC2),
    }


# ----------------------------------------------------------------------------
# One-time weight preprocessing (outside the kernel, done at init)
# ----------------------------------------------------------------------------
def _banded_conv_mats(w, h_in):
    """(KW, Cout*Ho, Cin*H) banded matrices: row=(o,h), col=(c,h')."""
    cout, cin, kh, kw = w.shape
    ho = h_in - kh + 1
    h = jnp.arange(ho)[:, None]
    hp = jnp.arange(h_in)[None, :]
    d = hp - h
    valid = (d >= 0) & (d < kh)
    dcl = jnp.clip(d, 0, kh - 1)
    wj = jnp.transpose(w, (3, 0, 1, 2))                 # (KW, Cout, Cin, KH)
    band = wj[:, :, :, dcl]                             # (KW, Cout, Cin, Ho, H)
    band = jnp.where(valid[None, None, None], band, 0.0)
    band = jnp.transpose(band, (0, 1, 3, 2, 4))         # (KW, Cout, Ho, Cin, H)
    return band.reshape(kw, cout * ho, cin * h_in)


def _rowpool_mats(chan, h_in):
    """0/1 selectors (2, chan*h_in//2, chan*h_in) picking even/odd rows per channel."""
    hp = h_in // 2
    rows = jnp.arange(chan * hp)
    base = (rows // hp) * h_in + 2 * (rows % hp)
    cols = jnp.arange(chan * h_in)[None, :]
    pe = (cols == base[:, None]).astype(jnp.float32)
    po = (cols == (base + 1)[:, None]).astype(jnp.float32)
    return jnp.stack([pe, po])


def _colpool_mats(w_in):
    """0/1 selectors (2, w_in, w_in//2) picking even/odd lanes."""
    wp = w_in // 2
    r = jnp.arange(w_in)[:, None]
    c = jnp.arange(wp)[None, :]
    se = (r == 2 * c).astype(jnp.float32)
    so = (r == 2 * c + 1).astype(jnp.float32)
    return jnp.stack([se, so])


def prepare_params(p):
    bf16 = jnp.bfloat16

    def pad2(m, rows, cols):
        out = jnp.zeros((rows, cols), jnp.float32)
        return out.at[:m.shape[0], :m.shape[1]].set(m)

    return {
        "A1": _banded_conv_mats(p["conv1_w"], H_IN).astype(bf16),   # (5, 168, 96)
        "b1": jnp.repeat(p["conv1_b"], H1)[:, None],                # (168, 1)
        "P1": _rowpool_mats(C1, H1).astype(bf16),                   # (2, 84, 168)
        "S1": _colpool_mats(W1).astype(bf16),                       # (2, 60, 30)
        "A2": _banded_conv_mats(p["conv2_w"], H1P).astype(bf16),    # (5, 160, 84)
        "b2": jnp.repeat(p["conv2_b"], H2)[:, None],                # (160, 1)
        "P2": _rowpool_mats(C2, H2).astype(bf16),                   # (2, 80, 160)
        "S2": _colpool_mats(W2).astype(bf16),                       # (2, 26, 13)
        "fc1w": pad2(p["fc1_w"].T, N_FLAT, PAD).astype(bf16),       # (1040, 128)
        "fc1b": pad2(p["fc1_b"][None, :], 1, PAD),                  # (1, 128)
        "fc2w": pad2(p["fc2_w"].T, PAD, PAD).astype(bf16),          # (128, 128)
        "fc2b": pad2(p["fc2_b"][None, :], 1, PAD),
        "fc3w": pad2(p["fc3_w"].T, PAD, PAD).astype(bf16),          # (128, 128)
        "fc3b": pad2(p["fc3_b"][None, :], 1, PAD),
    }


# ----------------------------------------------------------------------------
# Forward pass: a single fused pallas_call (grid over batch)
# ----------------------------------------------------------------------------
def _full_spec(shape):
    zeros = (0,) * len(shape)
    return pl.BlockSpec(shape, lambda n, _z=zeros: _z)


def net_forward(prep, x):
    n = x.shape[0]
    xr = x.reshape(n, C_IN * H_IN, W_IN)          # free, layout-preserving
    args = (xr, prep["A1"], prep["b1"], prep["P1"], prep["S1"],
            prep["A2"], prep["b2"], prep["P2"], prep["S2"],
            prep["fc1w"], prep["fc1b"], prep["fc2w"], prep["fc2b"],
            prep["fc3w"], prep["fc3b"])
    in_specs = [pl.BlockSpec((1, C_IN * H_IN, W_IN), lambda i: (i, 0, 0))]
    in_specs += [_full_spec(a.shape) for a in args[1:]]

    out = pl.pallas_call(
        _net_kernel,
        grid=(n,),
        in_specs=in_specs,
        out_specs=pl.BlockSpec((1, 1, PAD), lambda i: (i, 0, 0)),
        out_shape=jax.ShapeDtypeStruct((n, 1, PAD), jnp.float32),
        scratch_shapes=[pltpu.VMEM((1, N_FLAT), jnp.float32)],
        compiler_params=pltpu.CompilerParams(
            dimension_semantics=("parallel",)),
    )(*args)
    return out[:, 0, :N_FC3]                      # drop the zero padding


forward = jax.jit(net_forward)


if __name__ == "__main__":
    key = jax.random.PRNGKey(0)
    pkey, xkey = jax.random.split(key)
    params = init_params(pkey)
    prep = prepare_params(params)                 # one-time weight prep

    # Input: batch=2, channels=3, H=32, W=64 (consistent with fc1's 1040 inputs)
    x = jax.random.normal(xkey, (2, C_IN, H_IN, W_IN), dtype=jnp.float32)

    out = forward(prep, x)
    out = jax.block_until_ready(out)
    assert out.shape == (2, N_FC3), out.shape
    assert bool(jnp.all(jnp.isfinite(out)))
    print("KERNEL_OK")
</pallas_src>

<mosaic_0001>
module attributes {stable_mosaic.version = 11 : i64} {
  func.func @_net_kernel(%arg0: i32, %arg1: memref<1x96x64xf32, #tpu.memory_space<vmem>>, %arg2: memref<5x168x96xbf16, #tpu.memory_space<vmem>>, %arg3: memref<168x1xf32, #tpu.memory_space<vmem>>, %arg4: memref<2x84x168xbf16, #tpu.memory_space<vmem>>, %arg5: memref<2x60x30xbf16, #tpu.memory_space<vmem>>, %arg6: memref<5x160x84xbf16, #tpu.memory_space<vmem>>, %arg7: memref<160x1xf32, #tpu.memory_space<vmem>>, %arg8: memref<2x80x160xbf16, #tpu.memory_space<vmem>>, %arg9: memref<2x26x13xbf16, #tpu.memory_space<vmem>>, %arg10: memref<1040x128xbf16, #tpu.memory_space<vmem>>, %arg11: memref<1x128xf32, #tpu.memory_space<vmem>>, %arg12: memref<128x128xbf16, #tpu.memory_space<vmem>>, %arg13: memref<1x128xf32, #tpu.memory_space<vmem>>, %arg14: memref<128x128xbf16, #tpu.memory_space<vmem>>, %arg15: memref<1x128xf32, #tpu.memory_space<vmem>>, %arg16: memref<1x1x128xf32, #tpu.memory_space<vmem>>, %arg17: memref<1x1040xf32, #tpu.memory_space<vmem>>) attributes {dimension_semantics = [#tpu.dimension_semantics<parallel>], iteration_bounds = array<i64: 2>, scalar_prefetch = 0 : i64, scratch_operands = 1 : i64, tpu.core_type = #tpu.core_type<tc>, window_params = [{transform_indices = @transform_0, window_bounds = array<i64: 1, 96, 64>}, {pipeline_mode = #tpu.pipeline_mode<synchronous>, transform_indices = @transform_1, window_bounds = array<i64: 5, 168, 96>}, {pipeline_mode = #tpu.pipeline_mode<synchronous>, transform_indices = @transform_2, window_bounds = array<i64: 168, 1>}, {pipeline_mode = #tpu.pipeline_mode<synchronous>, transform_indices = @transform_3, window_bounds = array<i64: 2, 84, 168>}, {pipeline_mode = #tpu.pipeline_mode<synchronous>, transform_indices = @transform_4, window_bounds = array<i64: 2, 60, 30>}, {pipeline_mode = #tpu.pipeline_mode<synchronous>, transform_indices = @transform_5, window_bounds = array<i64: 5, 160, 84>}, {pipeline_mode = #tpu.pipeline_mode<synchronous>, transform_indices = @transform_6, window_bounds = array<i64: 160, 1>}, {pipeline_mode = #tpu.pipeline_mode<synchronous>, transform_indices = @transform_7, window_bounds = array<i64: 2, 80, 160>}, {pipeline_mode = #tpu.pipeline_mode<synchronous>, transform_indices = @transform_8, window_bounds = array<i64: 2, 26, 13>}, {pipeline_mode = #tpu.pipeline_mode<synchronous>, transform_indices = @transform_9, window_bounds = array<i64: 1040, 128>}, {pipeline_mode = #tpu.pipeline_mode<synchronous>, transform_indices = @transform_10, window_bounds = array<i64: 1, 128>}, {pipeline_mode = #tpu.pipeline_mode<synchronous>, transform_indices = @transform_11, window_bounds = array<i64: 128, 128>}, {pipeline_mode = #tpu.pipeline_mode<synchronous>, transform_indices = @transform_12, window_bounds = array<i64: 1, 128>}, {pipeline_mode = #tpu.pipeline_mode<synchronous>, transform_indices = @transform_13, window_bounds = array<i64: 128, 128>}, {pipeline_mode = #tpu.pipeline_mode<synchronous>, transform_indices = @transform_14, window_bounds = array<i64: 1, 128>}, {transform_indices = @transform_15, window_bounds = array<i64: 1, 1, 128>}]} {
    %c0 = arith.constant 0 : index
    %c0_0 = arith.constant 0 : index
    %c0_1 = arith.constant 0 : index
    %0 = vector.load %arg1[%c0, %c0_0, %c0_1] : memref<1x96x64xf32, #tpu.memory_space<vmem>>, vector<1x96x64xf32>
    %1 = vector.shape_cast %0 : vector<1x96x64xf32> to vector<96x64xf32>
    %2 = arith.truncf %1 : vector<96x64xf32> to vector<96x64xbf16>
    %c0_2 = arith.constant 0 : index
    %c0_3 = arith.constant 0 : index
    %c0_4 = arith.constant 0 : index
    %3 = vector.load %arg2[%c0_2, %c0_3, %c0_4] : memref<5x168x96xbf16, #tpu.memory_space<vmem>>, vector<1x168x96xbf16>
    %4 = vector.shape_cast %3 : vector<1x168x96xbf16> to vector<168x96xbf16>
    %5 = vector.extract_strided_slice %2 {offsets = [0, 0], sizes = [96, 60], strides = [1, 1]} : vector<96x64xbf16> to vector<96x60xbf16>
    %cst = arith.constant dense<0.000000e+00> : vector<168x60xf32>
    %6 = tpu.matmul %4, %5, %cst {dimension_numbers = #tpu.dot_dimension_numbers<[1], [0], [0], [1], [0, 0, 1, 1], [], []>} : vector<168x96xbf16>, vector<96x60xbf16>, vector<168x60xf32> -> vector<168x60xf32>
    %c1 = arith.constant 1 : index
    %c0_5 = arith.constant 0 : index
    %c0_6 = arith.constant 0 : index
    %7 = vector.load %arg2[%c1, %c0_5, %c0_6] : memref<5x168x96xbf16, #tpu.memory_space<vmem>>, vector<1x168x96xbf16>
    %8 = vector.shape_cast %7 : vector<1x168x96xbf16> to vector<168x96xbf16>
    %9 = vector.extract_strided_slice %2 {offsets = [0, 1], sizes = [96, 60], strides = [1, 1]} : vector<96x64xbf16> to vector<96x60xbf16>
    %cst_7 = arith.constant dense<0.000000e+00> : vector<168x60xf32>
    %10 = tpu.matmul %8, %9, %cst_7 {dimension_numbers = #tpu.dot_dimension_numbers<[1], [0], [0], [1], [0, 0, 1, 1], [], []>} : vector<168x96xbf16>, vector<96x60xbf16>, vector<168x60xf32> -> vector<168x60xf32>
    %11 = arith.addf %6, %10 : vector<168x60xf32>
    %c2 = arith.constant 2 : index
    %c0_8 = arith.constant 0 : index
    %c0_9 = arith.constant 0 : index
    %12 = vector.load %arg2[%c2, %c0_8, %c0_9] : memref<5x168x96xbf16, #tpu.memory_space<vmem>>, vector<1x168x96xbf16>
    %13 = vector.shape_cast %12 : vector<1x168x96xbf16> to vector<168x96xbf16>
    %14 = vector.extract_strided_slice %2 {offsets = [0, 2], sizes = [96, 60], strides = [1, 1]} : vector<96x64xbf16> to vector<96x60xbf16>
    %cst_10 = arith.constant dense<0.000000e+00> : vector<168x60xf32>
    %15 = tpu.matmul %13, %14, %cst_10 {dimension_numbers = #tpu.dot_dimension_numbers<[1], [0], [0], [1], [0, 0, 1, 1], [], []>} : vector<168x96xbf16>, vector<96x60xbf16>, vector<168x60xf32> -> vector<168x60xf32>
    %16 = arith.addf %11, %15 : vector<168x60xf32>
    %c3 = arith.constant 3 : index
    %c0_11 = arith.constant 0 : index
    %c0_12 = arith.constant 0 : index
    %17 = vector.load %arg2[%c3, %c0_11, %c0_12] : memref<5x168x96xbf16, #tpu.memory_space<vmem>>, vector<1x168x96xbf16>
    %18 = vector.shape_cast %17 : vector<1x168x96xbf16> to vector<168x96xbf16>
    %19 = vector.extract_strided_slice %2 {offsets = [0, 3], sizes = [96, 60], strides = [1, 1]} : vector<96x64xbf16> to vector<96x60xbf16>
    %cst_13 = arith.constant dense<0.000000e+00> : vector<168x60xf32>
    %20 = tpu.matmul %18, %19, %cst_13 {dimension_numbers = #tpu.dot_dimension_numbers<[1], [0], [0], [1], [0, 0, 1, 1], [], []>} : vector<168x96xbf16>, vector<96x60xbf16>, vector<168x60xf32> -> vector<168x60xf32>
    %21 = arith.addf %16, %20 : vector<168x60xf32>
    %c4 = arith.constant 4 : index
    %c0_14 = arith.constant 0 : index
    %c0_15 = arith.constant 0 : index
    %22 = vector.load %arg2[%c4, %c0_14, %c0_15] : memref<5x168x96xbf16, #tpu.memory_space<vmem>>, vector<1x168x96xbf16>
    %23 = vector.shape_cast %22 : vector<1x168x96xbf16> to vector<168x96xbf16>
    %24 = vector.extract_strided_slice %2 {offsets = [0, 4], sizes = [96, 60], strides = [1, 1]} : vector<96x64xbf16> to vector<96x60xbf16>
    %cst_16 = arith.constant dense<0.000000e+00> : vector<168x60xf32>
    %25 = tpu.matmul %23, %24, %cst_16 {dimension_numbers = #tpu.dot_dimension_numbers<[1], [0], [0], [1], [0, 0, 1, 1], [], []>} : vector<168x96xbf16>, vector<96x60xbf16>, vector<168x60xf32> -> vector<168x60xf32>
    %26 = arith.addf %21, %25 : vector<168x60xf32>
    %c0_17 = arith.constant 0 : index
    %c0_18 = arith.constant 0 : index
    %27 = vector.load %arg3[%c0_17, %c0_18] : memref<168x1xf32, #tpu.memory_space<vmem>>, vector<168x1xf32>
    %28 = vector.broadcast %27 : vector<168x1xf32> to vector<168x60xf32>
    %29 = arith.addf %26, %28 : vector<168x60xf32>
    %cst_19 = arith.constant 0.000000e+00 : f32
    %30 = vector.broadcast %cst_19 : f32 to vector<168x60xf32>
    %31 = arith.maximumf %29, %30 : vector<168x60xf32>
    %32 = arith.truncf %31 : vector<168x60xf32> to vector<168x60xbf16>
    %c0_20 = arith.constant 0 : index
    %c0_21 = arith.constant 0 : index
    %c0_22 = arith.constant 0 : index
    %33 = vector.load %arg4[%c0_20, %c0_21, %c0_22] : memref<2x84x168xbf16, #tpu.memory_space<vmem>>, vector<1x84x168xbf16>
    %34 = vector.shape_cast %33 : vector<1x84x168xbf16> to vector<84x168xbf16>
    %cst_23 = arith.constant dense<0.000000e+00> : vector<84x60xf32>
    %35 = tpu.matmul %34, %32, %cst_23 {dimension_numbers = #tpu.dot_dimension_numbers<[1], [0], [0], [1], [0, 0, 1, 1], [], []>} : vector<84x168xbf16>, vector<168x60xbf16>, vector<84x60xf32> -> vector<84x60xf32>
    %c1_24 = arith.constant 1 : index
    %c0_25 = arith.constant 0 : index
    %c0_26 = arith.constant 0 : index
    %36 = vector.load %arg4[%c1_24, %c0_25, %c0_26] : memref<2x84x168xbf16, #tpu.memory_space<vmem>>, vector<1x84x168xbf16>
    %37 = vector.shape_cast %36 : vector<1x84x168xbf16> to vector<84x168xbf16>
    %cst_27 = arith.constant dense<0.000000e+00> : vector<84x60xf32>
    %38 = tpu.matmul %37, %32, %cst_27 {dimension_numbers = #tpu.dot_dimension_numbers<[1], [0], [0], [1], [0, 0, 1, 1], [], []>} : vector<84x168xbf16>, vector<168x60xbf16>, vector<84x60xf32> -> vector<84x60xf32>
    %39 = arith.maximumf %35, %38 : vector<84x60xf32>
    %40 = arith.truncf %39 : vector<84x60xf32> to vector<84x60xbf16>
    %c0_28 = arith.constant 0 : index
    %c0_29 = arith.constant 0 : index
    %c0_30 = arith.constant 0 : index
    %41 = vector.load %arg5[%c0_28, %c0_29, %c0_30] : memref<2x60x30xbf16, #tpu.memory_space<vmem>>, vector<1x60x30xbf16>
    %42 = vector.shape_cast %41 : vector<1x60x30xbf16> to vector<60x30xbf16>
    %cst_31 = arith.constant dense<0.000000e+00> : vector<84x30xf32>
    %43 = tpu.matmul %40, %42, %cst_31 {dimension_numbers = #tpu.dot_dimension_numbers<[1], [0], [0], [1], [0, 0, 1, 1], [], []>} : vector<84x60xbf16>, vector<60x30xbf16>, vector<84x30xf32> -> vector<84x30xf32>
    %c1_32 = arith.constant 1 : index
    %c0_33 = arith.constant 0 : index
    %c0_34 = arith.constant 0 : index
    %44 = vector.load %arg5[%c1_32, %c0_33, %c0_34] : memref<2x60x30xbf16, #tpu.memory_space<vmem>>, vector<1x60x30xbf16>
    %45 = vector.shape_cast %44 : vector<1x60x30xbf16> to vector<60x30xbf16>
    %cst_35 = arith.constant dense<0.000000e+00> : vector<84x30xf32>
    %46 = tpu.matmul %40, %45, %cst_35 {dimension_numbers = #tpu.dot_dimension_numbers<[1], [0], [0], [1], [0, 0, 1, 1], [], []>} : vector<84x60xbf16>, vector<60x30xbf16>, vector<84x30xf32> -> vector<84x30xf32>
    %47 = arith.maximumf %43, %46 : vector<84x30xf32>
    %48 = arith.truncf %47 : vector<84x30xf32> to vector<84x30xbf16>
    %c0_36 = arith.constant 0 : index
    %c0_37 = arith.constant 0 : index
    %c0_38 = arith.constant 0 : index
    %49 = vector.load %arg6[%c0_36, %c0_37, %c0_38] : memref<5x160x84xbf16, #tpu.memory_space<vmem>>, vector<1x160x84xbf16>
    %50 = vector.shape_cast %49 : vector<1x160x84xbf16> to vector<160x84xbf16>
    %51 = vector.extract_strided_slice %48 {offsets = [0, 0], sizes = [84, 26], strides = [1, 1]} : vector<84x30xbf16> to vector<84x26xbf16>
    %cst_39 = arith.constant dense<0.000000e+00> : vector<160x26xf32>
    %52 = tpu.matmul %50, %51, %cst_39 {dimension_numbers = #tpu.dot_dimension_numbers<[1], [0], [0], [1], [0, 0, 1, 1], [], []>} : vector<160x84xbf16>, vector<84x26xbf16>, vector<160x26xf32> -> vector<160x26xf32>
    %c1_40 = arith.constant 1 : index
    %c0_41 = arith.constant 0 : index
    %c0_42 = arith.constant 0 : index
    %53 = vector.load %arg6[%c1_40, %c0_41, %c0_42] : memref<5x160x84xbf16, #tpu.memory_space<vmem>>, vector<1x160x84xbf16>
    %54 = vector.shape_cast %53 : vector<1x160x84xbf16> to vector<160x84xbf16>
    %55 = vector.extract_strided_slice %48 {offsets = [0, 1], sizes = [84, 26], strides = [1, 1]} : vector<84x30xbf16> to vector<84x26xbf16>
    %cst_43 = arith.constant dense<0.000000e+00> : vector<160x26xf32>
    %56 = tpu.matmul %54, %55, %cst_43 {dimension_numbers = #tpu.dot_dimension_numbers<[1], [0], [0], [1], [0, 0, 1, 1], [], []>} : vector<160x84xbf16>, vector<84x26xbf16>, vector<160x26xf32> -> vector<160x26xf32>
    %57 = arith.addf %52, %56 : vector<160x26xf32>
    %c2_44 = arith.constant 2 : index
    %c0_45 = arith.constant 0 : index
    %c0_46 = arith.constant 0 : index
    %58 = vector.load %arg6[%c2_44, %c0_45, %c0_46] : memref<5x160x84xbf16, #tpu.memory_space<vmem>>, vector<1x160x84xbf16>
    %59 = vector.shape_cast %58 : vector<1x160x84xbf16> to vector<160x84xbf16>
    %60 = vector.extract_strided_slice %48 {offsets = [0, 2], sizes = [84, 26], strides = [1, 1]} : vector<84x30xbf16> to vector<84x26xbf16>
    %cst_47 = arith.constant dense<0.000000e+00> : vector<160x26xf32>
    %61 = tpu.matmul %59, %60, %cst_47 {dimension_numbers = #tpu.dot_dimension_numbers<[1], [0], [0], [1], [0, 0, 1, 1], [], []>} : vector<160x84xbf16>, vector<84x26xbf16>, vector<160x26xf32> -> vector<160x26xf32>
    %62 = arith.addf %57, %61 : vector<160x26xf32>
    %c3_48 = arith.constant 3 : index
    %c0_49 = arith.constant 0 : index
    %c0_50 = arith.constant 0 : index
    %63 = vector.load %arg6[%c3_48, %c0_49, %c0_50] : memref<5x160x84xbf16, #tpu.memory_space<vmem>>, vector<1x160x84xbf16>
    %64 = vector.shape_cast %63 : vector<1x160x84xbf16> to vector<160x84xbf16>
    %65 = vector.extract_strided_slice %48 {offsets = [0, 3], sizes = [84, 26], strides = [1, 1]} : vector<84x30xbf16> to vector<84x26xbf16>
    %cst_51 = arith.constant dense<0.000000e+00> : vector<160x26xf32>
    %66 = tpu.matmul %64, %65, %cst_51 {dimension_numbers = #tpu.dot_dimension_numbers<[1], [0], [0], [1], [0, 0, 1, 1], [], []>} : vector<160x84xbf16>, vector<84x26xbf16>, vector<160x26xf32> -> vector<160x26xf32>
    %67 = arith.addf %62, %66 : vector<160x26xf32>
    %c4_52 = arith.constant 4 : index
    %c0_53 = arith.constant 0 : index
    %c0_54 = arith.constant 0 : index
    %68 = vector.load %arg6[%c4_52, %c0_53, %c0_54] : memref<5x160x84xbf16, #tpu.memory_space<vmem>>, vector<1x160x84xbf16>
    %69 = vector.shape_cast %68 : vector<1x160x84xbf16> to vector<160x84xbf16>
    %70 = vector.extract_strided_slice %48 {offsets = [0, 4], sizes = [84, 26], strides = [1, 1]} : vector<84x30xbf16> to vector<84x26xbf16>
    %cst_55 = arith.constant dense<0.000000e+00> : vector<160x26xf32>
    %71 = tpu.matmul %69, %70, %cst_55 {dimension_numbers = #tpu.dot_dimension_numbers<[1], [0], [0], [1], [0, 0, 1, 1], [], []>} : vector<160x84xbf16>, vector<84x26xbf16>, vector<160x26xf32> -> vector<160x26xf32>
    %72 = arith.addf %67, %71 : vector<160x26xf32>
    %c0_56 = arith.constant 0 : index
    %c0_57 = arith.constant 0 : index
    %73 = vector.load %arg7[%c0_56, %c0_57] : memref<160x1xf32, #tpu.memory_space<vmem>>, vector<160x1xf32>
    %74 = vector.broadcast %73 : vector<160x1xf32> to vector<160x26xf32>
    %75 = arith.addf %72, %74 : vector<160x26xf32>
    %cst_58 = arith.constant 0.000000e+00 : f32
    %76 = vector.broadcast %cst_58 : f32 to vector<160x26xf32>
    %77 = arith.maximumf %75, %76 : vector<160x26xf32>
    %78 = arith.truncf %77 : vector<160x26xf32> to vector<160x26xbf16>
    %c0_59 = arith.constant 0 : index
    %c0_60 = arith.constant 0 : index
    %c0_61 = arith.constant 0 : index
    %79 = vector.load %arg8[%c0_59, %c0_60, %c0_61] : memref<2x80x160xbf16, #tpu.memory_space<vmem>>, vector<1x80x160xbf16>
    %80 = vector.shape_cast %79 : vector<1x80x160xbf16> to vector<80x160xbf16>
    %cst_62 = arith.constant dense<0.000000e+00> : vector<80x26xf32>
    %81 = tpu.matmul %80, %78, %cst_62 {dimension_numbers = #tpu.dot_dimension_numbers<[1], [0], [0], [1], [0, 0, 1, 1], [], []>} : vector<80x160xbf16>, vector<160x26xbf16>, vector<80x26xf32> -> vector<80x26xf32>
    %c1_63 = arith.constant 1 : index
    %c0_64 = arith.constant 0 : index
    %c0_65 = arith.constant 0 : index
    %82 = vector.load %arg8[%c1_63, %c0_64, %c0_65] : memref<2x80x160xbf16, #tpu.memory_space<vmem>>, vector<1x80x160xbf16>
    %83 = vector.shape_cast %82 : vector<1x80x160xbf16> to vector<80x160xbf16>
    %cst_66 = arith.constant dense<0.000000e+00> : vector<80x26xf32>
    %84 = tpu.matmul %83, %78, %cst_66 {dimension_numbers = #tpu.dot_dimension_numbers<[1], [0], [0], [1], [0, 0, 1, 1], [], []>} : vector<80x160xbf16>, vector<160x26xbf16>, vector<80x26xf32> -> vector<80x26xf32>
    %85 = arith.maximumf %81, %84 : vector<80x26xf32>
    %86 = arith.truncf %85 : vector<80x26xf32> to vector<80x26xbf16>
    %c0_67 = arith.constant 0 : index
    %c0_68 = arith.constant 0 : index
    %c0_69 = arith.constant 0 : index
    %87 = vector.load %arg9[%c0_67, %c0_68, %c0_69] : memref<2x26x13xbf16, #tpu.memory_space<vmem>>, vector<1x26x13xbf16>
    %88 = vector.shape_cast %87 : vector<1x26x13xbf16> to vector<26x13xbf16>
    %cst_70 = arith.constant dense<0.000000e+00> : vector<80x13xf32>
    %89 = tpu.matmul %86, %88, %cst_70 {dimension_numbers = #tpu.dot_dimension_numbers<[1], [0], [0], [1], [0, 0, 1, 1], [], []>} : vector<80x26xbf16>, vector<26x13xbf16>, vector<80x13xf32> -> vector<80x13xf32>
    %c1_71 = arith.constant 1 : index
    %c0_72 = arith.constant 0 : index
    %c0_73 = arith.constant 0 : index
    %90 = vector.load %arg9[%c1_71, %c0_72, %c0_73] : memref<2x26x13xbf16, #tpu.memory_space<vmem>>, vector<1x26x13xbf16>
    %91 = vector.shape_cast %90 : vector<1x26x13xbf16> to vector<26x13xbf16>
    %cst_74 = arith.constant dense<0.000000e+00> : vector<80x13xf32>
    %92 = tpu.matmul %86, %91, %cst_74 {dimension_numbers = #tpu.dot_dimension_numbers<[1], [0], [0], [1], [0, 0, 1, 1], [], []>} : vector<80x26xbf16>, vector<26x13xbf16>, vector<80x13xf32> -> vector<80x13xf32>
    %93 = arith.maximumf %89, %92 : vector<80x13xf32>
    %94 = vector.extract_strided_slice %93 {offsets = [0, 0], sizes = [1, 13], strides = [1, 1]} : vector<80x13xf32> to vector<1x13xf32>
    %c0_75 = arith.constant 0 : index
    %c0_76 = arith.constant 0 : index
    %95 = vector.load %arg17[%c0_75, %c0_76] : memref<1x1040xf32, #tpu.memory_space<vmem>>, vector<1x13xf32>
    tpu.vector_store %arg17[%c0_75, %c0_76], %94 {strides = array<i32>} : memref<1x1040xf32, #tpu.memory_space<vmem>>, vector<1x13xf32>,
    %96 = vector.extract_strided_slice %93 {offsets = [1, 0], sizes = [1, 13], strides = [1, 1]} : vector<80x13xf32> to vector<1x13xf32>
    %c0_77 = arith.constant 0 : index
    %c13 = arith.constant 13 : index
    %97 = vector.load %arg17[%c0_77, %c13] : memref<1x1040xf32, #tpu.memory_space<vmem>>, vector<1x13xf32>
    tpu.vector_store %arg17[%c0_77, %c13], %96 {strides = array<i32>} : memref<1x1040xf32, #tpu.memory_space<vmem>>, vector<1x13xf32>,
    %98 = vector.extract_strided_slice %93 {offsets = [2, 0], sizes = [1, 13], strides = [1, 1]} : vector<80x13xf32> to vector<1x13xf32>
    %c0_78 = arith.constant 0 : index
    %c26 = arith.constant 26 : index
    %99 = vector.load %arg17[%c0_78, %c26] : memref<1x1040xf32, #tpu.memory_space<vmem>>, vector<1x13xf32>
    tpu.vector_store %arg17[%c0_78, %c26], %98 {strides = array<i32>} : memref<1x1040xf32, #tpu.memory_space<vmem>>, vector<1x13xf32>,
    %100 = vector.extract_strided_slice %93 {offsets = [3, 0], sizes = [1, 13], strides = [1, 1]} : vector<80x13xf32> to vector<1x13xf32>
    %c0_79 = arith.constant 0 : index
    %c39 = arith.constant 39 : index
    %101 = vector.load %arg17[%c0_79, %c39] : memref<1x1040xf32, #tpu.memory_space<vmem>>, vector<1x13xf32>
    tpu.vector_store %arg17[%c0_79, %c39], %100 {strides = array<i32>} : memref<1x1040xf32, #tpu.memory_space<vmem>>, vector<1x13xf32>,
    %102 = vector.extract_strided_slice %93 {offsets = [4, 0], sizes = [1, 13], strides = [1, 1]} : vector<80x13xf32> to vector<1x13xf32>
    %c0_80 = arith.constant 0 : index
    %c52 = arith.constant 52 : index
    %103 = vector.load %arg17[%c0_80, %c52] : memref<1x1040xf32, #tpu.memory_space<vmem>>, vector<1x13xf32>
    tpu.vector_store %arg17[%c0_80, %c52], %102 {strides = array<i32>} : memref<1x1040xf32, #tpu.memory_space<vmem>>, vector<1x13xf32>,
    %104 = vector.extract_strided_slice %93 {offsets = [5, 0], sizes = [1, 13], strides = [1, 1]} : vector<80x13xf32> to vector<1x13xf32>
    %c0_81 = arith.constant 0 : index
    %c65 = arith.constant 65 : index
    %105 = vector.load %arg17[%c0_81, %c65] : memref<1x1040xf32, #tpu.memory_space<vmem>>, vector<1x13xf32>
    tpu.vector_store %arg17[%c0_81, %c65], %104 {strides = array<i32>} : memref<1x1040xf32, #tpu.memory_space<vmem>>, vector<1x13xf32>,
    %106 = vector.extract_strided_slice %93 {offsets = [6, 0], sizes = [1, 13], strides = [1, 1]} : vector<80x13xf32> to vector<1x13xf32>
    %c0_82 = arith.constant 0 : index
    %c78 = arith.constant 78 : index
    %107 = vector.load %arg17[%c0_82, %c78] : memref<1x1040xf32, #tpu.memory_space<vmem>>, vector<1x13xf32>
    tpu.vector_store %arg17[%c0_82, %c78], %106 {strides = array<i32>} : memref<1x1040xf32, #tpu.memory_space<vmem>>, vector<1x13xf32>,
    %108 = vector.extract_strided_slice %93 {offsets = [7, 0], sizes = [1, 13], strides = [1, 1]} : vector<80x13xf32> to vector<1x13xf32>
    %c0_83 = arith.constant 0 : index
    %c91 = arith.constant 91 : index
    %109 = vector.load %arg17[%c0_83, %c91] : memref<1x1040xf32, #tpu.memory_space<vmem>>, vector<1x13xf32>
    tpu.vector_store %arg17[%c0_83, %c91], %108 {strides = array<i32>} : memref<1x1040xf32, #tpu.memory_space<vmem>>, vector<1x13xf32>,
    %110 = vector.extract_strided_slice %93 {offsets = [8, 0], sizes = [1, 13], strides = [1, 1]} : vector<80x13xf32> to vector<1x13xf32>
    %c0_84 = arith.constant 0 : index
    %c104 = arith.constant 104 : index
    %111 = vector.load %arg17[%c0_84, %c104] : memref<1x1040xf32, #tpu.memory_space<vmem>>, vector<1x13xf32>
    tpu.vector_store %arg17[%c0_84, %c104], %110 {strides = array<i32>} : memref<1x1040xf32, #tpu.memory_space<vmem>>, vector<1x13xf32>,
    %112 = vector.extract_strided_slice %93 {offsets = [9, 0], sizes = [1, 13], strides = [1, 1]} : vector<80x13xf32> to vector<1x13xf32>
    %c0_85 = arith.constant 0 : index
    %c117 = arith.constant 117 : index
    %113 = vector.load %arg17[%c0_85, %c117] : memref<1x1040xf32, #tpu.memory_space<vmem>>, vector<1x13xf32>
    tpu.vector_store %arg17[%c0_85, %c117], %112 {strides = array<i32>} : memref<1x1040xf32, #tpu.memory_space<vmem>>, vector<1x13xf32>,
    %114 = vector.extract_strided_slice %93 {offsets = [10, 0], sizes = [1, 13], strides = [1, 1]} : vector<80x13xf32> to vector<1x13xf32>
    %c0_86 = arith.constant 0 : index
    %c130 = arith.constant 130 : index
    %115 = vector.load %arg17[%c0_86, %c130] : memref<1x1040xf32, #tpu.memory_space<vmem>>, vector<1x13xf32>
    tpu.vector_store %arg17[%c0_86, %c130], %114 {strides = array<i32>} : memref<1x1040xf32, #tpu.memory_space<vmem>>, vector<1x13xf32>,
    %116 = vector.extract_strided_slice %93 {offsets = [11, 0], sizes = [1, 13], strides = [1, 1]} : vector<80x13xf32> to vector<1x13xf32>
    %c0_87 = arith.constant 0 : index
    %c143 = arith.constant 143 : index
    %117 = vector.load %arg17[%c0_87, %c143] : memref<1x1040xf32, #tpu.memory_space<vmem>>, vector<1x13xf32>
    tpu.vector_store %arg17[%c0_87, %c143], %116 {strides = array<i32>} : memref<1x1040xf32, #tpu.memory_space<vmem>>, vector<1x13xf32>,
    %118 = vector.extract_strided_slice %93 {offsets = [12, 0], sizes = [1, 13], strides = [1, 1]} : vector<80x13xf32> to vector<1x13xf32>
    %c0_88 = arith.constant 0 : index
    %c156 = arith.constant 156 : index
    %119 = vector.load %arg17[%c0_88, %c156] : memref<1x1040xf32, #tpu.memory_space<vmem>>, vector<1x13xf32>
    tpu.vector_store %arg17[%c0_88, %c156], %118 {strides = array<i32>} : memref<1x1040xf32, #tpu.memory_space<vmem>>, vector<1x13xf32>,
    %120 = vector.extract_strided_slice %93 {offsets = [13, 0], sizes = [1, 13], strides = [1, 1]} : vector<80x13xf32> to vector<1x13xf32>
    %c0_89 = arith.constant 0 : index
    %c169 = arith.constant 169 : index
    %121 = vector.load %arg17[%c0_89, %c169] : memref<1x1040xf32, #tpu.memory_space<vmem>>, vector<1x13xf32>
    tpu.vector_store %arg17[%c0_89, %c169], %120 {strides = array<i32>} : memref<1x1040xf32, #tpu.memory_space<vmem>>, vector<1x13xf32>,
    %122 = vector.extract_strided_slice %93 {offsets = [14, 0], sizes = [1, 13], strides = [1, 1]} : vector<80x13xf32> to vector<1x13xf32>
    %c0_90 = arith.constant 0 : index
    %c182 = arith.constant 182 : index
    %123 = vector.load %arg17[%c0_90, %c182] : memref<1x1040xf32, #tpu.memory_space<vmem>>, vector<1x13xf32>
    tpu.vector_store %arg17[%c0_90, %c182], %122 {strides = array<i32>} : memref<1x1040xf32, #tpu.memory_space<vmem>>, vector<1x13xf32>,
    %124 = vector.extract_strided_slice %93 {offsets = [15, 0], sizes = [1, 13], strides = [1, 1]} : vector<80x13xf32> to vector<1x13xf32>
    %c0_91 = arith.constant 0 : index
    %c195 = arith.constant 195 : index
    %125 = vector.load %arg17[%c0_91, %c195] : memref<1x1040xf32, #tpu.memory_space<vmem>>, vector<1x13xf32>
    tpu.vector_store %arg17[%c0_91, %c195], %124 {strides = array<i32>} : memref<1x1040xf32, #tpu.memory_space<vmem>>, vector<1x13xf32>,
    %126 = vector.extract_strided_slice %93 {offsets = [16, 0], sizes = [1, 13], strides = [1, 1]} : vector<80x13xf32> to vector<1x13xf32>
    %c0_92 = arith.constant 0 : index
    %c208 = arith.constant 208 : index
    %127 = vector.load %arg17[%c0_92, %c208] : memref<1x1040xf32, #tpu.memory_space<vmem>>, vector<1x13xf32>
    tpu.vector_store %arg17[%c0_92, %c208], %126 {strides = array<i32>} : memref<1x1040xf32, #tpu.memory_space<vmem>>, vector<1x13xf32>,
    %128 = vector.extract_strided_slice %93 {offsets = [17, 0], sizes = [1, 13], strides = [1, 1]} : vector<80x13xf32> to vector<1x13xf32>
    %c0_93 = arith.constant 0 : index
    %c221 = arith.constant 221 : index
    %129 = vector.load %arg17[%c0_93, %c221] : memref<1x1040xf32, #tpu.memory_space<vmem>>, vector<1x13xf32>
    tpu.vector_store %arg17[%c0_93, %c221], %128 {strides = array<i32>} : memref<1x1040xf32, #tpu.memory_space<vmem>>, vector<1x13xf32>,
    %130 = vector.extract_strided_slice %93 {offsets = [18, 0], sizes = [1, 13], strides = [1, 1]} : vector<80x13xf32> to vector<1x13xf32>
    %c0_94 = arith.constant 0 : index
    %c234 = arith.constant 234 : index
    %131 = vector.load %arg17[%c0_94, %c234] : memref<1x1040xf32, #tpu.memory_space<vmem>>, vector<1x13xf32>
    tpu.vector_store %arg17[%c0_94, %c234], %130 {strides = array<i32>} : memref<1x1040xf32, #tpu.memory_space<vmem>>, vector<1x13xf32>,
    %132 = vector.extract_strided_slice %93 {offsets = [19, 0], sizes = [1, 13], strides = [1, 1]} : vector<80x13xf32> to vector<1x13xf32>
    %c0_95 = arith.constant 0 : index
    %c247 = arith.constant 247 : index
    %133 = vector.load %arg17[%c0_95, %c247] : memref<1x1040xf32, #tpu.memory_space<vmem>>, vector<1x13xf32>
    tpu.vector_store %arg17[%c0_95, %c247], %132 {strides = array<i32>} : memref<1x1040xf32, #tpu.memory_space<vmem>>, vector<1x13xf32>,
    %134 = vector.extract_strided_slice %93 {offsets = [20, 0], sizes = [1, 13], strides = [1, 1]} : vector<80x13xf32> to vector<1x13xf32>
    %c0_96 = arith.constant 0 : index
    %c260 = arith.constant 260 : index
    %135 = vector.load %arg17[%c0_96, %c260] : memref<1x1040xf32, #tpu.memory_space<vmem>>, vector<1x13xf32>
    tpu.vector_store %arg17[%c0_96, %c260], %134 {strides = array<i32>} : memref<1x1040xf32, #tpu.memory_space<vmem>>, vector<1x13xf32>,
    %136 = vector.extract_strided_slice %93 {offsets = [21, 0], sizes = [1, 13], strides = [1, 1]} : vector<80x13xf32> to vector<1x13xf32>
    %c0_97 = arith.constant 0 : index
    %c273 = arith.constant 273 : index
    %137 = vector.load %arg17[%c0_97, %c273] : memref<1x1040xf32, #tpu.memory_space<vmem>>, vector<1x13xf32>
    tpu.vector_store %arg17[%c0_97, %c273], %136 {strides = array<i32>} : memref<1x1040xf32, #tpu.memory_space<vmem>>, vector<1x13xf32>,
    %138 = vector.extract_strided_slice %93 {offsets = [22, 0], sizes = [1, 13], strides = [1, 1]} : vector<80x13xf32> to vector<1x13xf32>
    %c0_98 = arith.constant 0 : index
    %c286 = arith.constant 286 : index
    %139 = vector.load %arg17[%c0_98, %c286] : memref<1x1040xf32, #tpu.memory_space<vmem>>, vector<1x13xf32>
    tpu.vector_store %arg17[%c0_98, %c286], %138 {strides = array<i32>} : memref<1x1040xf32, #tpu.memory_space<vmem>>, vector<1x13xf32>,
    %140 = vector.extract_strided_slice %93 {offsets = [23, 0], sizes = [1, 13], strides = [1, 1]} : vector<80x13xf32> to vector<1x13xf32>
    %c0_99 = arith.constant 0 : index
    %c299 = arith.constant 299 : index
    %141 = vector.load %arg17[%c0_99, %c299] : memref<1x1040xf32, #tpu.memory_space<vmem>>, vector<1x13xf32>
    tpu.vector_store %arg17[%c0_99, %c299], %140 {strides = array<i32>} : memref<1x1040xf32, #tpu.memory_space<vmem>>, vector<1x13xf32>,
    %142 = vector.extract_strided_slice %93 {offsets = [24, 0], sizes = [1, 13], strides = [1, 1]} : vector<80x13xf32> to vector<1x13xf32>
    %c0_100 = arith.constant 0 : index
    %c312 = arith.constant 312 : index
    %143 = vector.load %arg17[%c0_100, %c312] : memref<1x1040xf32, #tpu.memory_space<vmem>>, vector<1x13xf32>
    tpu.vector_store %arg17[%c0_100, %c312], %142 {strides = array<i32>} : memref<1x1040xf32, #tpu.memory_space<vmem>>, vector<1x13xf32>,
    %144 = vector.extract_strided_slice %93 {offsets = [25, 0], sizes = [1, 13], strides = [1, 1]} : vector<80x13xf32> to vector<1x13xf32>
    %c0_101 = arith.constant 0 : index
    %c325 = arith.constant 325 : index
    %145 = vector.load %arg17[%c0_101, %c325] : memref<1x1040xf32, #tpu.memory_space<vmem>>, vector<1x13xf32>
    tpu.vector_store %arg17[%c0_101, %c325], %144 {strides = array<i32>} : memref<1x1040xf32, #tpu.memory_space<vmem>>, vector<1x13xf32>,
    %146 = vector.extract_strided_slice %93 {offsets = [26, 0], sizes = [1, 13], strides = [1, 1]} : vector<80x13xf32> to vector<1x13xf32>
    %c0_102 = arith.constant 0 : index
    %c338 = arith.constant 338 : index
    %147 = vector.load %arg17[%c0_102, %c338] : memref<1x1040xf32, #tpu.memory_space<vmem>>, vector<1x13xf32>
    tpu.vector_store %arg17[%c0_102, %c338], %146 {strides = array<i32>} : memref<1x1040xf32, #tpu.memory_space<vmem>>, vector<1x13xf32>,
    %148 = vector.extract_strided_slice %93 {offsets = [27, 0], sizes = [1, 13], strides = [1, 1]} : vector<80x13xf32> to vector<1x13xf32>
    %c0_103 = arith.constant 0 : index
    %c351 = arith.constant 351 : index
    %149 = vector.load %arg17[%c0_103, %c351] : memref<1x1040xf32, #tpu.memory_space<vmem>>, vector<1x13xf32>
    tpu.vector_store %arg17[%c0_103, %c351], %148 {strides = array<i32>} : memref<1x1040xf32, #tpu.memory_space<vmem>>, vector<1x13xf32>,
    %150 = vector.extract_strided_slice %93 {offsets = [28, 0], sizes = [1, 13], strides = [1, 1]} : vector<80x13xf32> to vector<1x13xf32>
    %c0_104 = arith.constant 0 : index
    %c364 = arith.constant 364 : index
    %151 = vector.load %arg17[%c0_104, %c364] : memref<1x1040xf32, #tpu.memory_space<vmem>>, vector<1x13xf32>
    tpu.vector_store %arg17[%c0_104, %c364], %150 {strides = array<i32>} : memref<1x1040xf32, #tpu.memory_space<vmem>>, vector<1x13xf32>,
    %152 = vector.extract_strided_slice %93 {offsets = [29, 0], sizes = [1, 13], strides = [1, 1]} : vector<80x13xf32> to vector<1x13xf32>
    %c0_105 = arith.constant 0 : index
    %c377 = arith.constant 377 : index
    %153 = vector.load %arg17[%c0_105, %c377] : memref<1x1040xf32, #tpu.memory_space<vmem>>, vector<1x13xf32>
    tpu.vector_store %arg17[%c0_105, %c377], %152 {strides = array<i32>} : memref<1x1040xf32, #tpu.memory_space<vmem>>, vector<1x13xf32>,
    %154 = vector.extract_strided_slice %93 {offsets = [30, 0], sizes = [1, 13], strides = [1, 1]} : vector<80x13xf32> to vector<1x13xf32>
    %c0_106 = arith.constant 0 : index
    %c390 = arith.constant 390 : index
    %155 = vector.load %arg17[%c0_106, %c390] : memref<1x1040xf32, #tpu.memory_space<vmem>>, vector<1x13xf32>
    tpu.vector_store %arg17[%c0_106, %c390], %154 {strides = array<i32>} : memref<1x1040xf32, #tpu.memory_space<vmem>>, vector<1x13xf32>,
    %156 = vector.extract_strided_slice %93 {offsets = [31, 0], sizes = [1, 13], strides = [1, 1]} : vector<80x13xf32> to vector<1x13xf32>
    %c0_107 = arith.constant 0 : index
    %c403 = arith.constant 403 : index
    %157 = vector.load %arg17[%c0_107, %c403] : memref<1x1040xf32, #tpu.memory_space<vmem>>, vector<1x13xf32>
    tpu.vector_store %arg17[%c0_107, %c403], %156 {strides = array<i32>} : memref<1x1040xf32, #tpu.memory_space<vmem>>, vector<1x13xf32>,
    %158 = vector.extract_strided_slice %93 {offsets = [32, 0], sizes = [1, 13], strides = [1, 1]} : vector<80x13xf32> to vector<1x13xf32>
    %c0_108 = arith.constant 0 : index
    %c416 = arith.constant 416 : index
    %159 = vector.load %arg17[%c0_108, %c416] : memref<1x1040xf32, #tpu.memory_space<vmem>>, vector<1x13xf32>
    tpu.vector_store %arg17[%c0_108, %c416], %158 {strides = array<i32>} : memref<1x1040xf32, #tpu.memory_space<vmem>>, vector<1x13xf32>,
    %160 = vector.extract_strided_slice %93 {offsets = [33, 0], sizes = [1, 13], strides = [1, 1]} : vector<80x13xf32> to vector<1x13xf32>
    %c0_109 = arith.constant 0 : index
    %c429 = arith.constant 429 : index
    %161 = vector.load %arg17[%c0_109, %c429] : memref<1x1040xf32, #tpu.memory_space<vmem>>, vector<1x13xf32>
    tpu.vector_store %arg17[%c0_109, %c429], %160 {strides = array<i32>} : memref<1x1040xf32, #tpu.memory_space<vmem>>, vector<1x13xf32>,
    %162 = vector.extract_strided_slice %93 {offsets = [34, 0], sizes = [1, 13], strides = [1, 1]} : vector<80x13xf32> to vector<1x13xf32>
    %c0_110 = arith.constant 0 : index
    %c442 = arith.constant 442 : index
    %163 = vector.load %arg17[%c0_110, %c442] : memref<1x1040xf32, #tpu.memory_space<vmem>>, vector<1x13xf32>
    tpu.vector_store %arg17[%c0_110, %c442], %162 {strides = array<i32>} : memref<1x1040xf32, #tpu.memory_space<vmem>>, vector<1x13xf32>,
    %164 = vector.extract_strided_slice %93 {offsets = [35, 0], sizes = [1, 13], strides = [1, 1]} : vector<80x13xf32> to vector<1x13xf32>
    %c0_111 = arith.constant 0 : index
    %c455 = arith.constant 455 : index
    %165 = vector.load %arg17[%c0_111, %c455] : memref<1x1040xf32, #tpu.memory_space<vmem>>, vector<1x13xf32>
    tpu.vector_store %arg17[%c0_111, %c455], %164 {strides = array<i32>} : memref<1x1040xf32, #tpu.memory_space<vmem>>, vector<1x13xf32>,
    %166 = vector.extract_strided_slice %93 {offsets = [36, 0], sizes = [1, 13], strides = [1, 1]} : vector<80x13xf32> to vector<1x13xf32>
    %c0_112 = arith.constant 0 : index
    %c468 = arith.constant 468 : index
    %167 = vector.load %arg17[%c0_112, %c468] : memref<1x1040xf32, #tpu.memory_space<vmem>>, vector<1x13xf32>
    tpu.vector_store %arg17[%c0_112, %c468], %166 {strides = array<i32>} : memref<1x1040xf32, #tpu.memory_space<vmem>>, vector<1x13xf32>,
    %168 = vector.extract_strided_slice %93 {offsets = [37, 0], sizes = [1, 13], strides = [1, 1]} : vector<80x13xf32> to vector<1x13xf32>
    %c0_113 = arith.constant 0 : index
    %c481 = arith.constant 481 : index
    %169 = vector.load %arg17[%c0_113, %c481] : memref<1x1040xf32, #tpu.memory_space<vmem>>, vector<1x13xf32>
    tpu.vector_store %arg17[%c0_113, %c481], %168 {strides = array<i32>} : memref<1x1040xf32, #tpu.memory_space<vmem>>, vector<1x13xf32>,
    %170 = vector.extract_strided_slice %93 {offsets = [38, 0], sizes = [1, 13], strides = [1, 1]} : vector<80x13xf32> to vector<1x13xf32>
    %c0_114 = arith.constant 0 : index
    %c494 = arith.constant 494 : index
    %171 = vector.load %arg17[%c0_114, %c494] : memref<1x1040xf32, #tpu.memory_space<vmem>>, vector<1x13xf32>
    tpu.vector_store %arg17[%c0_114, %c494], %170 {strides = array<i32>} : memref<1x1040xf32, #tpu.memory_space<vmem>>, vector<1x13xf32>,
    %172 = vector.extract_strided_slice %93 {offsets = [39, 0], sizes = [1, 13], strides = [1, 1]} : vector<80x13xf32> to vector<1x13xf32>
    %c0_115 = arith.constant 0 : index
    %c507 = arith.constant 507 : index
    %173 = vector.load %arg17[%c0_115, %c507] : memref<1x1040xf32, #tpu.memory_space<vmem>>, vector<1x13xf32>
    tpu.vector_store %arg17[%c0_115, %c507], %172 {strides = array<i32>} : memref<1x1040xf32, #tpu.memory_space<vmem>>, vector<1x13xf32>,
    %174 = vector.extract_strided_slice %93 {offsets = [40, 0], sizes = [1, 13], strides = [1, 1]} : vector<80x13xf32> to vector<1x13xf32>
    %c0_116 = arith.constant 0 : index
    %c520 = arith.constant 520 : index
    %175 = vector.load %arg17[%c0_116, %c520] : memref<1x1040xf32, #tpu.memory_space<vmem>>, vector<1x13xf32>
    tpu.vector_store %arg17[%c0_116, %c520], %174 {strides = array<i32>} : memref<1x1040xf32, #tpu.memory_space<vmem>>, vector<1x13xf32>,
    %176 = vector.extract_strided_slice %93 {offsets = [41, 0], sizes = [1, 13], strides = [1, 1]} : vector<80x13xf32> to vector<1x13xf32>
    %c0_117 = arith.constant 0 : index
    %c533 = arith.constant 533 : index
    %177 = vector.load %arg17[%c0_117, %c533] : memref<1x1040xf32, #tpu.memory_space<vmem>>, vector<1x13xf32>
    tpu.vector_store %arg17[%c0_117, %c533], %176 {strides = array<i32>} : memref<1x1040xf32, #tpu.memory_space<vmem>>, vector<1x13xf32>,
    %178 = vector.extract_strided_slice %93 {offsets = [42, 0], sizes = [1, 13], strides = [1, 1]} : vector<80x13xf32> to vector<1x13xf32>
    %c0_118 = arith.constant 0 : index
    %c546 = arith.constant 546 : index
    %179 = vector.load %arg17[%c0_118, %c546] : memref<1x1040xf32, #tpu.memory_space<vmem>>, vector<1x13xf32>
    tpu.vector_store %arg17[%c0_118, %c546], %178 {strides = array<i32>} : memref<1x1040xf32, #tpu.memory_space<vmem>>, vector<1x13xf32>,
    %180 = vector.extract_strided_slice %93 {offsets = [43, 0], sizes = [1, 13], strides = [1, 1]} : vector<80x13xf32> to vector<1x13xf32>
    %c0_119 = arith.constant 0 : index
    %c559 = arith.constant 559 : index
    %181 = vector.load %arg17[%c0_119, %c559] : memref<1x1040xf32, #tpu.memory_space<vmem>>, vector<1x13xf32>
    tpu.vector_store %arg17[%c0_119, %c559], %180 {strides = array<i32>} : memref<1x1040xf32, #tpu.memory_space<vmem>>, vector<1x13xf32>,
    %182 = vector.extract_strided_slice %93 {offsets = [44, 0], sizes = [1, 13], strides = [1, 1]} : vector<80x13xf32> to vector<1x13xf32>
    %c0_120 = arith.constant 0 : index
    %c572 = arith.constant 572 : index
    %183 = vector.load %arg17[%c0_120, %c572] : memref<1x1040xf32, #tpu.memory_space<vmem>>, vector<1x13xf32>
    tpu.vector_store %arg17[%c0_120, %c572], %182 {strides = array<i32>} : memref<1x1040xf32, #tpu.memory_space<vmem>>, vector<1x13xf32>,
    %184 = vector.extract_strided_slice %93 {offsets = [45, 0], sizes = [1, 13], strides = [1, 1]} : vector<80x13xf32> to vector<1x13xf32>
    %c0_121 = arith.constant 0 : index
    %c585 = arith.constant 585 : index
    %185 = vector.load %arg17[%c0_121, %c585] : memref<1x1040xf32, #tpu.memory_space<vmem>>, vector<1x13xf32>
    tpu.vector_store %arg17[%c0_121, %c585], %184 {strides = array<i32>} : memref<1x1040xf32, #tpu.memory_space<vmem>>, vector<1x13xf32>,
    %186 = vector.extract_strided_slice %93 {offsets = [46, 0], sizes = [1, 13], strides = [1, 1]} : vector<80x13xf32> to vector<1x13xf32>
    %c0_122 = arith.constant 0 : index
    %c598 = arith.constant 598 : index
    %187 = vector.load %arg17[%c0_122, %c598] : memref<1x1040xf32, #tpu.memory_space<vmem>>, vector<1x13xf32>
    tpu.vector_store %arg17[%c0_122, %c598], %186 {strides = array<i32>} : memref<1x1040xf32, #tpu.memory_space<vmem>>, vector<1x13xf32>,
    %188 = vector.extract_strided_slice %93 {offsets = [47, 0], sizes = [1, 13], strides = [1, 1]} : vector<80x13xf32> to vector<1x13xf32>
    %c0_123 = arith.constant 0 : index
    %c611 = arith.constant 611 : index
    %189 = vector.load %arg17[%c0_123, %c611] : memref<1x1040xf32, #tpu.memory_space<vmem>>, vector<1x13xf32>
    tpu.vector_store %arg17[%c0_123, %c611], %188 {strides = array<i32>} : memref<1x1040xf32, #tpu.memory_space<vmem>>, vector<1x13xf32>,
    %190 = vector.extract_strided_slice %93 {offsets = [48, 0], sizes = [1, 13], strides = [1, 1]} : vector<80x13xf32> to vector<1x13xf32>
    %c0_124 = arith.constant 0 : index
    %c624 = arith.constant 624 : index
    %191 = vector.load %arg17[%c0_124, %c624] : memref<1x1040xf32, #tpu.memory_space<vmem>>, vector<1x13xf32>
    tpu.vector_store %arg17[%c0_124, %c624], %190 {strides = array<i32>} : memref<1x1040xf32, #tpu.memory_space<vmem>>, vector<1x13xf32>,
    %192 = vector.extract_strided_slice %93 {offsets = [49, 0], sizes = [1, 13], strides = [1, 1]} : vector<80x13xf32> to vector<1x13xf32>
    %c0_125 = arith.constant 0 : index
    %c637 = arith.constant 637 : index
    %193 = vector.load %arg17[%c0_125, %c637] : memref<1x1040xf32, #tpu.memory_space<vmem>>, vector<1x13xf32>
    tpu.vector_store %arg17[%c0_125, %c637], %192 {strides = array<i32>} : memref<1x1040xf32, #tpu.memory_space<vmem>>, vector<1x13xf32>,
    %194 = vector.extract_strided_slice %93 {offsets = [50, 0], sizes = [1, 13], strides = [1, 1]} : vector<80x13xf32> to vector<1x13xf32>
    %c0_126 = arith.constant 0 : index
    %c650 = arith.constant 650 : index
    %195 = vector.load %arg17[%c0_126, %c650] : memref<1x1040xf32, #tpu.memory_space<vmem>>, vector<1x13xf32>
    tpu.vector_store %arg17[%c0_126, %c650], %194 {strides = array<i32>} : memref<1x1040xf32, #tpu.memory_space<vmem>>, vector<1x13xf32>,
    %196 = vector.extract_strided_slice %93 {offsets = [51, 0], sizes = [1, 13], strides = [1, 1]} : vector<80x13xf32> to vector<1x13xf32>
    %c0_127 = arith.constant 0 : index
    %c663 = arith.constant 663 : index
    %197 = vector.load %arg17[%c0_127, %c663] : memref<1x1040xf32, #tpu.memory_space<vmem>>, vector<1x13xf32>
    tpu.vector_store %arg17[%c0_127, %c663], %196 {strides = array<i32>} : memref<1x1040xf32, #tpu.memory_space<vmem>>, vector<1x13xf32>,
    %198 = vector.extract_strided_slice %93 {offsets = [52, 0], sizes = [1, 13], strides = [1, 1]} : vector<80x13xf32> to vector<1x13xf32>
    %c0_128 = arith.constant 0 : index
    %c676 = arith.constant 676 : index
    %199 = vector.load %arg17[%c0_128, %c676] : memref<1x1040xf32, #tpu.memory_space<vmem>>, vector<1x13xf32>
    tpu.vector_store %arg17[%c0_128, %c676], %198 {strides = array<i32>} : memref<1x1040xf32, #tpu.memory_space<vmem>>, vector<1x13xf32>,
    %200 = vector.extract_strided_slice %93 {offsets = [53, 0], sizes = [1, 13], strides = [1, 1]} : vector<80x13xf32> to vector<1x13xf32>
    %c0_129 = arith.constant 0 : index
    %c689 = arith.constant 689 : index
    %201 = vector.load %arg17[%c0_129, %c689] : memref<1x1040xf32, #tpu.memory_space<vmem>>, vector<1x13xf32>
    tpu.vector_store %arg17[%c0_129, %c689], %200 {strides = array<i32>} : memref<1x1040xf32, #tpu.memory_space<vmem>>, vector<1x13xf32>,
    %202 = vector.extract_strided_slice %93 {offsets = [54, 0], sizes = [1, 13], strides = [1, 1]} : vector<80x13xf32> to vector<1x13xf32>
    %c0_130 = arith.constant 0 : index
    %c702 = arith.constant 702 : index
    %203 = vector.load %arg17[%c0_130, %c702] : memref<1x1040xf32, #tpu.memory_space<vmem>>, vector<1x13xf32>
    tpu.vector_store %arg17[%c0_130, %c702], %202 {strides = array<i32>} : memref<1x1040xf32, #tpu.memory_space<vmem>>, vector<1x13xf32>,
    %204 = vector.extract_strided_slice %93 {offsets = [55, 0], sizes = [1, 13], strides = [1, 1]} : vector<80x13xf32> to vector<1x13xf32>
    %c0_131 = arith.constant 0 : index
    %c715 = arith.constant 715 : index
    %205 = vector.load %arg17[%c0_131, %c715] : memref<1x1040xf32, #tpu.memory_space<vmem>>, vector<1x13xf32>
    tpu.vector_store %arg17[%c0_131, %c715], %204 {strides = array<i32>} : memref<1x1040xf32, #tpu.memory_space<vmem>>, vector<1x13xf32>,
    %206 = vector.extract_strided_slice %93 {offsets = [56, 0], sizes = [1, 13], strides = [1, 1]} : vector<80x13xf32> to vector<1x13xf32>
    %c0_132 = arith.constant 0 : index
    %c728 = arith.constant 728 : index
    %207 = vector.load %arg17[%c0_132, %c728] : memref<1x1040xf32, #tpu.memory_space<vmem>>, vector<1x13xf32>
    tpu.vector_store %arg17[%c0_132, %c728], %206 {strides = array<i32>} : memref<1x1040xf32, #tpu.memory_space<vmem>>, vector<1x13xf32>,
    %208 = vector.extract_strided_slice %93 {offsets = [57, 0], sizes = [1, 13], strides = [1, 1]} : vector<80x13xf32> to vector<1x13xf32>
    %c0_133 = arith.constant 0 : index
    %c741 = arith.constant 741 : index
    %209 = vector.load %arg17[%c0_133, %c741] : memref<1x1040xf32, #tpu.memory_space<vmem>>, vector<1x13xf32>
    tpu.vector_store %arg17[%c0_133, %c741], %208 {strides = array<i32>} : memref<1x1040xf32, #tpu.memory_space<vmem>>, vector<1x13xf32>,
    %210 = vector.extract_strided_slice %93 {offsets = [58, 0], sizes = [1, 13], strides = [1, 1]} : vector<80x13xf32> to vector<1x13xf32>
    %c0_134 = arith.constant 0 : index
    %c754 = arith.constant 754 : index
    %211 = vector.load %arg17[%c0_134, %c754] : memref<1x1040xf32, #tpu.memory_space<vmem>>, vector<1x13xf32>
    tpu.vector_store %arg17[%c0_134, %c754], %210 {strides = array<i32>} : memref<1x1040xf32, #tpu.memory_space<vmem>>, vector<1x13xf32>,
    %212 = vector.extract_strided_slice %93 {offsets = [59, 0], sizes = [1, 13], strides = [1, 1]} : vector<80x13xf32> to vector<1x13xf32>
    %c0_135 = arith.constant 0 : index
    %c767 = arith.constant 767 : index
    %213 = vector.load %arg17[%c0_135, %c767] : memref<1x1040xf32, #tpu.memory_space<vmem>>, vector<1x13xf32>
    tpu.vector_store %arg17[%c0_135, %c767], %212 {strides = array<i32>} : memref<1x1040xf32, #tpu.memory_space<vmem>>, vector<1x13xf32>,
    %214 = vector.extract_strided_slice %93 {offsets = [60, 0], sizes = [1, 13], strides = [1, 1]} : vector<80x13xf32> to vector<1x13xf32>
    %c0_136 = arith.constant 0 : index
    %c780 = arith.constant 780 : index
    %215 = vector.load %arg17[%c0_136, %c780] : memref<1x1040xf32, #tpu.memory_space<vmem>>, vector<1x13xf32>
    tpu.vector_store %arg17[%c0_136, %c780], %214 {strides = array<i32>} : memref<1x1040xf32, #tpu.memory_space<vmem>>, vector<1x13xf32>,
    %216 = vector.extract_strided_slice %93 {offsets = [61, 0], sizes = [1, 13], strides = [1, 1]} : vector<80x13xf32> to vector<1x13xf32>
    %c0_137 = arith.constant 0 : index
    %c793 = arith.constant 793 : index
    %217 = vector.load %arg17[%c0_137, %c793] : memref<1x1040xf32, #tpu.memory_space<vmem>>, vector<1x13xf32>
    tpu.vector_store %arg17[%c0_137, %c793], %216 {strides = array<i32>} : memref<1x1040xf32, #tpu.memory_space<vmem>>, vector<1x13xf32>,
    %218 = vector.extract_strided_slice %93 {offsets = [62, 0], sizes = [1, 13], strides = [1, 1]} : vector<80x13xf32> to vector<1x13xf32>
    %c0_138 = arith.constant 0 : index
    %c806 = arith.constant 806 : index
    %219 = vector.load %arg17[%c0_138, %c806] : memref<1x1040xf32, #tpu.memory_space<vmem>>, vector<1x13xf32>
    tpu.vector_store %arg17[%c0_138, %c806], %218 {strides = array<i32>} : memref<1x1040xf32, #tpu.memory_space<vmem>>, vector<1x13xf32>,
    %220 = vector.extract_strided_slice %93 {offsets = [63, 0], sizes = [1, 13], strides = [1, 1]} : vector<80x13xf32> to vector<1x13xf32>
    %c0_139 = arith.constant 0 : index
    %c819 = arith.constant 819 : index
    %221 = vector.load %arg17[%c0_139, %c819] : memref<1x1040xf32, #tpu.memory_space<vmem>>, vector<1x13xf32>
    tpu.vector_store %arg17[%c0_139, %c819], %220 {strides = array<i32>} : memref<1x1040xf32, #tpu.memory_space<vmem>>, vector<1x13xf32>,
    %222 = vector.extract_strided_slice %93 {offsets = [64, 0], sizes = [1, 13], strides = [1, 1]} : vector<80x13xf32> to vector<1x13xf32>
    %c0_140 = arith.constant 0 : index
    %c832 = arith.constant 832 : index
    %223 = vector.load %arg17[%c0_140, %c832] : memref<1x1040xf32, #tpu.memory_space<vmem>>, vector<1x13xf32>
    tpu.vector_store %arg17[%c0_140, %c832], %222 {strides = array<i32>} : memref<1x1040xf32, #tpu.memory_space<vmem>>, vector<1x13xf32>,
    %224 = vector.extract_strided_slice %93 {offsets = [65, 0], sizes = [1, 13], strides = [1, 1]} : vector<80x13xf32> to vector<1x13xf32>
    %c0_141 = arith.constant 0 : index
    %c845 = arith.constant 845 : index
    %225 = vector.load %arg17[%c0_141, %c845] : memref<1x1040xf32, #tpu.memory_space<vmem>>, vector<1x13xf32>
    tpu.vector_store %arg17[%c0_141, %c845], %224 {strides = array<i32>} : memref<1x1040xf32, #tpu.memory_space<vmem>>, vector<1x13xf32>,
    %226 = vector.extract_strided_slice %93 {offsets = [66, 0], sizes = [1, 13], strides = [1, 1]} : vector<80x13xf32> to vector<1x13xf32>
    %c0_142 = arith.constant 0 : index
    %c858 = arith.constant 858 : index
    %227 = vector.load %arg17[%c0_142, %c858] : memref<1x1040xf32, #tpu.memory_space<vmem>>, vector<1x13xf32>
    tpu.vector_store %arg17[%c0_142, %c858], %226 {strides = array<i32>} : memref<1x1040xf32, #tpu.memory_space<vmem>>, vector<1x13xf32>,
    %228 = vector.extract_strided_slice %93 {offsets = [67, 0], sizes = [1, 13], strides = [1, 1]} : vector<80x13xf32> to vector<1x13xf32>
    %c0_143 = arith.constant 0 : index
    %c871 = arith.constant 871 : index
    %229 = vector.load %arg17[%c0_143, %c871] : memref<1x1040xf32, #tpu.memory_space<vmem>>, vector<1x13xf32>
    tpu.vector_store %arg17[%c0_143, %c871], %228 {strides = array<i32>} : memref<1x1040xf32, #tpu.memory_space<vmem>>, vector<1x13xf32>,
    %230 = vector.extract_strided_slice %93 {offsets = [68, 0], sizes = [1, 13], strides = [1, 1]} : vector<80x13xf32> to vector<1x13xf32>
    %c0_144 = arith.constant 0 : index
    %c884 = arith.constant 884 : index
    %231 = vector.load %arg17[%c0_144, %c884] : memref<1x1040xf32, #tpu.memory_space<vmem>>, vector<1x13xf32>
    tpu.vector_store %arg17[%c0_144, %c884], %230 {strides = array<i32>} : memref<1x1040xf32, #tpu.memory_space<vmem>>, vector<1x13xf32>,
    %232 = vector.extract_strided_slice %93 {offsets = [69, 0], sizes = [1, 13], strides = [1, 1]} : vector<80x13xf32> to vector<1x13xf32>
    %c0_145 = arith.constant 0 : index
    %c897 = arith.constant 897 : index
    %233 = vector.load %arg17[%c0_145, %c897] : memref<1x1040xf32, #tpu.memory_space<vmem>>, vector<1x13xf32>
    tpu.vector_store %arg17[%c0_145, %c897], %232 {strides = array<i32>} : memref<1x1040xf32, #tpu.memory_space<vmem>>, vector<1x13xf32>,
    %234 = vector.extract_strided_slice %93 {offsets = [70, 0], sizes = [1, 13], strides = [1, 1]} : vector<80x13xf32> to vector<1x13xf32>
    %c0_146 = arith.constant 0 : index
    %c910 = arith.constant 910 : index
    %235 = vector.load %arg17[%c0_146, %c910] : memref<1x1040xf32, #tpu.memory_space<vmem>>, vector<1x13xf32>
    tpu.vector_store %arg17[%c0_146, %c910], %234 {strides = array<i32>} : memref<1x1040xf32, #tpu.memory_space<vmem>>, vector<1x13xf32>,
    %236 = vector.extract_strided_slice %93 {offsets = [71, 0], sizes = [1, 13], strides = [1, 1]} : vector<80x13xf32> to vector<1x13xf32>
    %c0_147 = arith.constant 0 : index
    %c923 = arith.constant 923 : index
    %237 = vector.load %arg17[%c0_147, %c923] : memref<1x1040xf32, #tpu.memory_space<vmem>>, vector<1x13xf32>
    tpu.vector_store %arg17[%c0_147, %c923], %236 {strides = array<i32>} : memref<1x1040xf32, #tpu.memory_space<vmem>>, vector<1x13xf32>,
    %238 = vector.extract_strided_slice %93 {offsets = [72, 0], sizes = [1, 13], strides = [1, 1]} : vector<80x13xf32> to vector<1x13xf32>
    %c0_148 = arith.constant 0 : index
    %c936 = arith.constant 936 : index
    %239 = vector.load %arg17[%c0_148, %c936] : memref<1x1040xf32, #tpu.memory_space<vmem>>, vector<1x13xf32>
    tpu.vector_store %arg17[%c0_148, %c936], %238 {strides = array<i32>} : memref<1x1040xf32, #tpu.memory_space<vmem>>, vector<1x13xf32>,
    %240 = vector.extract_strided_slice %93 {offsets = [73, 0], sizes = [1, 13], strides = [1, 1]} : vector<80x13xf32> to vector<1x13xf32>
    %c0_149 = arith.constant 0 : index
    %c949 = arith.constant 949 : index
    %241 = vector.load %arg17[%c0_149, %c949] : memref<1x1040xf32, #tpu.memory_space<vmem>>, vector<1x13xf32>
    tpu.vector_store %arg17[%c0_149, %c949], %240 {strides = array<i32>} : memref<1x1040xf32, #tpu.memory_space<vmem>>, vector<1x13xf32>,
    %242 = vector.extract_strided_slice %93 {offsets = [74, 0], sizes = [1, 13], strides = [1, 1]} : vector<80x13xf32> to vector<1x13xf32>
    %c0_150 = arith.constant 0 : index
    %c962 = arith.constant 962 : index
    %243 = vector.load %arg17[%c0_150, %c962] : memref<1x1040xf32, #tpu.memory_space<vmem>>, vector<1x13xf32>
    tpu.vector_store %arg17[%c0_150, %c962], %242 {strides = array<i32>} : memref<1x1040xf32, #tpu.memory_space<vmem>>, vector<1x13xf32>,
    %244 = vector.extract_strided_slice %93 {offsets = [75, 0], sizes = [1, 13], strides = [1, 1]} : vector<80x13xf32> to vector<1x13xf32>
    %c0_151 = arith.constant 0 : index
    %c975 = arith.constant 975 : index
    %245 = vector.load %arg17[%c0_151, %c975] : memref<1x1040xf32, #tpu.memory_space<vmem>>, vector<1x13xf32>
    tpu.vector_store %arg17[%c0_151, %c975], %244 {strides = array<i32>} : memref<1x1040xf32, #tpu.memory_space<vmem>>, vector<1x13xf32>,
    %246 = vector.extract_strided_slice %93 {offsets = [76, 0], sizes = [1, 13], strides = [1, 1]} : vector<80x13xf32> to vector<1x13xf32>
    %c0_152 = arith.constant 0 : index
    %c988 = arith.constant 988 : index
    %247 = vector.load %arg17[%c0_152, %c988] : memref<1x1040xf32, #tpu.memory_space<vmem>>, vector<1x13xf32>
    tpu.vector_store %arg17[%c0_152, %c988], %246 {strides = array<i32>} : memref<1x1040xf32, #tpu.memory_space<vmem>>, vector<1x13xf32>,
    %248 = vector.extract_strided_slice %93 {offsets = [77, 0], sizes = [1, 13], strides = [1, 1]} : vector<80x13xf32> to vector<1x13xf32>
    %c0_153 = arith.constant 0 : index
    %c1001 = arith.constant 1001 : index
    %249 = vector.load %arg17[%c0_153, %c1001] : memref<1x1040xf32, #tpu.memory_space<vmem>>, vector<1x13xf32>
    tpu.vector_store %arg17[%c0_153, %c1001], %248 {strides = array<i32>} : memref<1x1040xf32, #tpu.memory_space<vmem>>, vector<1x13xf32>,
    %250 = vector.extract_strided_slice %93 {offsets = [78, 0], sizes = [1, 13], strides = [1, 1]} : vector<80x13xf32> to vector<1x13xf32>
    %c0_154 = arith.constant 0 : index
    %c1014 = arith.constant 1014 : index
    %251 = vector.load %arg17[%c0_154, %c1014] : memref<1x1040xf32, #tpu.memory_space<vmem>>, vector<1x13xf32>
    tpu.vector_store %arg17[%c0_154, %c1014], %250 {strides = array<i32>} : memref<1x1040xf32, #tpu.memory_space<vmem>>, vector<1x13xf32>,
    %252 = vector.extract_strided_slice %93 {offsets = [79, 0], sizes = [1, 13], strides = [1, 1]} : vector<80x13xf32> to vector<1x13xf32>
    %c0_155 = arith.constant 0 : index
    %c1027 = arith.constant 1027 : index
    %253 = vector.load %arg17[%c0_155, %c1027] : memref<1x1040xf32, #tpu.memory_space<vmem>>, vector<1x13xf32>
    tpu.vector_store %arg17[%c0_155, %c1027], %252 {strides = array<i32>} : memref<1x1040xf32, #tpu.memory_space<vmem>>, vector<1x13xf32>,
    %c0_156 = arith.constant 0 : index
    %c0_157 = arith.constant 0 : index
    %254 = vector.load %arg17[%c0_156, %c0_157] : memref<1x1040xf32, #tpu.memory_space<vmem>>, vector<1x1040xf32>
    %255 = arith.truncf %254 : vector<1x1040xf32> to vector<1x1040xbf16>
    %c0_158 = arith.constant 0 : index
    %c0_159 = arith.constant 0 : index
    %256 = vector.load %arg10[%c0_158, %c0_159] : memref<1040x128xbf16, #tpu.memory_space<vmem>>, vector<1040x128xbf16>
    %cst_160 = arith.constant dense<0.000000e+00> : vector<1x128xf32>
    %257 = tpu.matmul %255, %256, %cst_160 {dimension_numbers = #tpu.dot_dimension_numbers<[1], [0], [0], [1], [0, 0, 1, 1], [], []>} : vector<1x1040xbf16>, vector<1040x128xbf16>, vector<1x128xf32> -> vector<1x128xf32>
    %c0_161 = arith.constant 0 : index
    %c0_162 = arith.constant 0 : index
    %258 = vector.load %arg11[%c0_161, %c0_162] : memref<1x128xf32, #tpu.memory_space<vmem>>, vector<1x128xf32>
    %259 = arith.addf %257, %258 : vector<1x128xf32>
    %cst_163 = arith.constant 0.000000e+00 : f32
    %260 = vector.broadcast %cst_163 : f32 to vector<1x128xf32>
    %261 = arith.maximumf %259, %260 : vector<1x128xf32>
    %262 = arith.truncf %261 : vector<1x128xf32> to vector<1x128xbf16>
    %c0_164 = arith.constant 0 : index
    %c0_165 = arith.constant 0 : index
    %263 = vector.load %arg12[%c0_164, %c0_165] : memref<128x128xbf16, #tpu.memory_space<vmem>>, vector<128x128xbf16>
    %cst_166 = arith.constant dense<0.000000e+00> : vector<1x128xf32>
    %264 = tpu.matmul %262, %263, %cst_166 {dimension_numbers = #tpu.dot_dimension_numbers<[1], [0], [0], [1], [0, 0, 1, 1], [], []>} : vector<1x128xbf16>, vector<128x128xbf16>, vector<1x128xf32> -> vector<1x128xf32>
    %c0_167 = arith.constant 0 : index
    %c0_168 = arith.constant 0 : index
    %265 = vector.load %arg13[%c0_167, %c0_168] : memref<1x128xf32, #tpu.memory_space<vmem>>, vector<1x128xf32>
    %266 = arith.addf %264, %265 : vector<1x128xf32>
    %cst_169 = arith.constant 0.000000e+00 : f32
    %267 = vector.broadcast %cst_169 : f32 to vector<1x128xf32>
    %268 = arith.maximumf %266, %267 : vector<1x128xf32>
    %269 = arith.truncf %268 : vector<1x128xf32> to vector<1x128xbf16>
    %c0_170 = arith.constant 0 : index
    %c0_171 = arith.constant 0 : index
    %270 = vector.load %arg14[%c0_170, %c0_171] : memref<128x128xbf16, #tpu.memory_space<vmem>>, vector<128x128xbf16>
    %cst_172 = arith.constant dense<0.000000e+00> : vector<1x128xf32>
    %271 = tpu.matmul %269, %270, %cst_172 {dimension_numbers = #tpu.dot_dimension_numbers<[1], [0], [0], [1], [0, 0, 1, 1], [], []>} : vector<1x128xbf16>, vector<128x128xbf16>, vector<1x128xf32> -> vector<1x128xf32>
    %c0_173 = arith.constant 0 : index
    %c0_174 = arith.constant 0 : index
    %272 = vector.load %arg15[%c0_173, %c0_174] : memref<1x128xf32, #tpu.memory_space<vmem>>, vector<1x128xf32>
    %273 = arith.addf %271, %272 : vector<1x128xf32>
    %c0_175 = arith.constant 0 : index
    %c0_176 = arith.constant 0 : index
    %c0_177 = arith.constant 0 : index
    %274 = vector.load %arg16[%c0_175, %c0_176, %c0_177] : memref<1x1x128xf32, #tpu.memory_space<vmem>>, vector<1x1x128xf32>
    %275 = vector.shape_cast %274 : vector<1x1x128xf32> to vector<1x128xf32>
    %276 = vector.shape_cast %273 : vector<1x128xf32> to vector<1x1x128xf32>
    tpu.vector_store %arg16[%c0_175, %c0_176, %c0_177], %276 {strides = array<i32>} : memref<1x1x128xf32, #tpu.memory_space<vmem>>, vector<1x1x128xf32>,
    return
  }
  func.func @transform_0(%arg0: i32) -> (i32, i32, i32) {
    %c0_i32 = arith.constant 0 : i32
    %c0_i32_0 = arith.constant 0 : i32
    %c0_i32_1 = arith.constant 0 : i32
    return %arg0, %c0_i32, %c0_i32_0 : i32, i32, i32
  }
  func.func @transform_1(%arg0: i32) -> (i32, i32, i32) {
    %c0_i32 = arith.constant 0 : i32
    %c0_i32_0 = arith.constant 0 : i32
    %c0_i32_1 = arith.constant 0 : i32
    %c0_i32_2 = arith.constant 0 : i32
    return %c0_i32, %c0_i32_0, %c0_i32_1 : i32, i32, i32
  }
  func.func @transform_2(%arg0: i32) -> (i32, i32) {
    %c0_i32 = arith.constant 0 : i32
    %c0_i32_0 = arith.constant 0 : i32
    %c0_i32_1 = arith.constant 0 : i32
    return %c0_i32, %c0_i32_0 : i32, i32
  }
  func.func @transform_3(%arg0: i32) -> (i32, i32, i32) {
    %c0_i32 = arith.constant 0 : i32
    %c0_i32_0 = arith.constant 0 : i32
    %c0_i32_1 = arith.constant 0 : i32
    %c0_i32_2 = arith.constant 0 : i32
    return %c0_i32, %c0_i32_0, %c0_i32_1 : i32, i32, i32
  }
  func.func @transform_4(%arg0: i32) -> (i32, i32, i32) {
    %c0_i32 = arith.constant 0 : i32
    %c0_i32_0 = arith.constant 0 : i32
    %c0_i32_1 = arith.constant 0 : i32
    %c0_i32_2 = arith.constant 0 : i32
    return %c0_i32, %c0_i32_0, %c0_i32_1 : i32, i32, i32
  }
  func.func @transform_5(%arg0: i32) -> (i32, i32, i32) {
    %c0_i32 = arith.constant 0 : i32
    %c0_i32_0 = arith.constant 0 : i32
    %c0_i32_1 = arith.constant 0 : i32
    %c0_i32_2 = arith.constant 0 : i32
    return %c0_i32, %c0_i32_0, %c0_i32_1 : i32, i32, i32
  }
  func.func @transform_6(%arg0: i32) -> (i32, i32) {
    %c0_i32 = arith.constant 0 : i32
    %c0_i32_0 = arith.constant 0 : i32
    %c0_i32_1 = arith.constant 0 : i32
    return %c0_i32, %c0_i32_0 : i32, i32
  }
  func.func @transform_7(%arg0: i32) -> (i32, i32, i32) {
    %c0_i32 = arith.constant 0 : i32
    %c0_i32_0 = arith.constant 0 : i32
    %c0_i32_1 = arith.constant 0 : i32
    %c0_i32_2 = arith.constant 0 : i32
    return %c0_i32, %c0_i32_0, %c0_i32_1 : i32, i32, i32
  }
  func.func @transform_8(%arg0: i32) -> (i32, i32, i32) {
    %c0_i32 = arith.constant 0 : i32
    %c0_i32_0 = arith.constant 0 : i32
    %c0_i32_1 = arith.constant 0 : i32
    %c0_i32_2 = arith.constant 0 : i32
    return %c0_i32, %c0_i32_0, %c0_i32_1 : i32, i32, i32
  }
  func.func @transform_9(%arg0: i32) -> (i32, i32) {
    %c0_i32 = arith.constant 0 : i32
    %c0_i32_0 = arith.constant 0 : i32
    %c0_i32_1 = arith.constant 0 : i32
    return %c0_i32, %c0_i32_0 : i32, i32
  }
  func.func @transform_10(%arg0: i32) -> (i32, i32) {
    %c0_i32 = arith.constant 0 : i32
    %c0_i32_0 = arith.constant 0 : i32
    %c0_i32_1 = arith.constant 0 : i32
    return %c0_i32, %c0_i32_0 : i32, i32
  }
  func.func @transform_11(%arg0: i32) -> (i32, i32) {
    %c0_i32 = arith.constant 0 : i32
    %c0_i32_0 = arith.constant 0 : i32
    %c0_i32_1 = arith.constant 0 : i32
    return %c0_i32, %c0_i32_0 : i32, i32
  }
  func.func @transform_12(%arg0: i32) -> (i32, i32) {
    %c0_i32 = arith.constant 0 : i32
    %c0_i32_0 = arith.constant 0 : i32
    %c0_i32_1 = arith.constant 0 : i32
    return %c0_i32, %c0_i32_0 : i32, i32
  }
  func.func @transform_13(%arg0: i32) -> (i32, i32) {
    %c0_i32 = arith.constant 0 : i32
    %c0_i32_0 = arith.constant 0 : i32
    %c0_i32_1 = arith.constant 0 : i32
    return %c0_i32, %c0_i32_0 : i32, i32
  }
  func.func @transform_14(%arg0: i32) -> (i32, i32) {
    %c0_i32 = arith.constant 0 : i32
    %c0_i32_0 = arith.constant 0 : i32
    %c0_i32_1 = arith.constant 0 : i32
    return %c0_i32, %c0_i32_0 : i32, i32
  }
  func.func @transform_15(%arg0: i32) -> (i32, i32, i32) {
    %c0_i32 = arith.constant 0 : i32
    %c0_i32_0 = arith.constant 0 : i32
    %c0_i32_1 = arith.constant 0 : i32
    return %arg0, %c0_i32, %c0_i32_0 : i32, i32, i32
  }
}

</mosaic_0001>

<llo_original>
// kernel: net_forward.1
$region0: #{net_forward.1}
  #allocation0 [shape = 'u32[]', space=smem, size = 0x4, offset = 0x4, fixed_abs, tag = 'smem constant byte address 0x4 - core index']
  #allocation1 [shape = 'u32[72,128]{1,0:T(1,128)}', space=vmem, size = 0x9000, scoped, tag = 'internal scratch']
  #allocation2 [shape = 'f32[1,1040]{1,0:T(1,128)}', space=vmem, size = 0x1200, scoped, tag = 'scratch operand']
  %s0 = inlined_call_operand.hbm [shape: f32[2,96,64], index: 0, kind: input, shape index: {}]
  %s1 = inlined_call_operand.vmem [shape: bf16[5,168,96], index: 1, kind: input, shape index: {}]
  %s2 = inlined_call_operand.vmem [shape: f32[168,1], index: 2, kind: input, shape index: {}]
  %s3 = inlined_call_operand.vmem [shape: bf16[2,84,168], index: 3, kind: input, shape index: {}]
  %s4 = inlined_call_operand.vmem [shape: bf16[2,60,30], index: 4, kind: input, shape index: {}]
  %s5 = inlined_call_operand.hbm [shape: bf16[5,160,84], index: 5, kind: input, shape index: {}]
  %s6 = inlined_call_operand.vmem [shape: f32[160,1], index: 6, kind: input, shape index: {}]
  %s7 = inlined_call_operand.vmem [shape: bf16[2,80,160], index: 7, kind: input, shape index: {}]
  %s8 = inlined_call_operand.vmem [shape: bf16[2,26,13], index: 8, kind: input, shape index: {}]
  %s9 = inlined_call_operand.hbm [shape: bf16[1040,128], index: 9, kind: input, shape index: {}]
  %s10 = inlined_call_operand.vmem [shape: f32[1,128], index: 10, kind: input, shape index: {}]
  %s11 = inlined_call_operand.hbm [shape: bf16[128,128], index: 11, kind: input, shape index: {}]
  %s12 = inlined_call_operand.vmem [shape: f32[1,128], index: 12, kind: input, shape index: {}]
  %s13 = inlined_call_operand.hbm [shape: bf16[128,128], index: 13, kind: input, shape index: {}]
  %s14 = inlined_call_operand.vmem [shape: f32[1,128], index: 14, kind: input, shape index: {}]
  %s15 = inlined_call_operand.hbm [shape: f32[2,1,128], index: 15, kind: output, shape index: {}]
  %s16 = sld [smem:[#allocation0]]
  $region113: #{net_forward.1} parent=0
    _
  %s18 = ssub.s32 1, %s16
  %s19 = scalar_select 0, %s18, %s16
  $region1: #{net_forward.1} parent=0
    #allocation3 [shape = 'u8[98304]{0}', space=vmem, size = 0x18000, scoped, tag = 'input window, operand 0']
    #allocation4 [shape = 's32[2]{0}', space=sflag, size = 0x8, scoped, tag = 'scoped memory for net_forward.1']
    #allocation5 [shape = 's32[2]{0}', space=sflag, size = 0x8, scoped, tag = 'scoped memory for net_forward.1']
    #allocation6 [shape = 'u8[204800]{0}', space=vmem, size = 0x32000, scoped, tag = 'input window, operand 5, single buffered']
    #allocation7 [shape = 's32[1]{0}', space=sflag, size = 0x4, scoped, tag = 'scoped memory for net_forward.1']
    #allocation8 [shape = 'u8[266240]{0}', space=vmem, size = 0x41000, scoped, tag = 'input window, operand 9, single buffered']
    #allocation9 [shape = 'u8[32768]{0}', space=vmem, size = 0x8000, scoped, tag = 'input window, operand 11, single buffered']
    #allocation10 [shape = 's32[1]{0}', space=sflag, size = 0x4, scoped, tag = 'scoped memory for net_forward.1']
    #allocation11 [shape = 'u8[32768]{0}', space=vmem, size = 0x8000, scoped, tag = 'input window, operand 13, single buffered']
    #allocation12 [shape = 'u8[1024]{0}', space=vmem, size = 0x400, scoped, tag = 'output window, operand 0']
    %20 = vsyncpa [#allocation4], 0
    %s21 = scalar_lea.sflag [#allocation4], 1
    %22 = vsyncpa %s21, 0
    %23 = vsyncpa [#allocation7], 0
    %24 = vsyncpa [#allocation10], 0
    %25 = vsyncpa [#allocation5], 0
    %s26 = scalar_lea.sflag [#allocation5], 1
    %27 = vsyncpa %s26, 0
    loop: start=0, step=1, limit=4
    $region2: #{net_forward.1} parent=1 // loop_pre_header
      _
    $region3: #{net_forward.1} parent=1 // loop_header
      %s29 = sphi 0, %s33
      %p30 = scmp.ge.s32.totalorder %s29, 4
      %s39 = sphi 0, %s41
      %s42 = sphi 0, %s39
      %s43 = sphi 0, %s42
      %s59 = sphi 0, %s43
      %s63 = sphi 0, %s63
      %s65 = sphi 0, %s63
      %s66 = sphi 0, %s65
      %s80 = sphi 0, %s66
      %s84 = sphi 0, %s84
      %s86 = sphi 0, %s84
      %s87 = sphi 0, %s86
      %s101 = sphi 0, %s87
      %s105 = sphi 0, %s105
      %s107 = sphi 0, %s105
      %s108 = sphi 0, %s107
      %s122 = sphi 0, %s108
      %s126 = sphi 0, %s126
      %s128 = sphi 0, %s126
      %s129 = sphi 0, %s128
      %s143 = sphi 0, %s129
      %s147 = sphi 0, %s147
      %s149 = sphi 0, %s147
      %s150 = sphi 0, %s149
      %s164 = sphi 0, %s150
      %s168 = sphi 0, %s168
      %s170 = sphi 0, %s168
      %s171 = sphi 0, %s170
      %s185 = sphi 0, %s171
      %s189 = sphi 0, %s189
      %s191 = sphi 0, %s189
      %s192 = sphi 0, %s191
      %s206 = sphi 0, %s192
      %s210 = sphi 0, %s210
      %s212 = sphi 0, %s210
      %s213 = sphi 0, %s212
      %s227 = sphi 0, %s213
      %s231 = sphi 0, %s231
      %s233 = sphi 0, %s231
      %s234 = sphi 0, %s233
      %s248 = sphi 0, %s234
      %s252 = sphi 0, %s252
      %s254 = sphi 0, %s252
      %s255 = sphi 0, %s254
      %s269 = sphi 0, %s255
      %s273 = sphi 0, %s273
      %s275 = sphi 0, %s273
      %s276 = sphi 0, %s275
      %s290 = sphi 0, %s276
      %s294 = sphi 0, %s294
      %s296 = sphi 0, %s294
      %s297 = sphi 0, %s296
      %s311 = sphi 0, %s297
      %s315 = sphi 0, %s315
      %s317 = sphi 0, %s315
      %s318 = sphi 0, %s317
      %s332 = sphi 0, %s318
      %s336 = sphi 0, %s336
      %s338 = sphi 0, %s336
      %s339 = sphi 0, %s338
      %s353 = sphi 0, %s339
      %s359 = sphi 0, %s361
      %s362 = sphi 0, %s359
      %s363 = sphi 0, %s362
      %s379 = sphi 0, %s363
    $region4: #{net_forward.1} parent=1 // loop_header_branch
      %32 = sbr.rel (%p30) target = $region8
    $region5: #{net_forward.1} parent=1 // loop_body
      %s34 = ssub.s32 %s29, 1
      %s35 = ssub.s32 %s29, 2
      %s36 = sadd.s32 %s29, 1
      %s37 = ssub.s32 %s29, %s36
      %p38 = scmp.eq.s32.totalorder %s37, 0
      %s40 = sadd.s32 %s39, 1
      %s41 = scalar_select %p38, %s39, %s40
      %p44 = pneg %p38
      %p45 = scmp.eq.s32.totalorder %s29, 1
      %p46 = por %p44, %p45
      %p47 = scmp.ne.s32.totalorder %s39, %s42
      %p48 = scmp.eq.s32.totalorder %s29, 0
      %p49 = por %p47, %p48
      %p50 = scmp.ne.s32.totalorder %s39, %s42
      %p51 = scmp.eq.s32.totalorder %s34, 1
      %p52 = por %p50, %p51
      %p53 = scmp.ne.s32.totalorder %s42, %s43
      %p54 = scmp.eq.s32.totalorder %s34, 0
      %p55 = por %p53, %p54
      %p56 = scmp.ne.s32.totalorder %s42, %s43
      %p57 = scmp.eq.s32.totalorder %s35, 1
      %p58 = por %p56, %p57
      %p60 = scmp.ne.s32.totalorder %s43, %s59
      %p61 = scmp.eq.s32.totalorder %s35, 0
      %p62 = por %p60, %p61
      %s64 = sadd.s32 %s63, 1
      %p67 = scmp.eq.s32.totalorder %s29, 1
      %p68 = scmp.ne.s32.totalorder %s63, %s65
      %p69 = scmp.eq.s32.totalorder %s29, 0
      %p70 = por %p68, %p69
      %p71 = scmp.ne.s32.totalorder %s63, %s65
      %p72 = scmp.eq.s32.totalorder %s34, 1
      %p73 = por %p71, %p72
      %p74 = scmp.ne.s32.totalorder %s65, %s66
      %p75 = scmp.eq.s32.totalorder %s34, 0
      %p76 = por %p74, %p75
      %p77 = scmp.ne.s32.totalorder %s65, %s66
      %p78 = scmp.eq.s32.totalorder %s35, 1
      %p79 = por %p77, %p78
      %p81 = scmp.ne.s32.totalorder %s66, %s80
      %p82 = scmp.eq.s32.totalorder %s35, 0
      %p83 = por %p81, %p82
      %s85 = sadd.s32 %s84, 1
      %p88 = scmp.eq.s32.totalorder %s29, 1
      %p89 = scmp.ne.s32.totalorder %s84, %s86
      %p90 = scmp.eq.s32.totalorder %s29, 0
      %p91 = por %p89, %p90
      %p92 = scmp.ne.s32.totalorder %s84, %s86
      %p93 = scmp.eq.s32.totalorder %s34, 1
      %p94 = por %p92, %p93
      %p95 = scmp.ne.s32.totalorder %s86, %s87
      %p96 = scmp.eq.s32.totalorder %s34, 0
      %p97 = por %p95, %p96
      %p98 = scmp.ne.s32.totalorder %s86, %s87
      %p99 = scmp.eq.s32.totalorder %s35, 1
      %p100 = por %p98, %p99
      %p102 = scmp.ne.s32.totalorder %s87, %s101
      %p103 = scmp.eq.s32.totalorder %s35, 0
      %p104 = por %p102, %p103
      %s106 = sadd.s32 %s105, 1
      %p109 = scmp.eq.s32.totalorder %s29, 1
      %p110 = scmp.ne.s32.totalorder %s105, %s107
      %p111 = scmp.eq.s32.totalorder %s29, 0
      %p112 = por %p110, %p111
      %p113 = scmp.ne.s32.totalorder %s105, %s107
      %p114 = scmp.eq.s32.totalorder %s34, 1
      %p115 = por %p113, %p114
      %p116 = scmp.ne.s32.totalorder %s107, %s108
      %p117 = scmp.eq.s32.totalorder %s34, 0
      %p118 = por %p116, %p117
      %p119 = scmp.ne.s32.totalorder %s107, %s108
      %p120 = scmp.eq.s32.totalorder %s35, 1
      %p121 = por %p119, %p120
      %p123 = scmp.ne.s32.totalorder %s108, %s122
      %p124 = scmp.eq.s32.totalorder %s35, 0
      %p125 = por %p123, %p124
      %s127 = sadd.s32 %s126, 1
      %p130 = scmp.eq.s32.totalorder %s29, 1
      %p131 = scmp.ne.s32.totalorder %s126, %s128
      %p132 = scmp.eq.s32.totalorder %s29, 0
      %p133 = por %p131, %p132
      %p134 = scmp.ne.s32.totalorder %s126, %s128
      %p135 = scmp.eq.s32.totalorder %s34, 1
      %p136 = por %p134, %p135
      %p137 = scmp.ne.s32.totalorder %s128, %s129
      %p138 = scmp.eq.s32.totalorder %s34, 0
      %p139 = por %p137, %p138
      %p140 = scmp.ne.s32.totalorder %s128, %s129
      %p141 = scmp.eq.s32.totalorder %s35, 1
      %p142 = por %p140, %p141
      %p144 = scmp.ne.s32.totalorder %s129, %s143
      %p145 = scmp.eq.s32.totalorder %s35, 0
      %p146 = por %p144, %p145
      %s148 = sadd.s32 %s147, 1
      %p151 = scmp.eq.s32.totalorder %s29, 1
      %p152 = scmp.ne.s32.totalorder %s147, %s149
      %p153 = scmp.eq.s32.totalorder %s29, 0
      %p154 = por %p152, %p153
      %p155 = scmp.ne.s32.totalorder %s147, %s149
      %p156 = scmp.eq.s32.totalorder %s34, 1
      %p157 = por %p155, %p156
      %p158 = scmp.ne.s32.totalorder %s149, %s150
      %p159 = scmp.eq.s32.totalorder %s34, 0
      %p160 = por %p158, %p159
      %p161 = scmp.ne.s32.totalorder %s149, %s150
      %p162 = scmp.eq.s32.totalorder %s35, 1
      %p163 = por %p161, %p162
      %p165 = scmp.ne.s32.totalorder %s150, %s164
      %p166 = scmp.eq.s32.totalorder %s35, 0
      %p167 = por %p165, %p166
      %s169 = sadd.s32 %s168, 1
      %p172 = scmp.eq.s32.totalorder %s29, 1
      %p173 = scmp.ne.s32.totalorder %s168, %s170
      %p174 = scmp.eq.s32.totalorder %s29, 0
      %p175 = por %p173, %p174
      %p176 = scmp.ne.s32.totalorder %s168, %s170
      %p177 = scmp.eq.s32.totalorder %s34, 1
      %p178 = por %p176, %p177
      %p179 = scmp.ne.s32.totalorder %s170, %s171
      %p180 = scmp.eq.s32.totalorder %s34, 0
      %p181 = por %p179, %p180
      %p182 = scmp.ne.s32.totalorder %s170, %s171
      %p183 = scmp.eq.s32.totalorder %s35, 1
      %p184 = por %p182, %p183
      %p186 = scmp.ne.s32.totalorder %s171, %s185
      %p187 = scmp.eq.s32.totalorder %s35, 0
      %p188 = por %p186, %p187
      %s190 = sadd.s32 %s189, 1
      %p193 = scmp.eq.s32.totalorder %s29, 1
      %p194 = scmp.ne.s32.totalorder %s189, %s191
      %p195 = scmp.eq.s32.totalorder %s29, 0
      %p196 = por %p194, %p195
      %p197 = scmp.ne.s32.totalorder %s189, %s191
      %p198 = scmp.eq.s32.totalorder %s34, 1
      %p199 = por %p197, %p198
      %p200 = scmp.ne.s32.totalorder %s191, %s192
      %p201 = scmp.eq.s32.totalorder %s34, 0
      %p202 = por %p200, %p201
      %p203 = scmp.ne.s32.totalorder %s191, %s192
      %p204 = scmp.eq.s32.totalorder %s35, 1
      %p205 = por %p203, %p204
      %p207 = scmp.ne.s32.totalorder %s192, %s206
      %p208 = scmp.eq.s32.totalorder %s35, 0
      %p209 = por %p207, %p208
      %s211 = sadd.s32 %s210, 1
      %p214 = scmp.eq.s32.totalorder %s29, 1
      %p215 = scmp.ne.s32.totalorder %s210, %s212
      %p216 = scmp.eq.s32.totalorder %s29, 0
      %p217 = por %p215, %p216
      %p218 = scmp.ne.s32.totalorder %s210, %s212
      %p219 = scmp.eq.s32.totalorder %s34, 1
      %p220 = por %p218, %p219
      %p221 = scmp.ne.s32.totalorder %s212, %s213
      %p222 = scmp.eq.s32.totalorder %s34, 0
      %p223 = por %p221, %p222
      %p224 = scmp.ne.s32.totalorder %s212, %s213
      %p225 = scmp.eq.s32.totalorder %s35, 1
      %p226 = por %p224, %p225
      %p228 = scmp.ne.s32.totalorder %s213, %s227
      %p229 = scmp.eq.s32.totalorder %s35, 0
      %p230 = por %p228, %p229
      %s232 = sadd.s32 %s231, 1
      %p235 = scmp.eq.s32.totalorder %s29, 1
      %p236 = scmp.ne.s32.totalorder %s231, %s233
      %p237 = scmp.eq.s32.totalorder %s29, 0
      %p238 = por %p236, %p237
      %p239 = scmp.ne.s32.totalorder %s231, %s233
      %p240 = scmp.eq.s32.totalorder %s34, 1
      %p241 = por %p239, %p240
      %p242 = scmp.ne.s32.totalorder %s233, %s234
      %p243 = scmp.eq.s32.totalorder %s34, 0
      %p244 = por %p242, %p243
      %p245 = scmp.ne.s32.totalorder %s233, %s234
      %p246 = scmp.eq.s32.totalorder %s35, 1
      %p247 = por %p245, %p246
      %p249 = scmp.ne.s32.totalorder %s234, %s248
      %p250 = scmp.eq.s32.totalorder %s35, 0
      %p251 = por %p249, %p250
      %s253 = sadd.s32 %s252, 1
      %p256 = scmp.eq.s32.totalorder %s29, 1
      %p257 = scmp.ne.s32.totalorder %s252, %s254
      %p258 = scmp.eq.s32.totalorder %s29, 0
      %p259 = por %p257, %p258
      %p260 = scmp.ne.s32.totalorder %s252, %s254
      %p261 = scmp.eq.s32.totalorder %s34, 1
      %p262 = por %p260, %p261
      %p263 = scmp.ne.s32.totalorder %s254, %s255
      %p264 = scmp.eq.s32.totalorder %s34, 0
      %p265 = por %p263, %p264
      %p266 = scmp.ne.s32.totalorder %s254, %s255
      %p267 = scmp.eq.s32.totalorder %s35, 1
      %p268 = por %p266, %p267
      %p270 = scmp.ne.s32.totalorder %s255, %s269
      %p271 = scmp.eq.s32.totalorder %s35, 0
      %p272 = por %p270, %p271
      %s274 = sadd.s32 %s273, 1
      %p277 = scmp.eq.s32.totalorder %s29, 1
      %p278 = scmp.ne.s32.totalorder %s273, %s275
      %p279 = scmp.eq.s32.totalorder %s29, 0
      %p280 = por %p278, %p279
      %p281 = scmp.ne.s32.totalorder %s273, %s275
      %p282 = scmp.eq.s32.totalorder %s34, 1
      %p283 = por %p281, %p282
      %p284 = scmp.ne.s32.totalorder %s275, %s276
      %p285 = scmp.eq.s32.totalorder %s34, 0
      %p286 = por %p284, %p285
      %p287 = scmp.ne.s32.totalorder %s275, %s276
      %p288 = scmp.eq.s32.totalorder %s35, 1
      %p289 = por %p287, %p288
      %p291 = scmp.ne.s32.totalorder %s276, %s290
      %p292 = scmp.eq.s32.totalorder %s35, 0
      %p293 = por %p291, %p292
      %s295 = sadd.s32 %s294, 1
      %p298 = scmp.eq.s32.totalorder %s29, 1
      %p299 = scmp.ne.s32.totalorder %s294, %s296
      %p300 = scmp.eq.s32.totalorder %s29, 0
      %p301 = por %p299, %p300
      %p302 = scmp.ne.s32.totalorder %s294, %s296
      %p303 = scmp.eq.s32.totalorder %s34, 1
      %p304 = por %p302, %p303
      %p305 = scmp.ne.s32.totalorder %s296, %s297
      %p306 = scmp.eq.s32.totalorder %s34, 0
      %p307 = por %p305, %p306
      %p308 = scmp.ne.s32.totalorder %s296, %s297
      %p309 = scmp.eq.s32.totalorder %s35, 1
      %p310 = por %p308, %p309
      %p312 = scmp.ne.s32.totalorder %s297, %s311
      %p313 = scmp.eq.s32.totalorder %s35, 0
      %p314 = por %p312, %p313
      %s316 = sadd.s32 %s315, 1
      %p319 = scmp.eq.s32.totalorder %s29, 1
      %p320 = scmp.ne.s32.totalorder %s315, %s317
      %p321 = scmp.eq.s32.totalorder %s29, 0
      %p322 = por %p320, %p321
      %p323 = scmp.ne.s32.totalorder %s315, %s317
      %p324 = scmp.eq.s32.totalorder %s34, 1
      %p325 = por %p323, %p324
      %p326 = scmp.ne.s32.totalorder %s317, %s318
      %p327 = scmp.eq.s32.totalorder %s34, 0
      %p328 = por %p326, %p327
      %p329 = scmp.ne.s32.totalorder %s317, %s318
      %p330 = scmp.eq.s32.totalorder %s35, 1
      %p331 = por %p329, %p330
      %p333 = scmp.ne.s32.totalorder %s318, %s332
      %p334 = scmp.eq.s32.totalorder %s35, 0
      %p335 = por %p333, %p334
      %s337 = sadd.s32 %s336, 1
      %p340 = scmp.eq.s32.totalorder %s29, 1
      %p341 = scmp.ne.s32.totalorder %s336, %s338
      %p342 = scmp.eq.s32.totalorder %s29, 0
      %p343 = por %p341, %p342
      %p344 = scmp.ne.s32.totalorder %s336, %s338
      %p345 = scmp.eq.s32.totalorder %s34, 1
      %p346 = por %p344, %p345
      %p347 = scmp.ne.s32.totalorder %s338, %s339
      %p348 = scmp.eq.s32.totalorder %s34, 0
      %p349 = por %p347, %p348
      %p350 = scmp.ne.s32.totalorder %s338, %s339
      %p351 = scmp.eq.s32.totalorder %s35, 1
      %p352 = por %p350, %p351
      %p354 = scmp.ne.s32.totalorder %s339, %s353
      %p355 = scmp.eq.s32.totalorder %s35, 0
      %p356 = por %p354, %p355
      %s357 = ssub.s32 %s29, %s36
      %p358 = scmp.eq.s32.totalorder %s357, 0
      %s360 = sadd.s32 %s359, 1
      %s361 = scalar_select %p358, %s359, %s360
      %p364 = pneg %p358
      %p365 = scmp.eq.s32.totalorder %s29, 1
      %p366 = por %p364, %p365
      %p367 = scmp.ne.s32.totalorder %s359, %s362
      %p368 = scmp.eq.s32.totalorder %s29, 0
      %p369 = por %p367, %p368
      %p370 = scmp.ne.s32.totalorder %s359, %s362
      %p371 = scmp.eq.s32.totalorder %s34, 1
      %p372 = por %p370, %p371
      %p373 = scmp.ne.s32.totalorder %s362, %s363
      %p374 = scmp.eq.s32.totalorder %s34, 0
      %p375 = por %p373, %p374
      %p376 = scmp.ne.s32.totalorder %s362, %s363
      %p377 = scmp.eq.s32.totalorder %s35, 1
      %p378 = por %p376, %p377
      %p380 = scmp.ne.s32.totalorder %s363, %s379
      %p381 = scmp.eq.s32.totalorder %s35, 0
      %p382 = por %p380, %p381
      %p383 = scmp.le.s32.totalorder 1, %s29
      %p384 = scmp.lt.s32.totalorder %s29, 3
      %p385 = pnand %p383, %p384
      %p386 = pneg %p385
      // Predicated region
      $region9: #{net_forward.1} parent=5 // pred_check
        _
      $region10: #{net_forward.1} parent=5 // pred_check_branch
        %388 = sbr.rel (%p385) target = $region12
      $region11: #{net_forward.1} parent=5 // pred_region
        %s389 = ssub.s32 %s29, 1
        // Predicated region
        $region13: #{net_forward.1} parent=11 // pred_check
          %p390 = pneg %p76
        $region14: #{net_forward.1} parent=11 // pred_check_branch
          %392 = sbr.rel (%p390) target = $region16
        $region15: #{net_forward.1} parent=11 // pred_region
          _
        $region16: #{net_forward.1} parent=11 // pred_fallthru
          _
        // Predicated region
        $region17: #{net_forward.1} parent=11 // pred_check
          %p393 = pneg %p97
        $region18: #{net_forward.1} parent=11 // pred_check_branch
          %395 = sbr.rel (%p393) target = $region20
        $region19: #{net_forward.1} parent=11 // pred_region
          _
        $region20: #{net_forward.1} parent=11 // pred_fallthru
          _
        // Predicated region
        $region21: #{net_forward.1} parent=11 // pred_check
          %p396 = pneg %p118
        $region22: #{net_forward.1} parent=11 // pred_check_branch
          %398 = sbr.rel (%p396) target = $region24
        $region23: #{net_forward.1} parent=11 // pred_region
          _
        $region24: #{net_forward.1} parent=11 // pred_fallthru
          _
        // Predicated region
        $region25: #{net_forward.1} parent=11 // pred_check
          %p399 = pneg %p139
        $region26: #{net_forward.1} parent=11 // pred_check_branch
          %401 = sbr.rel (%p399) target = $region28
        $region27: #{net_forward.1} parent=11 // pred_region
          _
        $region28: #{net_forward.1} parent=11 // pred_fallthru
          _
        // Predicated region
        $region29: #{net_forward.1} parent=11 // pred_check
          %p402 = pneg %p160
        $region30: #{net_forward.1} parent=11 // pred_check_branch
          %404 = sbr.rel (%p402) target = $region32
        $region31: #{net_forward.1} parent=11 // pred_region
          %406 = vsyncadd [#allocation7], 0
          %s407 = sshll.u32 %s5, 4
          %s408 = int_to_ptr.hbm [resolvable:$true] %s407
          %s409 = sshll.u32 [#allocation6], 4
          %s410 = int_to_ptr.vmem [resolvable:$true] %s409
          %415 = dma.hbm_to_vmem [thread:$0]  %s408, 6400, %s410, [#allocation7], 64, 64, 4
        $region32: #{net_forward.1} parent=11 // pred_fallthru
          _
        // Predicated region
        $region33: #{net_forward.1} parent=11 // pred_check
          %p416 = pneg %p181
        $region34: #{net_forward.1} parent=11 // pred_check_branch
          %418 = sbr.rel (%p416) target = $region36
        $region35: #{net_forward.1} parent=11 // pred_region
          _
        $region36: #{net_forward.1} parent=11 // pred_fallthru
          _
        // Predicated region
        $region37: #{net_forward.1} parent=11 // pred_check
          %p419 = pneg %p202
        $region38: #{net_forward.1} parent=11 // pred_check_branch
          %421 = sbr.rel (%p419) target = $region40
        $region39: #{net_forward.1} parent=11 // pred_region
          _
        $region40: #{net_forward.1} parent=11 // pred_fallthru
          _
        // Predicated region
        $region41: #{net_forward.1} parent=11 // pred_check
          %p422 = pneg %p223
        $region42: #{net_forward.1} parent=11 // pred_check_branch
          %424 = sbr.rel (%p422) target = $region44
        $region43: #{net_forward.1} parent=11 // pred_region
          _
        $region44: #{net_forward.1} parent=11 // pred_fallthru
          _
        // Predicated region
        $region45: #{net_forward.1} parent=11 // pred_check
          %p425 = pneg %p244
        $region46: #{net_forward.1} parent=11 // pred_check_branch
          %427 = sbr.rel (%p425) target = $region48
        $region47: #{net_forward.1} parent=11 // pred_region
          %429 = vsyncadd [#allocation7], 0
          %s430 = sshll.u32 %s9, 4
          %s431 = int_to_ptr.hbm [resolvable:$true] %s430
          %s432 = sshll.u32 [#allocation8], 4
          %s433 = int_to_ptr.vmem [resolvable:$true] %s432
          %438 = dma.hbm_to_vmem [thread:$0]  %s431, 8320, %s433, [#allocation7], 64, 64, 4
        $region48: #{net_forward.1} parent=11 // pred_fallthru
          _
        // Predicated region
        $region49: #{net_forward.1} parent=11 // pred_check
          %p439 = pneg %p265
        $region50: #{net_forward.1} parent=11 // pred_check_branch
          %441 = sbr.rel (%p439) target = $region52
        $region51: #{net_forward.1} parent=11 // pred_region
          _
        $region52: #{net_forward.1} parent=11 // pred_fallthru
          _
        // Predicated region
        $region53: #{net_forward.1} parent=11 // pred_check
          %p442 = pneg %p286
        $region54: #{net_forward.1} parent=11 // pred_check_branch
          %444 = sbr.rel (%p442) target = $region56
        $region55: #{net_forward.1} parent=11 // pred_region
          %446 = vsyncadd [#allocation10], 0
          %s447 = sshll.u32 %s11, 4
          %s448 = int_to_ptr.hbm [resolvable:$true] %s447
          %s449 = sshll.u32 [#allocation9], 4
          %s450 = int_to_ptr.vmem [resolvable:$true] %s449
          %455 = dma.hbm_to_vmem [thread:$0]  %s448, 1024, %s450, [#allocation10], 64, 64, 4
        $region56: #{net_forward.1} parent=11 // pred_fallthru
          _
        // Predicated region
        $region57: #{net_forward.1} parent=11 // pred_check
          %p456 = pneg %p307
        $region58: #{net_forward.1} parent=11 // pred_check_branch
          %458 = sbr.rel (%p456) target = $region60
        $region59: #{net_forward.1} parent=11 // pred_region
          _
        $region60: #{net_forward.1} parent=11 // pred_fallthru
          _
        // Predicated region
        $region61: #{net_forward.1} parent=11 // pred_check
          %p459 = pneg %p328
        $region62: #{net_forward.1} parent=11 // pred_check_branch
          %461 = sbr.rel (%p459) target = $region64
        $region63: #{net_forward.1} parent=11 // pred_region
          %463 = vsyncadd [#allocation10], 0
          %s464 = sshll.u32 %s13, 4
          %s465 = int_to_ptr.hbm [resolvable:$true] %s464
          %s466 = sshll.u32 [#allocation11], 4
          %s467 = int_to_ptr.vmem [resolvable:$true] %s466
          %472 = dma.hbm_to_vmem [thread:$0]  %s465, 1024, %s467, [#allocation10], 64, 64, 4
        $region64: #{net_forward.1} parent=11 // pred_fallthru
          _
        // Predicated region
        $region65: #{net_forward.1} parent=11 // pred_check
          %p473 = pneg %p349
        $region66: #{net_forward.1} parent=11 // pred_check_branch
          %475 = sbr.rel (%p473) target = $region68
        $region67: #{net_forward.1} parent=11 // pred_region
          _
        $region68: #{net_forward.1} parent=11 // pred_fallthru
          _
      $region12: #{net_forward.1} parent=5 // pred_fallthru
        _
      %p476 = scmp.lt.s32.totalorder %s29, 2
      // Predicated region
      $region69: #{net_forward.1} parent=5 // pred_check
        %p477 = pneg %p476
      $region70: #{net_forward.1} parent=5 // pred_check_branch
        %479 = sbr.rel (%p477) target = $region72
      $region71: #{net_forward.1} parent=5 // pred_region
        // Predicated region
        $region73: #{net_forward.1} parent=71 // pred_check
          %p480 = pneg %p49
        $region74: #{net_forward.1} parent=71 // pred_check_branch
          %482 = sbr.rel (%p480) target = $region76
        $region75: #{net_forward.1} parent=71 // pred_region
          %s483 = sand.u32 %s39, 1
          %s484 = scalar_lea.sflag [#allocation4], %s483
          %s485 = sand.u32 %s39, 1
          %s486 = smul.addr %s485, 96
          %s487 = scalar_lea.vmem [#allocation3], %s486
          %489 = vsyncadd %s484, 0
          %s490 = smul.addr %s29, 12
          %s491 = smul.addr %s490, 8
          %s492 = scalar_lea.hbm %s0, %s491
          %s493 = sshll.u32 %s492, 4
          %s494 = int_to_ptr.hbm [resolvable:$true] %s493
          %s495 = sshll.u32 %s487, 4
          %s496 = int_to_ptr.vmem [resolvable:$true] %s495
          %501 = dma.hbm_to_vmem [thread:$0]  %s494, 1536, %s496, %s484, 128, 128, 8
        $region76: #{net_forward.1} parent=71 // pred_fallthru
          _
      $region72: #{net_forward.1} parent=5 // pred_fallthru
        _
      %p502 = scmp.le.s32.totalorder 1, %s29
      %p503 = scmp.lt.s32.totalorder %s29, 3
      %p504 = pnand %p502, %p503
      %p505 = pneg %p504
      // Predicated region
      $region77: #{net_forward.1} parent=5 // pred_check
        _
      $region78: #{net_forward.1} parent=5 // pred_check_branch
        %507 = sbr.rel (%p504) target = $region80
      $region79: #{net_forward.1} parent=5 // pred_region
        %s508 = ssub.s32 %s29, 1
        %s509 = sand.u32 %s42, 1
        %s510 = scalar_lea.sflag [#allocation4], %s509
        %s511 = sand.u32 %s42, 1
        %s512 = smul.addr %s511, 96
        %s513 = scalar_lea.vmem [#allocation3], %s512
        // Predicated region
        $region81: #{net_forward.1} parent=79 // pred_check
          %p514 = pneg %p55
        $region82: #{net_forward.1} parent=79 // pred_check_branch
          %516 = sbr.rel (%p514) target = $region84
        $region83: #{net_forward.1} parent=79 // pred_region
          %518 = dma.done %s510, 1536
        $region84: #{net_forward.1} parent=79 // pred_fallthru
          _
        // Predicated region
        $region85: #{net_forward.1} parent=79 // pred_check
          %p519 = pneg %p160
        $region86: #{net_forward.1} parent=79 // pred_check_branch
          %521 = sbr.rel (%p519) target = $region88
        $region87: #{net_forward.1} parent=79 // pred_region
          %523 = dma.done [#allocation7], 6400
        $region88: #{net_forward.1} parent=79 // pred_fallthru
          _
        // Predicated region
        $region89: #{net_forward.1} parent=79 // pred_check
          %p524 = pneg %p244
        $region90: #{net_forward.1} parent=79 // pred_check_branch
          %526 = sbr.rel (%p524) target = $region92
        $region91: #{net_forward.1} parent=79 // pred_region
          %528 = dma.done [#allocation7], 8320
        $region92: #{net_forward.1} parent=79 // pred_fallthru
          _
        // Predicated region
        $region93: #{net_forward.1} parent=79 // pred_check
          %p529 = pneg %p286
        $region94: #{net_forward.1} parent=79 // pred_check_branch
          %531 = sbr.rel (%p529) target = $region96
        $region95: #{net_forward.1} parent=79 // pred_region
          %533 = dma.done [#allocation10], 1024
        $region96: #{net_forward.1} parent=79 // pred_fallthru
          _
        // Predicated region
        $region97: #{net_forward.1} parent=79 // pred_check
          %p534 = pneg %p328
        $region98: #{net_forward.1} parent=79 // pred_check_branch
          %536 = sbr.rel (%p534) target = $region100
        $region99: #{net_forward.1} parent=79 // pred_region
          %538 = dma.done [#allocation10], 1024
        $region100: #{net_forward.1} parent=79 // pred_fallthru
          _
        %s539 = sand.u32 %s42, 1
        %s540 = scalar_lea.sflag [#allocation4], %s539
        %s541 = sand.u32 %s42, 1
        %s542 = smul.addr %s541, 96
        %s543 = scalar_lea.vmem [#allocation3], %s542
        %p544 = pneg %p55
        %p545 = pneg %p52
        %p546 = pneg %p76
        %p547 = pneg %p73
        %p548 = pneg %p97
        %p549 = pneg %p94
        %p550 = pneg %p118
        %p551 = pneg %p115
        %p552 = pneg %p139
        %p553 = pneg %p136
        %p554 = pneg %p160
        %p555 = pneg %p157
        %p556 = pneg %p181
        %p557 = pneg %p178
        %p558 = pneg %p202
        %p559 = pneg %p199
        %p560 = pneg %p223
        %p561 = pneg %p220
        %p562 = pneg %p244
        %p563 = pneg %p241
        %p564 = pneg %p265
        %p565 = pneg %p262
        %p566 = pneg %p286
        %p567 = pneg %p283
        %p568 = pneg %p307
        %p569 = pneg %p304
        %p570 = pneg %p328
        %p571 = pneg %p325
        %p572 = pneg %p349
        %p573 = pneg %p346
        %p574 = pneg %p375
        %p575 = pneg %p372
        %s576 = sand.u32 %s362, 1
        %s577 = scalar_lea.sflag [#allocation5], %s576
        %s578 = sand.u32 %s362, 1
        %s579 = scalar_lea.vmem [#allocation12], %s578
        %v581 = vld [vmem:[%s513] sm:$0xff]
        %v582 = vld [vmem:[%s513 + $0x8] sm:$0xff]
        %v583 = vld [vmem:[%s513 + $0x10] sm:$0xff]
        %v584 = vld [vmem:[%s513 + $0x18] sm:$0xff]
        %v585 = vld [vmem:[%s513 + $0x20] sm:$0xff]
        %v586 = vld [vmem:[%s513 + $0x28] sm:$0xff]
        %v587 = vld [vmem:[%s513 + $0x30] sm:$0xff]
        %v588 = vld [vmem:[%s513 + $0x38] sm:$0xff]
        %v589 = vld [vmem:[%s513 + $0x40] sm:$0xff]
        %v590 = vld [vmem:[%s513 + $0x48] sm:$0xff]
        %v591 = vld [vmem:[%s513 + $0x50] sm:$0xff]
        %v592 = vld [vmem:[%s513 + $0x58] sm:$0xff]
        %v593 = vpack.c.bf16 %v581, %v581
        %v594 = vpack.c.bf16 %v582, %v582
        %v595 = vpack.c.bf16 %v583, %v583
        %v596 = vpack.c.bf16 %v584, %v584
        %v597 = vpack.c.bf16 %v585, %v585
        %v598 = vpack.c.bf16 %v586, %v586
        %v599 = vpack.c.bf16 %v587, %v587
        %v600 = vpack.c.bf16 %v588, %v588
        %v601 = vpack.c.bf16 %v589, %v589
        %v602 = vpack.c.bf16 %v590, %v590
        %v603 = vpack.c.bf16 %v591, %v591
        %v604 = vpack.c.bf16 %v592, %v592
        %v605 = vld [vmem:[%s1] sm:$0xf]
        %v606 = vld [vmem:[%s1 + $0x4] sm:$0xf]
        %v607 = vld [vmem:[%s1 + $0x8] sm:$0xf]
        %v608 = vld [vmem:[%s1 + $0xc] sm:$0xf]
        %v609 = vld [vmem:[%s1 + $0x10] sm:$0xf]
        %v610 = vld [vmem:[%s1 + $0x14] sm:$0xf]
        %v611 = vld [vmem:[%s1 + $0x18] sm:$0xf]
        %v612 = vld [vmem:[%s1 + $0x1c] sm:$0xf]
        %v613 = vld [vmem:[%s1 + $0x20] sm:$0xf]
        %v614 = vld [vmem:[%s1 + $0x24] sm:$0xf]
        %v615 = vld [vmem:[%s1 + $0x28] sm:$0xf]
        %v616 = vld [vmem:[%s1 + $0x2c] sm:$0xf]
        %v617 = vld [vmem:[%s1 + $0x30] sm:$0xf]
        %v618 = vld [vmem:[%s1 + $0x34] sm:$0xf]
        %v619 = vld [vmem:[%s1 + $0x38] sm:$0xf]
        %v620 = vld [vmem:[%s1 + $0x3c] sm:$0xf]
        %v621 = vld [vmem:[%s1 + $0x40] sm:$0xf]
        %v622 = vld [vmem:[%s1 + $0x44] sm:$0xf]
        %v623 = vld [vmem:[%s1 + $0x48] sm:$0xf]
        %v624 = vld [vmem:[%s1 + $0x4c] sm:$0xf]
        %v625 = vld [vmem:[%s1 + $0x50] sm:$0xf]
        %s626 = scalar_lea.vmem %s1, 84
        %v627 = vld [vmem:[%s626] sm:$0xf]
        %v628 = vld [vmem:[%s626 + $0x4] sm:$0xf]
        %v629 = vld [vmem:[%s626 + $0x8] sm:$0xf]
        %v630 = vld [vmem:[%s626 + $0xc] sm:$0xf]
        %v631 = vld [vmem:[%s626 + $0x10] sm:$0xf]
        %v632 = vld [vmem:[%s626 + $0x14] sm:$0xf]
        %v633 = vld [vmem:[%s626 + $0x18] sm:$0xf]
        %v634 = vld [vmem:[%s626 + $0x1c] sm:$0xf]
        %v635 = vld [vmem:[%s626 + $0x20] sm:$0xf]
        %v636 = vld [vmem:[%s626 + $0x24] sm:$0xf]
        %v637 = vld [vmem:[%s626 + $0x28] sm:$0xf]
        %v638 = vld [vmem:[%s626 + $0x2c] sm:$0xf]
        %v639 = vld [vmem:[%s626 + $0x30] sm:$0xf]
        %v640 = vld [vmem:[%s626 + $0x34] sm:$0xf]
        %v641 = vld [vmem:[%s626 + $0x38] sm:$0xf]
        %v642 = vld [vmem:[%s626 + $0x3c] sm:$0xf]
        %v643 = vld [vmem:[%s626 + $0x40] sm:$0xf]
        %v644 = vld [vmem:[%s626 + $0x44] sm:$0xf]
        %v645 = vld [vmem:[%s626 + $0x48] sm:$0xf]
        %v646 = vld [vmem:[%s626 + $0x4c] sm:$0xf]
        %v647 = vld [vmem:[%s626 + $0x50] sm:$0xf]
        %v669 = vunpack.c.l.b16 %v627
        %v670 = vunpack.c.l.b16 %v628
        %v671 = vunpack.c.l.b16 %v629
        %v672 = vunpack.c.l.b16 %v630
        %v673 = vunpack.c.l.b16 %v631
        %v674 = vunpack.c.l.b16 %v632
        %v675 = vunpack.c.l.b16 %v633
        %v676 = vunpack.c.l.b16 %v634
        %v677 = vunpack.c.l.b16 %v635
        %v678 = vunpack.c.l.b16 %v636
        %v679 = vunpack.c.l.b16 %v637
        %v680 = vunpack.c.l.b16 %v638
        %v681 = vunpack.c.l.b16 %v639
        %v682 = vunpack.c.l.b16 %v640
        %v683 = vunpack.c.l.b16 %v641
        %v684 = vunpack.c.l.b16 %v642
        %v685 = vunpack.c.l.b16 %v643
        %v686 = vunpack.c.l.b16 %v644
        %v687 = vunpack.c.l.b16 %v645
        %v688 = vunpack.c.l.b16 %v646
        %v689 = vunpack.c.l.b16 %v647
        %v690 = vpack.c.b16 %v670, %v669
        %v691 = vpack.c.b16 %v672, %v671
        %v692 = vpack.c.b16 %v674, %v673
        %v693 = vpack.c.b16 %v676, %v675
        %v694 = vpack.c.b16 %v678, %v677
        %v695 = vpack.c.b16 %v680, %v679
        %v696 = vpack.c.b16 %v682, %v681
        %v697 = vpack.c.b16 %v684, %v683
        %v698 = vpack.c.b16 %v686, %v685
        %v699 = vpack.c.b16 %v688, %v687
        %v700 = vpack.c.b16 %v689, %v689
        %v713 = vunpack.c.l.b16 %v593
        %v714 = vunpack.c.l.b16 %v594
        %v715 = vunpack.c.l.b16 %v595
        %v716 = vunpack.c.l.b16 %v596
        %v717 = vunpack.c.l.b16 %v597
        %v718 = vunpack.c.l.b16 %v598
        %v719 = vunpack.c.l.b16 %v599
        %v720 = vunpack.c.l.b16 %v600
        %v721 = vunpack.c.l.b16 %v601
        %v722 = vunpack.c.l.b16 %v602
        %v723 = vunpack.c.l.b16 %v603
        %v724 = vunpack.c.l.b16 %v604
        %v725 = vpack.c.b16 %v714, %v713
        %v726 = vpack.c.b16 %v716, %v715
        %v727 = vpack.c.b16 %v718, %v717
        %v728 = vpack.c.b16 %v720, %v719
        %v729 = vpack.c.b16 %v722, %v721
        %v730 = vpack.c.b16 %v724, %v723
        %731 = vrot.lane.b32.xlu0 %v725, 127
        %v732 = vpop.permute.xlu0 %731
        %733 = vrot.lane.b32.xlu0 %v726, 127
        %v734 = vpop.permute.xlu0 %733
        %735 = vrot.lane.b32.xlu0 %v727, 127
        %v736 = vpop.permute.xlu0 %735
        %737 = vrot.lane.b32.xlu0 %v728, 127
        %v738 = vpop.permute.xlu0 %737
        %739 = vrot.lane.b32.xlu0 %v729, 127
        %v740 = vpop.permute.xlu0 %739
        %741 = vrot.lane.b32.xlu0 %v730, 127
        %v742 = vpop.permute.xlu0 %741
        %vm749 = vcmask 785408
        %v751 = vsel %vm749, %v690, 0
        %v754 = vsel %vm749, %v691, 0
        %v757 = vsel %vm749, %v692, 0
        %v760 = vsel %vm749, %v693, 0
        %v763 = vsel %vm749, %v694, 0
        %v766 = vsel %vm749, %v695, 0
        %v769 = vsel %vm749, %v696, 0
        %v772 = vsel %vm749, %v697, 0
        %v775 = vsel %vm749, %v698, 0
        %v778 = vsel %vm749, %v699, 0
        %v781 = vsel %vm749, %v700, 0
        %783 = vmatpush.bf16.msra.mxu0 0
        %784 = vmatpush.bf16.msra.mxu0 0
        %785 = vmatpush.bf16.msra.mxu0 %v742
        %786 = vmatpush.bf16.msra.mxu0 %v740
        %787 = vmatpush.bf16.msra.mxu0 %v738
        %788 = vmatpush.bf16.msra.mxu0 %v736
        %789 = vmatpush.bf16.msra.mxu0 %v734
        %790 = vmatpush.bf16.msra.mxu0 %v732
        %791 = vmatmul.bf16.gmra.mxu0 %v751
        %v792 = vpop.f32.mrf.mxu0
        %v793 = vadd.f32 0.0, %v792
        %v794 = vpop.f32.mrf.mxu0
        %v795 = vadd.f32 0.0, %v794
        %796 = vmatmul.bf16.gmra.mxu0 %v754
        %v797 = vpop.f32.mrf.mxu0
        %v798 = vadd.f32 0.0, %v797
        %v799 = vpop.f32.mrf.mxu0
        %v800 = vadd.f32 0.0, %v799
        %801 = vmatmul.bf16.gmra.mxu0 %v757
        %v802 = vpop.f32.mrf.mxu0
        %v803 = vadd.f32 0.0, %v802
        %v804 = vpop.f32.mrf.mxu0
        %v805 = vadd.f32 0.0, %v804
        %806 = vmatmul.bf16.gmra.mxu0 %v760
        %v807 = vpop.f32.mrf.mxu0
        %v808 = vadd.f32 0.0, %v807
        %v809 = vpop.f32.mrf.mxu0
        %v810 = vadd.f32 0.0, %v809
        %811 = vmatmul.bf16.gmra.mxu0 %v763
        %v812 = vpop.f32.mrf.mxu0
        %v813 = vadd.f32 0.0, %v812
        %v814 = vpop.f32.mrf.mxu0
        %v815 = vadd.f32 0.0, %v814
        %816 = vmatmul.bf16.gmra.mxu0 %v766
        %v817 = vpop.f32.mrf.mxu0
        %v818 = vadd.f32 0.0, %v817
        %v819 = vpop.f32.mrf.mxu0
        %v820 = vadd.f32 0.0, %v819
        %821 = vmatmul.bf16.gmra.mxu0 %v769
        %v822 = vpop.f32.mrf.mxu0
        %v823 = vadd.f32 0.0, %v822
        %v824 = vpop.f32.mrf.mxu0
        %v825 = vadd.f32 0.0, %v824
        %826 = vmatmul.bf16.gmra.mxu0 %v772
        %v827 = vpop.f32.mrf.mxu0
        %v828 = vadd.f32 0.0, %v827
        %v829 = vpop.f32.mrf.mxu0
        %v830 = vadd.f32 0.0, %v829
        %831 = vmatmul.bf16.gmra.mxu0 %v775
        %v832 = vpop.f32.mrf.mxu0
        %v833 = vadd.f32 0.0, %v832
        %v834 = vpop.f32.mrf.mxu0
        %v835 = vadd.f32 0.0, %v834
        %836 = vmatmul.bf16.gmra.mxu0 %v778
        %v837 = vpop.f32.mrf.mxu0
        %v838 = vadd.f32 0.0, %v837
        %v839 = vpop.f32.mrf.mxu0
        %v840 = vadd.f32 0.0, %v839
        %841 = vmatmul.bf16.gmra.mxu0 %v781
        %v842 = vpop.f32.mrf.mxu0
        %v843 = vadd.f32 0.0, %v842
        %v844 = vpop.f32.mrf.mxu0
        %845 = vdwg.mxu0
        %v867 = vunpack.c.l.b16 %v605
        %v868 = vunpack.c.l.b16 %v606
        %v869 = vunpack.c.l.b16 %v607
        %v870 = vunpack.c.l.b16 %v608
        %v871 = vunpack.c.l.b16 %v609
        %v872 = vunpack.c.l.b16 %v610
        %v873 = vunpack.c.l.b16 %v611
        %v874 = vunpack.c.l.b16 %v612
        %v875 = vunpack.c.l.b16 %v613
        %v876 = vunpack.c.l.b16 %v614
        %v877 = vunpack.c.l.b16 %v615
        %v878 = vunpack.c.l.b16 %v616
        %v879 = vunpack.c.l.b16 %v617
        %v880 = vunpack.c.l.b16 %v618
        %v881 = vunpack.c.l.b16 %v619
        %v882 = vunpack.c.l.b16 %v620
        %v883 = vunpack.c.l.b16 %v621
        %v884 = vunpack.c.l.b16 %v622
        %v885 = vunpack.c.l.b16 %v623
        %v886 = vunpack.c.l.b16 %v624
        %v887 = vunpack.c.l.b16 %v625
        %v888 = vpack.c.b16 %v868, %v867
        %v889 = vpack.c.b16 %v870, %v869
        %v890 = vpack.c.b16 %v872, %v871
        %v891 = vpack.c.b16 %v874, %v873
        %v892 = vpack.c.b16 %v876, %v875
        %v893 = vpack.c.b16 %v878, %v877
        %v894 = vpack.c.b16 %v880, %v879
        %v895 = vpack.c.b16 %v882, %v881
        %v896 = vpack.c.b16 %v884, %v883
        %v897 = vpack.c.b16 %v886, %v885
        %v898 = vpack.c.b16 %v887, %v887
        %v906 = vsel %vm749, %v888, 0
        %v909 = vsel %vm749, %v889, 0
        %v912 = vsel %vm749, %v890, 0
        %v915 = vsel %vm749, %v891, 0
        %v918 = vsel %vm749, %v892, 0
        %v921 = vsel %vm749, %v893, 0
        %v924 = vsel %vm749, %v894, 0
        %v927 = vsel %vm749, %v895, 0
        %v930 = vsel %vm749, %v896, 0
        %v933 = vsel %vm749, %v897, 0
        %v936 = vsel %vm749, %v898, 0
        %938 = vmatpush.bf16.msra.mxu0 0
        %939 = vmatpush.bf16.msra.mxu0 0
        %940 = vmatpush.bf16.msra.mxu0 %v730
        %941 = vmatpush.bf16.msra.mxu0 %v729
        %942 = vmatpush.bf16.msra.mxu0 %v728
        %943 = vmatpush.bf16.msra.mxu0 %v727
        %944 = vmatpush.bf16.msra.mxu0 %v726
        %945 = vmatpush.bf16.msra.mxu0 %v725
        %946 = vmatmul.bf16.gmra.mxu0 %v906
        %v947 = vpop.f32.mrf.mxu0
        %v948 = vadd.f32 %v793, %v947
        %v949 = vpop.f32.mrf.mxu0
        %v950 = vadd.f32 %v795, %v949
        %951 = vmatmul.bf16.gmra.mxu0 %v909
        %v952 = vpop.f32.mrf.mxu0
        %v953 = vadd.f32 %v798, %v952
        %v954 = vpop.f32.mrf.mxu0
        %v955 = vadd.f32 %v800, %v954
        %956 = vmatmul.bf16.gmra.mxu0 %v912
        %v957 = vpop.f32.mrf.mxu0
        %v958 = vadd.f32 %v803, %v957
        %v959 = vpop.f32.mrf.mxu0
        %v960 = vadd.f32 %v805, %v959
        %961 = vmatmul.bf16.gmra.mxu0 %v915
        %v962 = vpop.f32.mrf.mxu0
        %v963 = vadd.f32 %v808, %v962
        %v964 = vpop.f32.mrf.mxu0
        %v965 = vadd.f32 %v810, %v964
        %966 = vmatmul.bf16.gmra.mxu0 %v918
        %v967 = vpop.f32.mrf.mxu0
        %v968 = vadd.f32 %v813, %v967
        %v969 = vpop.f32.mrf.mxu0
        %v970 = vadd.f32 %v815, %v969
        %971 = vmatmul.bf16.gmra.mxu0 %v921
        %v972 = vpop.f32.mrf.mxu0
        %v973 = vadd.f32 %v818, %v972
        %v974 = vpop.f32.mrf.mxu0
        %v975 = vadd.f32 %v820, %v974
        %976 = vmatmul.bf16.gmra.mxu0 %v924
        %v977 = vpop.f32.mrf.mxu0
        %v978 = vadd.f32 %v823, %v977
        %v979 = vpop.f32.mrf.mxu0
        %v980 = vadd.f32 %v825, %v979
        %981 = vmatmul.bf16.gmra.mxu0 %v927
        %v982 = vpop.f32.mrf.mxu0
        %v983 = vadd.f32 %v828, %v982
        %v984 = vpop.f32.mrf.mxu0
        %v985 = vadd.f32 %v830, %v984
        %986 = vmatmul.bf16.gmra.mxu0 %v930
        %v987 = vpop.f32.mrf.mxu0
        %v988 = vadd.f32 %v833, %v987
        %v989 = vpop.f32.mrf.mxu0
        %v990 = vadd.f32 %v835, %v989
        %991 = vmatmul.bf16.gmra.mxu0 %v933
        %v992 = vpop.f32.mrf.mxu0
        %v993 = vadd.f32 %v838, %v992
        %v994 = vpop.f32.mrf.mxu0
        %v995 = vadd.f32 %v840, %v994
        %996 = vmatmul.bf16.gmra.mxu0 %v936
        %v997 = vpop.f32.mrf.mxu0
        %v998 = vadd.f32 %v843, %v997
        %v999 = vpop.f32.mrf.mxu0
        %1000 = vdwg.mxu0
        %s1001 = scalar_lea.vmem %s1, 168
        %v1002 = vld [vmem:[%s1001] sm:$0xf]
        %v1003 = vld [vmem:[%s1001 + $0x4] sm:$0xf]
        %v1004 = vld [vmem:[%s1001 + $0x8] sm:$0xf]
        %v1005 = vld [vmem:[%s1001 + $0xc] sm:$0xf]
        %v1006 = vld [vmem:[%s1001 + $0x10] sm:$0xf]
        %v1007 = vld [vmem:[%s1001 + $0x14] sm:$0xf]
        %v1008 = vld [vmem:[%s1001 + $0x18] sm:$0xf]
        %v1009 = vld [vmem:[%s1001 + $0x1c] sm:$0xf]
        %v1010 = vld [vmem:[%s1001 + $0x20] sm:$0xf]
        %v1011 = vld [vmem:[%s1001 + $0x24] sm:$0xf]
        %v1012 = vld [vmem:[%s1001 + $0x28] sm:$0xf]
        %v1013 = vld [vmem:[%s1001 + $0x2c] sm:$0xf]
        %v1014 = vld [vmem:[%s1001 + $0x30] sm:$0xf]
        %v1015 = vld [vmem:[%s1001 + $0x34] sm:$0xf]
        %v1016 = vld [vmem:[%s1001 + $0x38] sm:$0xf]
        %v1017 = vld [vmem:[%s1001 + $0x3c] sm:$0xf]
        %v1018 = vld [vmem:[%s1001 + $0x40] sm:$0xf]
        %v1019 = vld [vmem:[%s1001 + $0x44] sm:$0xf]
        %v1020 = vld [vmem:[%s1001 + $0x48] sm:$0xf]
        %v1021 = vld [vmem:[%s1001 + $0x4c] sm:$0xf]
        %v1022 = vld [vmem:[%s1001 + $0x50] sm:$0xf]
        %v1044 = vunpack.c.l.b16 %v1002
        %v1045 = vunpack.c.l.b16 %v1003
        %v1046 = vunpack.c.l.b16 %v1004
        %v1047 = vunpack.c.l.b16 %v1005
        %v1048 = vunpack.c.l.b16 %v1006
        %v1049 = vunpack.c.l.b16 %v1007
        %v1050 = vunpack.c.l.b16 %v1008
        %v1051 = vunpack.c.l.b16 %v1009
        %v1052 = vunpack.c.l.b16 %v1010
        %v1053 = vunpack.c.l.b16 %v1011
        %v1054 = vunpack.c.l.b16 %v1012
        %v1055 = vunpack.c.l.b16 %v1013
        %v1056 = vunpack.c.l.b16 %v1014
        %v1057 = vunpack.c.l.b16 %v1015
        %v1058 = vunpack.c.l.b16 %v1016
        %v1059 = vunpack.c.l.b16 %v1017
        %v1060 = vunpack.c.l.b16 %v1018
        %v1061 = vunpack.c.l.b16 %v1019
        %v1062 = vunpack.c.l.b16 %v1020
        %v1063 = vunpack.c.l.b16 %v1021
        %v1064 = vunpack.c.l.b16 %v1022
        %v1065 = vpack.c.b16 %v1045, %v1044
        %v1066 = vpack.c.b16 %v1047, %v1046
        %v1067 = vpack.c.b16 %v1049, %v1048
        %v1068 = vpack.c.b16 %v1051, %v1050
        %v1069 = vpack.c.b16 %v1053, %v1052
        %v1070 = vpack.c.b16 %v1055, %v1054
        %v1071 = vpack.c.b16 %v1057, %v1056
        %v1072 = vpack.c.b16 %v1059, %v1058
        %v1073 = vpack.c.b16 %v1061, %v1060
        %v1074 = vpack.c.b16 %v1063, %v1062
        %v1075 = vpack.c.b16 %v1064, %v1064
        %1076 = vrot.lane.b32.xlu0 %v725, 126
        %v1077 = vpop.permute.xlu0 %1076
        %1078 = vrot.lane.b32.xlu0 %v726, 126
        %v1079 = vpop.permute.xlu0 %1078
        %1080 = vrot.lane.b32.xlu0 %v727, 126
        %v1081 = vpop.permute.xlu0 %1080
        %1082 = vrot.lane.b32.xlu0 %v728, 126
        %v1083 = vpop.permute.xlu0 %1082
        %1084 = vrot.lane.b32.xlu0 %v729, 126
        %v1085 = vpop.permute.xlu0 %1084
        %1086 = vrot.lane.b32.xlu0 %v730, 126
        %v1087 = vpop.permute.xlu0 %1086
        %v1095 = vsel %vm749, %v1065, 0
        %v1098 = vsel %vm749, %v1066, 0
        %v1101 = vsel %vm749, %v1067, 0
        %v1104 = vsel %vm749, %v1068, 0
        %v1107 = vsel %vm749, %v1069, 0
        %v1110 = vsel %vm749, %v1070, 0
        %v1113 = vsel %vm749, %v1071, 0
        %v1116 = vsel %vm749, %v1072, 0
        %v1119 = vsel %vm749, %v1073, 0
        %v1122 = vsel %vm749, %v1074, 0
        %v1125 = vsel %vm749, %v1075, 0
        %1127 = vmatpush.bf16.msra.mxu0 0
        %1128 = vmatpush.bf16.msra.mxu0 0
        %1129 = vmatpush.bf16.msra.mxu0 %v1087
        %1130 = vmatpush.bf16.msra.mxu0 %v1085
        %1131 = vmatpush.bf16.msra.mxu0 %v1083
        %1132 = vmatpush.bf16.msra.mxu0 %v1081
        %1133 = vmatpush.bf16.msra.mxu0 %v1079
        %1134 = vmatpush.bf16.msra.mxu0 %v1077
        %1135 = vmatmul.bf16.gmra.mxu0 %v1095
        %v1136 = vpop.f32.mrf.mxu0
        %v1137 = vadd.f32 0.0, %v1136
        %v1138 = vpop.f32.mrf.mxu0
        %v1139 = vadd.f32 0.0, %v1138
        %1140 = vmatmul.bf16.gmra.mxu0 %v1098
        %v1141 = vpop.f32.mrf.mxu0
        %v1142 = vadd.f32 0.0, %v1141
        %v1143 = vpop.f32.mrf.mxu0
        %v1144 = vadd.f32 0.0, %v1143
        %1145 = vmatmul.bf16.gmra.mxu0 %v1101
        %v1146 = vpop.f32.mrf.mxu0
        %v1147 = vadd.f32 0.0, %v1146
        %v1148 = vpop.f32.mrf.mxu0
        %v1149 = vadd.f32 0.0, %v1148
        %1150 = vmatmul.bf16.gmra.mxu0 %v1104
        %v1151 = vpop.f32.mrf.mxu0
        %v1152 = vadd.f32 0.0, %v1151
        %v1153 = vpop.f32.mrf.mxu0
        %v1154 = vadd.f32 0.0, %v1153
        %1155 = vmatmul.bf16.gmra.mxu0 %v1107
        %v1156 = vpop.f32.mrf.mxu0
        %v1157 = vadd.f32 0.0, %v1156
        %v1158 = vpop.f32.mrf.mxu0
        %v1159 = vadd.f32 0.0, %v1158
        %1160 = vmatmul.bf16.gmra.mxu0 %v1110
        %v1161 = vpop.f32.mrf.mxu0
        %v1162 = vadd.f32 0.0, %v1161
        %v1163 = vpop.f32.mrf.mxu0
        %v1164 = vadd.f32 0.0, %v1163
        %1165 = vmatmul.bf16.gmra.mxu0 %v1113
        %v1166 = vpop.f32.mrf.mxu0
        %v1167 = vadd.f32 0.0, %v1166
        %v1168 = vpop.f32.mrf.mxu0
        %v1169 = vadd.f32 0.0, %v1168
        %1170 = vmatmul.bf16.gmra.mxu0 %v1116
        %v1171 = vpop.f32.mrf.mxu0
        %v1172 = vadd.f32 0.0, %v1171
        %v1173 = vpop.f32.mrf.mxu0
        %v1174 = vadd.f32 0.0, %v1173
        %1175 = vmatmul.bf16.gmra.mxu0 %v1119
        %v1176 = vpop.f32.mrf.mxu0
        %v1177 = vadd.f32 0.0, %v1176
        %v1178 = vpop.f32.mrf.mxu0
        %v1179 = vadd.f32 0.0, %v1178
        %1180 = vmatmul.bf16.gmra.mxu0 %v1122
        %v1181 = vpop.f32.mrf.mxu0
        %v1182 = vadd.f32 0.0, %v1181
        %v1183 = vpop.f32.mrf.mxu0
        %v1184 = vadd.f32 0.0, %v1183
        %1185 = vmatmul.bf16.gmra.mxu0 %v1125
        %v1186 = vpop.f32.mrf.mxu0
        %v1187 = vadd.f32 0.0, %v1186
        %v1188 = vpop.f32.mrf.mxu0
        %1189 = vdwg.mxu0
        %v1190 = vadd.f32 %v948, %v1137
        %v1191 = vadd.f32 %v950, %v1139
        %v1192 = vadd.f32 %v953, %v1142
        %v1193 = vadd.f32 %v955, %v1144
        %v1194 = vadd.f32 %v958, %v1147
        %v1195 = vadd.f32 %v960, %v1149
        %v1196 = vadd.f32 %v963, %v1152
        %v1197 = vadd.f32 %v965, %v1154
        %v1198 = vadd.f32 %v968, %v1157
        %v1199 = vadd.f32 %v970, %v1159
        %v1200 = vadd.f32 %v973, %v1162
        %v1201 = vadd.f32 %v975, %v1164
        %v1202 = vadd.f32 %v978, %v1167
        %v1203 = vadd.f32 %v980, %v1169
        %v1204 = vadd.f32 %v983, %v1172
        %v1205 = vadd.f32 %v985, %v1174
        %v1206 = vadd.f32 %v988, %v1177
        %v1207 = vadd.f32 %v990, %v1179
        %v1208 = vadd.f32 %v993, %v1182
        %v1209 = vadd.f32 %v995, %v1184
        %v1210 = vadd.f32 %v998, %v1187
        %s1211 = scalar_lea.vmem %s1, 252
        %v1212 = vld [vmem:[%s1211] sm:$0xf]
        %v1213 = vld [vmem:[%s1211 + $0x4] sm:$0xf]
        %v1214 = vld [vmem:[%s1211 + $0x8] sm:$0xf]
        %v1215 = vld [vmem:[%s1211 + $0xc] sm:$0xf]
        %v1216 = vld [vmem:[%s1211 + $0x10] sm:$0xf]
        %v1217 = vld [vmem:[%s1211 + $0x14] sm:$0xf]
        %v1218 = vld [vmem:[%s1211 + $0x18] sm:$0xf]
        %v1219 = vld [vmem:[%s1211 + $0x1c] sm:$0xf]
        %v1220 = vld [vmem:[%s1211 + $0x20] sm:$0xf]
        %v1221 = vld [vmem:[%s1211 + $0x24] sm:$0xf]
        %v1222 = vld [vmem:[%s1211 + $0x28] sm:$0xf]
        %v1223 = vld [vmem:[%s1211 + $0x2c] sm:$0xf]
        %v1224 = vld [vmem:[%s1211 + $0x30] sm:$0xf]
        %v1225 = vld [vmem:[%s1211 + $0x34] sm:$0xf]
        %v1226 = vld [vmem:[%s1211 + $0x38] sm:$0xf]
        %v1227 = vld [vmem:[%s1211 + $0x3c] sm:$0xf]
        %v1228 = vld [vmem:[%s1211 + $0x40] sm:$0xf]
        %v1229 = vld [vmem:[%s1211 + $0x44] sm:$0xf]
        %v1230 = vld [vmem:[%s1211 + $0x48] sm:$0xf]
        %v1231 = vld [vmem:[%s1211 + $0x4c] sm:$0xf]
        %v1232 = vld [vmem:[%s1211 + $0x50] sm:$0xf]
        %v1254 = vunpack.c.l.b16 %v1212
        %v1255 = vunpack.c.l.b16 %v1213
        %v1256 = vunpack.c.l.b16 %v1214
        %v1257 = vunpack.c.l.b16 %v1215
        %v1258 = vunpack.c.l.b16 %v1216
        %v1259 = vunpack.c.l.b16 %v1217
        %v1260 = vunpack.c.l.b16 %v1218
        %v1261 = vunpack.c.l.b16 %v1219
        %v1262 = vunpack.c.l.b16 %v1220
        %v1263 = vunpack.c.l.b16 %v1221
        %v1264 = vunpack.c.l.b16 %v1222
        %v1265 = vunpack.c.l.b16 %v1223
        %v1266 = vunpack.c.l.b16 %v1224
        %v1267 = vunpack.c.l.b16 %v1225
        %v1268 = vunpack.c.l.b16 %v1226
        %v1269 = vunpack.c.l.b16 %v1227
        %v1270 = vunpack.c.l.b16 %v1228
        %v1271 = vunpack.c.l.b16 %v1229
        %v1272 = vunpack.c.l.b16 %v1230
        %v1273 = vunpack.c.l.b16 %v1231
        %v1274 = vunpack.c.l.b16 %v1232
        %v1275 = vpack.c.b16 %v1255, %v1254
        %v1276 = vpack.c.b16 %v1257, %v1256
        %v1277 = vpack.c.b16 %v1259, %v1258
        %v1278 = vpack.c.b16 %v1261, %v1260
        %v1279 = vpack.c.b16 %v1263, %v1262
        %v1280 = vpack.c.b16 %v1265, %v1264
        %v1281 = vpack.c.b16 %v1267, %v1266
        %v1282 = vpack.c.b16 %v1269, %v1268
        %v1283 = vpack.c.b16 %v1271, %v1270
        %v1284 = vpack.c.b16 %v1273, %v1272
        %v1285 = vpack.c.b16 %v1274, %v1274
        %1286 = vrot.lane.b32.xlu0 %v725, 125
        %v1287 = vpop.permute.xlu0 %1286
        %1288 = vrot.lane.b32.xlu0 %v726, 125
        %v1289 = vpop.permute.xlu0 %1288
        %1290 = vrot.lane.b32.xlu0 %v727, 125
        %v1291 = vpop.permute.xlu0 %1290
        %1292 = vrot.lane.b32.xlu0 %v728, 125
        %v1293 = vpop.permute.xlu0 %1292
        %1294 = vrot.lane.b32.xlu0 %v729, 125
        %v1295 = vpop.permute.xlu0 %1294
        %1296 = vrot.lane.b32.xlu0 %v730, 125
        %v1297 = vpop.permute.xlu0 %1296
        %v1305 = vsel %vm749, %v1275, 0
        %v1308 = vsel %vm749, %v1276, 0
        %v1311 = vsel %vm749, %v1277, 0
        %v1314 = vsel %vm749, %v1278, 0
        %v1317 = vsel %vm749, %v1279, 0
        %v1320 = vsel %vm749, %v1280, 0
        %v1323 = vsel %vm749, %v1281, 0
        %v1326 = vsel %vm749, %v1282, 0
        %v1329 = vsel %vm749, %v1283, 0
        %v1332 = vsel %vm749, %v1284, 0
        %v1335 = vsel %vm749, %v1285, 0
        %1337 = vmatpush.bf16.msra.mxu0 0
        %1338 = vmatpush.bf16.msra.mxu0 0
        %1339 = vmatpush.bf16.msra.mxu0 %v1297
        %1340 = vmatpush.bf16.msra.mxu0 %v1295
        %1341 = vmatpush.bf16.msra.mxu0 %v1293
        %1342 = vmatpush.bf16.msra.mxu0 %v1291
        %1343 = vmatpush.bf16.msra.mxu0 %v1289
        %1344 = vmatpush.bf16.msra.mxu0 %v1287
        %1345 = vmatmul.bf16.gmra.mxu0 %v1305
        %v1346 = vpop.f32.mrf.mxu0
        %v1347 = vadd.f32 0.0, %v1346
        %v1348 = vpop.f32.mrf.mxu0
        %v1349 = vadd.f32 0.0, %v1348
        %1350 = vmatmul.bf16.gmra.mxu0 %v1308
        %v1351 = vpop.f32.mrf.mxu0
        %v1352 = vadd.f32 0.0, %v1351
        %v1353 = vpop.f32.mrf.mxu0
        %v1354 = vadd.f32 0.0, %v1353
        %1355 = vmatmul.bf16.gmra.mxu0 %v1311
        %v1356 = vpop.f32.mrf.mxu0
        %v1357 = vadd.f32 0.0, %v1356
        %v1358 = vpop.f32.mrf.mxu0
        %v1359 = vadd.f32 0.0, %v1358
        %1360 = vmatmul.bf16.gmra.mxu0 %v1314
        %v1361 = vpop.f32.mrf.mxu0
        %v1362 = vadd.f32 0.0, %v1361
        %v1363 = vpop.f32.mrf.mxu0
        %v1364 = vadd.f32 0.0, %v1363
        %1365 = vmatmul.bf16.gmra.mxu0 %v1317
        %v1366 = vpop.f32.mrf.mxu0
        %v1367 = vadd.f32 0.0, %v1366
        %v1368 = vpop.f32.mrf.mxu0
        %v1369 = vadd.f32 0.0, %v1368
        %1370 = vmatmul.bf16.gmra.mxu0 %v1320
        %v1371 = vpop.f32.mrf.mxu0
        %v1372 = vadd.f32 0.0, %v1371
        %v1373 = vpop.f32.mrf.mxu0
        %v1374 = vadd.f32 0.0, %v1373
        %1375 = vmatmul.bf16.gmra.mxu0 %v1323
        %v1376 = vpop.f32.mrf.mxu0
        %v1377 = vadd.f32 0.0, %v1376
        %v1378 = vpop.f32.mrf.mxu0
        %v1379 = vadd.f32 0.0, %v1378
        %1380 = vmatmul.bf16.gmra.mxu0 %v1326
        %v1381 = vpop.f32.mrf.mxu0
        %v1382 = vadd.f32 0.0, %v1381
        %v1383 = vpop.f32.mrf.mxu0
        %v1384 = vadd.f32 0.0, %v1383
        %1385 = vmatmul.bf16.gmra.mxu0 %v1329
        %v1386 = vpop.f32.mrf.mxu0
        %v1387 = vadd.f32 0.0, %v1386
        %v1388 = vpop.f32.mrf.mxu0
        %v1389 = vadd.f32 0.0, %v1388
        %1390 = vmatmul.bf16.gmra.mxu0 %v1332
        %v1391 = vpop.f32.mrf.mxu0
        %v1392 = vadd.f32 0.0, %v1391
        %v1393 = vpop.f32.mrf.mxu0
        %v1394 = vadd.f32 0.0, %v1393
        %1395 = vmatmul.bf16.gmra.mxu0 %v1335
        %v1396 = vpop.f32.mrf.mxu0
        %v1397 = vadd.f32 0.0, %v1396
        %v1398 = vpop.f32.mrf.mxu0
        %1399 = vdwg.mxu0
        %v1400 = vadd.f32 %v1190, %v1347
        %v1401 = vadd.f32 %v1191, %v1349
        %v1402 = vadd.f32 %v1192, %v1352
        %v1403 = vadd.f32 %v1193, %v1354
        %v1404 = vadd.f32 %v1194, %v1357
        %v1405 = vadd.f32 %v1195, %v1359
        %v1406 = vadd.f32 %v1196, %v1362
        %v1407 = vadd.f32 %v1197, %v1364
        %v1408 = vadd.f32 %v1198, %v1367
        %v1409 = vadd.f32 %v1199, %v1369
        %v1410 = vadd.f32 %v1200, %v1372
        %v1411 = vadd.f32 %v1201, %v1374
        %v1412 = vadd.f32 %v1202, %v1377
        %v1413 = vadd.f32 %v1203, %v1379
        %v1414 = vadd.f32 %v1204, %v1382
        %v1415 = vadd.f32 %v1205, %v1384
        %v1416 = vadd.f32 %v1206, %v1387
        %v1417 = vadd.f32 %v1207, %v1389
        %v1418 = vadd.f32 %v1208, %v1392
        %v1419 = vadd.f32 %v1209, %v1394
        %v1420 = vadd.f32 %v1210, %v1397
        %s1421 = scalar_lea.vmem %s1, 336
        %v1422 = vld [vmem:[%s1421] sm:$0xf]
        %v1423 = vld [vmem:[%s1421 + $0x4] sm:$0xf]
        %v1424 = vld [vmem:[%s1421 + $0x8] sm:$0xf]
        %v1425 = vld [vmem:[%s1421 + $0xc] sm:$0xf]
        %v1426 = vld [vmem:[%s1421 + $0x10] sm:$0xf]
        %v1427 = vld [vmem:[%s1421 + $0x14] sm:$0xf]
        %v1428 = vld [vmem:[%s1421 + $0x18] sm:$0xf]
        %v1429 = vld [vmem:[%s1421 + $0x1c] sm:$0xf]
        %v1430 = vld [vmem:[%s1421 + $0x20] sm:$0xf]
        %v1431 = vld [vmem:[%s1421 + $0x24] sm:$0xf]
        %v1432 = vld [vmem:[%s1421 + $0x28] sm:$0xf]
        %v1433 = vld [vmem:[%s1421 + $0x2c] sm:$0xf]
        %v1434 = vld [vmem:[%s1421 + $0x30] sm:$0xf]
        %v1435 = vld [vmem:[%s1421 + $0x34] sm:$0xf]
        %v1436 = vld [vmem:[%s1421 + $0x38] sm:$0xf]
        %v1437 = vld [vmem:[%s1421 + $0x3c] sm:$0xf]
        %v1438 = vld [vmem:[%s1421 + $0x40] sm:$0xf]
        %v1439 = vld [vmem:[%s1421 + $0x44] sm:$0xf]
        %v1440 = vld [vmem:[%s1421 + $0x48] sm:$0xf]
        %v1441 = vld [vmem:[%s1421 + $0x4c] sm:$0xf]
        %v1442 = vld [vmem:[%s1421 + $0x50] sm:$0xf]
        %v1464 = vunpack.c.l.b16 %v1422
        %v1465 = vunpack.c.l.b16 %v1423
        %v1466 = vunpack.c.l.b16 %v1424
        %v1467 = vunpack.c.l.b16 %v1425
        %v1468 = vunpack.c.l.b16 %v1426
        %v1469 = vunpack.c.l.b16 %v1427
        %v1470 = vunpack.c.l.b16 %v1428
        %v1471 = vunpack.c.l.b16 %v1429
        %v1472 = vunpack.c.l.b16 %v1430
        %v1473 = vunpack.c.l.b16 %v1431
        %v1474 = vunpack.c.l.b16 %v1432
        %v1475 = vunpack.c.l.b16 %v1433
        %v1476 = vunpack.c.l.b16 %v1434
        %v1477 = vunpack.c.l.b16 %v1435
        %v1478 = vunpack.c.l.b16 %v1436
        %v1479 = vunpack.c.l.b16 %v1437
        %v1480 = vunpack.c.l.b16 %v1438
        %v1481 = vunpack.c.l.b16 %v1439
        %v1482 = vunpack.c.l.b16 %v1440
        %v1483 = vunpack.c.l.b16 %v1441
        %v1484 = vunpack.c.l.b16 %v1442
        %v1485 = vpack.c.b16 %v1465, %v1464
        %v1486 = vpack.c.b16 %v1467, %v1466
        %v1487 = vpack.c.b16 %v1469, %v1468
        %v1488 = vpack.c.b16 %v1471, %v1470
        %v1489 = vpack.c.b16 %v1473, %v1472
        %v1490 = vpack.c.b16 %v1475, %v1474
        %v1491 = vpack.c.b16 %v1477, %v1476
        %v1492 = vpack.c.b16 %v1479, %v1478
        %v1493 = vpack.c.b16 %v1481, %v1480
        %v1494 = vpack.c.b16 %v1483, %v1482
        %v1495 = vpack.c.b16 %v1484, %v1484
        %1496 = vrot.lane.b32.xlu0 %v725, 124
        %v1497 = vpop.permute.xlu0 %1496
        %1498 = vrot.lane.b32.xlu0 %v726, 124
        %v1499 = vpop.permute.xlu0 %1498
        %1500 = vrot.lane.b32.xlu0 %v727, 124
        %v1501 = vpop.permute.xlu0 %1500
        %1502 = vrot.lane.b32.xlu0 %v728, 124
        %v1503 = vpop.permute.xlu0 %1502
        %1504 = vrot.lane.b32.xlu0 %v729, 124
        %v1505 = vpop.permute.xlu0 %1504
        %1506 = vrot.lane.b32.xlu0 %v730, 124
        %v1507 = vpop.permute.xlu0 %1506
        %v1515 = vsel %vm749, %v1485, 0
        %v1518 = vsel %vm749, %v1486, 0
        %v1521 = vsel %vm749, %v1487, 0
        %v1524 = vsel %vm749, %v1488, 0
        %v1527 = vsel %vm749, %v1489, 0
        %v1530 = vsel %vm749, %v1490, 0
        %v1533 = vsel %vm749, %v1491, 0
        %v1536 = vsel %vm749, %v1492, 0
        %v1539 = vsel %vm749, %v1493, 0
        %v1542 = vsel %vm749, %v1494, 0
        %v1545 = vsel %vm749, %v1495, 0
        %1547 = vmatpush.bf16.msra.mxu0 0
        %1548 = vmatpush.bf16.msra.mxu0 0
        %1549 = vmatpush.bf16.msra.mxu0 %v1507
        %1550 = vmatpush.bf16.msra.mxu0 %v1505
        %1551 = vmatpush.bf16.msra.mxu0 %v1503
        %1552 = vmatpush.bf16.msra.mxu0 %v1501
        %1553 = vmatpush.bf16.msra.mxu0 %v1499
        %1554 = vmatpush.bf16.msra.mxu0 %v1497
        %1555 = vmatmul.bf16.gmra.mxu0 %v1515
        %v1556 = vpop.f32.mrf.mxu0
        %v1557 = vadd.f32 0.0, %v1556
        %v1558 = vpop.f32.mrf.mxu0
        %v1559 = vadd.f32 0.0, %v1558
        %1560 = vmatmul.bf16.gmra.mxu0 %v1518
        %v1561 = vpop.f32.mrf.mxu0
        %v1562 = vadd.f32 0.0, %v1561
        %v1563 = vpop.f32.mrf.mxu0
        %v1564 = vadd.f32 0.0, %v1563
        %1565 = vmatmul.bf16.gmra.mxu0 %v1521
        %v1566 = vpop.f32.mrf.mxu0
        %v1567 = vadd.f32 0.0, %v1566
        %v1568 = vpop.f32.mrf.mxu0
        %v1569 = vadd.f32 0.0, %v1568
        %1570 = vmatmul.bf16.gmra.mxu0 %v1524
        %v1571 = vpop.f32.mrf.mxu0
        %v1572 = vadd.f32 0.0, %v1571
        %v1573 = vpop.f32.mrf.mxu0
        %v1574 = vadd.f32 0.0, %v1573
        %1575 = vmatmul.bf16.gmra.mxu0 %v1527
        %v1576 = vpop.f32.mrf.mxu0
        %v1577 = vadd.f32 0.0, %v1576
        %v1578 = vpop.f32.mrf.mxu0
        %v1579 = vadd.f32 0.0, %v1578
        %1580 = vmatmul.bf16.gmra.mxu0 %v1530
        %v1581 = vpop.f32.mrf.mxu0
        %v1582 = vadd.f32 0.0, %v1581
        %v1583 = vpop.f32.mrf.mxu0
        %v1584 = vadd.f32 0.0, %v1583
        %1585 = vmatmul.bf16.gmra.mxu0 %v1533
        %v1586 = vpop.f32.mrf.mxu0
        %v1587 = vadd.f32 0.0, %v1586
        %v1588 = vpop.f32.mrf.mxu0
        %v1589 = vadd.f32 0.0, %v1588
        %1590 = vmatmul.bf16.gmra.mxu0 %v1536
        %v1591 = vpop.f32.mrf.mxu0
        %v1592 = vadd.f32 0.0, %v1591
        %v1593 = vpop.f32.mrf.mxu0
        %v1594 = vadd.f32 0.0, %v1593
        %1595 = vmatmul.bf16.gmra.mxu0 %v1539
        %v1596 = vpop.f32.mrf.mxu0
        %v1597 = vadd.f32 0.0, %v1596
        %v1598 = vpop.f32.mrf.mxu0
        %v1599 = vadd.f32 0.0, %v1598
        %1600 = vmatmul.bf16.gmra.mxu0 %v1542
        %v1601 = vpop.f32.mrf.mxu0
        %v1602 = vadd.f32 0.0, %v1601
        %v1603 = vpop.f32.mrf.mxu0
        %v1604 = vadd.f32 0.0, %v1603
        %1605 = vmatmul.bf16.gmra.mxu0 %v1545
        %v1606 = vpop.f32.mrf.mxu0
        %v1607 = vadd.f32 0.0, %v1606
        %v1608 = vpop.f32.mrf.mxu0
        %1609 = vdwg.mxu0
        %v1610 = vadd.f32 %v1400, %v1557
        %v1611 = vadd.f32 %v1401, %v1559
        %v1612 = vadd.f32 %v1402, %v1562
        %v1613 = vadd.f32 %v1403, %v1564
        %v1614 = vadd.f32 %v1404, %v1567
        %v1615 = vadd.f32 %v1405, %v1569
        %v1616 = vadd.f32 %v1406, %v1572
        %v1617 = vadd.f32 %v1407, %v1574
        %v1618 = vadd.f32 %v1408, %v1577
        %v1619 = vadd.f32 %v1409, %v1579
        %v1620 = vadd.f32 %v1410, %v1582
        %v1621 = vadd.f32 %v1411, %v1584
        %v1622 = vadd.f32 %v1412, %v1587
        %v1623 = vadd.f32 %v1413, %v1589
        %v1624 = vadd.f32 %v1414, %v1592
        %v1625 = vadd.f32 %v1415, %v1594
        %v1626 = vadd.f32 %v1416, %v1597
        %v1627 = vadd.f32 %v1417, %v1599
        %v1628 = vadd.f32 %v1418, %v1602
        %v1629 = vadd.f32 %v1419, %v1604
        %v1630 = vadd.f32 %v1420, %v1607
        %v1631 = vld [vmem:[%s2] sm:$0xff]
        %v1632 = vld [vmem:[%s2 + $0x8] sm:$0xff]
        %v1633 = vld [vmem:[%s2 + $0x10] sm:$0xff]
        %v1634 = vld [vmem:[%s2 + $0x18] sm:$0xff]
        %v1635 = vld [vmem:[%s2 + $0x20] sm:$0xff]
        %v1636 = vld [vmem:[%s2 + $0x28] sm:$0xff]
        %v1637 = vld [vmem:[%s2 + $0x30] sm:$0xff]
        %v1638 = vld [vmem:[%s2 + $0x38] sm:$0xff]
        %v1639 = vld [vmem:[%s2 + $0x40] sm:$0xff]
        %v1640 = vld [vmem:[%s2 + $0x48] sm:$0xff]
        %v1641 = vld [vmem:[%s2 + $0x50] sm:$0xff]
        %v1642 = vld [vmem:[%s2 + $0x58] sm:$0xff]
        %v1643 = vld [vmem:[%s2 + $0x60] sm:$0xff]
        %v1644 = vld [vmem:[%s2 + $0x68] sm:$0xff]
        %v1645 = vld [vmem:[%s2 + $0x70] sm:$0xff]
        %v1646 = vld [vmem:[%s2 + $0x78] sm:$0xff]
        %v1647 = vld [vmem:[%s2 + $0x80] sm:$0xff]
        %v1648 = vld [vmem:[%s2 + $0x88] sm:$0xff]
        %v1649 = vld [vmem:[%s2 + $0x90] sm:$0xff]
        %v1650 = vld [vmem:[%s2 + $0x98] sm:$0xff]
        %v1651 = vld [vmem:[%s2 + $0xa0] sm:$0xff]
        %1653 = vset.pattern.permute.xlu0 0
        %1654 = vperm.xlu0 %1653, %v1631
        %v1655 = vpop.permute.xlu0 %1654
        %1658 = vset.pattern.permute.xlu0 0
        %1659 = vperm.xlu0 %1658, %v1632
        %v1660 = vpop.permute.xlu0 %1659
        %1663 = vset.pattern.permute.xlu0 0
        %1664 = vperm.xlu0 %1663, %v1633
        %v1665 = vpop.permute.xlu0 %1664
        %1668 = vset.pattern.permute.xlu0 0
        %1669 = vperm.xlu0 %1668, %v1634
        %v1670 = vpop.permute.xlu0 %1669
        %1673 = vset.pattern.permute.xlu0 0
        %1674 = vperm.xlu0 %1673, %v1635
        %v1675 = vpop.permute.xlu0 %1674
        %1678 = vset.pattern.permute.xlu0 0
        %1679 = vperm.xlu0 %1678, %v1636
        %v1680 = vpop.permute.xlu0 %1679
        %1683 = vset.pattern.permute.xlu0 0
        %1684 = vperm.xlu0 %1683, %v1637
        %v1685 = vpop.permute.xlu0 %1684
        %1688 = vset.pattern.permute.xlu0 0
        %1689 = vperm.xlu0 %1688, %v1638
        %v1690 = vpop.permute.xlu0 %1689
        %1693 = vset.pattern.permute.xlu0 0
        %1694 = vperm.xlu0 %1693, %v1639
        %v1695 = vpop.permute.xlu0 %1694
        %1698 = vset.pattern.permute.xlu0 0
        %1699 = vperm.xlu0 %1698, %v1640
        %v1700 = vpop.permute.xlu0 %1699
        %1703 = vset.pattern.permute.xlu0 0
        %1704 = vperm.xlu0 %1703, %v1641
        %v1705 = vpop.permute.xlu0 %1704
        %1708 = vset.pattern.permute.xlu0 0
        %1709 = vperm.xlu0 %1708, %v1642
        %v1710 = vpop.permute.xlu0 %1709
        %1713 = vset.pattern.permute.xlu0 0
        %1714 = vperm.xlu0 %1713, %v1643
        %v1715 = vpop.permute.xlu0 %1714
        %1718 = vset.pattern.permute.xlu0 0
        %1719 = vperm.xlu0 %1718, %v1644
        %v1720 = vpop.permute.xlu0 %1719
        %1723 = vset.pattern.permute.xlu0 0
        %1724 = vperm.xlu0 %1723, %v1645
        %v1725 = vpop.permute.xlu0 %1724
        %1728 = vset.pattern.permute.xlu0 0
        %1729 = vperm.xlu0 %1728, %v1646
        %v1730 = vpop.permute.xlu0 %1729
        %1733 = vset.pattern.permute.xlu0 0
        %1734 = vperm.xlu0 %1733, %v1647
        %v1735 = vpop.permute.xlu0 %1734
        %1738 = vset.pattern.permute.xlu0 0
        %1739 = vperm.xlu0 %1738, %v1648
        %v1740 = vpop.permute.xlu0 %1739
        %1743 = vset.pattern.permute.xlu0 0
        %1744 = vperm.xlu0 %1743, %v1649
        %v1745 = vpop.permute.xlu0 %1744
        %1748 = vset.pattern.permute.xlu0 0
        %1749 = vperm.xlu0 %1748, %v1650
        %v1750 = vpop.permute.xlu0 %1749
        %1753 = vset.pattern.permute.xlu0 0
        %1754 = vperm.xlu0 %1753, %v1651
        %v1755 = vpop.permute.xlu0 %1754
        %v1757 = vadd.f32 %v1610, %v1655
        %v1758 = vadd.f32 %v1611, %v1660
        %v1759 = vadd.f32 %v1612, %v1665
        %v1760 = vadd.f32 %v1613, %v1670
        %v1761 = vadd.f32 %v1614, %v1675
        %v1762 = vadd.f32 %v1615, %v1680
        %v1763 = vadd.f32 %v1616, %v1685
        %v1764 = vadd.f32 %v1617, %v1690
        %v1765 = vadd.f32 %v1618, %v1695
        %v1766 = vadd.f32 %v1619, %v1700
        %v1767 = vadd.f32 %v1620, %v1705
        %v1768 = vadd.f32 %v1621, %v1710
        %v1769 = vadd.f32 %v1622, %v1715
        %v1770 = vadd.f32 %v1623, %v1720
        %v1771 = vadd.f32 %v1624, %v1725
        %v1772 = vadd.f32 %v1625, %v1730
        %v1773 = vadd.f32 %v1626, %v1735
        %v1774 = vadd.f32 %v1627, %v1740
        %v1775 = vadd.f32 %v1628, %v1745
        %v1776 = vadd.f32 %v1629, %v1750
        %v1777 = vadd.f32 %v1630, %v1755
        %v1778 = vmax.f32 %v1757, 0.0
        %v1779 = vmax.f32 %v1758, 0.0
        %v1780 = vmax.f32 %v1759, 0.0
        %v1781 = vmax.f32 %v1760, 0.0
        %v1782 = vmax.f32 %v1761, 0.0
        %v1783 = vmax.f32 %v1762, 0.0
        %v1784 = vmax.f32 %v1763, 0.0
        %v1785 = vmax.f32 %v1764, 0.0
        %v1786 = vmax.f32 %v1765, 0.0
        %v1787 = vmax.f32 %v1766, 0.0
        %v1788 = vmax.f32 %v1767, 0.0
        %v1789 = vmax.f32 %v1768, 0.0
        %v1790 = vmax.f32 %v1769, 0.0
        %v1791 = vmax.f32 %v1770, 0.0
        %v1792 = vmax.f32 %v1771, 0.0
        %v1793 = vmax.f32 %v1772, 0.0
        %v1794 = vmax.f32 %v1773, 0.0
        %v1795 = vmax.f32 %v1774, 0.0
        %v1796 = vmax.f32 %v1775, 0.0
        %v1797 = vmax.f32 %v1776, 0.0
        %v1798 = vmax.f32 %v1777, 0.0
        %v1799 = vpack.c.bf16 %v1779, %v1778
        %v1800 = vpack.c.bf16 %v1781, %v1780
        %v1801 = vpack.c.bf16 %v1783, %v1782
        %v1802 = vpack.c.bf16 %v1785, %v1784
        %v1803 = vpack.c.bf16 %v1787, %v1786
        %v1804 = vpack.c.bf16 %v1789, %v1788
        %v1805 = vpack.c.bf16 %v1791, %v1790
        %v1806 = vpack.c.bf16 %v1793, %v1792
        %v1807 = vpack.c.bf16 %v1795, %v1794
        %v1808 = vpack.c.bf16 %v1797, %v1796
        %v1809 = vpack.c.bf16 %v1798, %v1798
        %v1810 = vld [vmem:[%s3] sm:$0xff]
        %v1811 = vld [vmem:[%s3 + $0x8] sm:$0xff]
        %v1812 = vld [vmem:[%s3 + $0x10] sm:$0xff]
        %v1813 = vld [vmem:[%s3 + $0x18] sm:$0xff]
        %v1814 = vld [vmem:[%s3 + $0x20] sm:$0xff]
        %v1815 = vld [vmem:[%s3 + $0x28] sm:$0xff]
        %v1816 = vld [vmem:[%s3 + $0x30] sm:$0xff]
        %v1817 = vld [vmem:[%s3 + $0x38] sm:$0xff]
        %v1818 = vld [vmem:[%s3 + $0x40] sm:$0xff]
        %v1819 = vld [vmem:[%s3 + $0x48] sm:$0xff]
        %v1820 = vld [vmem:[%s3 + $0x50] sm:$0x33]
        %v1832 = vunpack.c.l.b16 %v1810
        %v1833 = vunpack.c.h.b16 %v1810
        %v1834 = vunpack.c.l.b16 %v1811
        %v1835 = vunpack.c.h.b16 %v1811
        %v1836 = vunpack.c.l.b16 %v1812
        %v1837 = vunpack.c.h.b16 %v1812
        %v1838 = vunpack.c.l.b16 %v1813
        %v1839 = vunpack.c.h.b16 %v1813
        %v1840 = vunpack.c.l.b16 %v1814
        %v1841 = vunpack.c.h.b16 %v1814
        %v1842 = vunpack.c.l.b16 %v1815
        %v1843 = vunpack.c.h.b16 %v1815
        %v1844 = vunpack.c.l.b16 %v1816
        %v1845 = vunpack.c.h.b16 %v1816
        %v1846 = vunpack.c.l.b16 %v1817
        %v1847 = vunpack.c.h.b16 %v1817
        %v1848 = vunpack.c.l.b16 %v1818
        %v1849 = vunpack.c.h.b16 %v1818
        %v1850 = vunpack.c.l.b16 %v1819
        %v1851 = vunpack.c.h.b16 %v1819
        %v1852 = vunpack.c.l.b16 %v1820
        %v1853 = vunpack.c.h.b16 %v1820
        %v1854 = vpack.c.b16 %v1834, %v1832
        %v1855 = vpack.c.b16 %v1835, %v1833
        %v1856 = vpack.c.b16 %v1838, %v1836
        %v1857 = vpack.c.b16 %v1839, %v1837
        %v1858 = vpack.c.b16 %v1842, %v1840
        %v1859 = vpack.c.b16 %v1843, %v1841
        %v1860 = vpack.c.b16 %v1846, %v1844
        %v1861 = vpack.c.b16 %v1847, %v1845
        %v1862 = vpack.c.b16 %v1850, %v1848
        %v1863 = vpack.c.b16 %v1851, %v1849
        %v1864 = vpack.c.b16 %v1852, %v1852
        %v1865 = vpack.c.b16 %v1853, %v1853
        %vm1872 = vcmask 326656
        %v1874 = vsel %vm1872, %v1855, 0
        %v1877 = vsel %vm1872, %v1857, 0
        %v1880 = vsel %vm1872, %v1859, 0
        %v1883 = vsel %vm1872, %v1861, 0
        %v1886 = vsel %vm1872, %v1863, 0
        %v1889 = vsel %vm1872, %v1865, 0
        %vm1891 = vcmask 1043456
        %v1893 = vsel %vm1891, %v1809, 0
        %1895 = vmatpush.bf16.msra.mxu0 %v1806
        %1896 = vmatpush.bf16.msra.mxu0 %v1805
        %1897 = vmatpush.bf16.msra.mxu0 %v1804
        %1898 = vmatpush.bf16.msra.mxu0 %v1803
        %1899 = vmatpush.bf16.msra.mxu0 %v1802
        %1900 = vmatpush.bf16.msra.mxu0 %v1801
        %1901 = vmatpush.bf16.msra.mxu0 %v1800
        %1902 = vmatpush.bf16.msra.mxu0 %v1799
        %1903 = vmatmul.bf16.gmra.mxu0 %v1854
        %v1904 = vpop.f32.mrf.mxu0
        %v1905 = vadd.f32 0.0, %v1904
        %v1906 = vpop.f32.mrf.mxu0
        %v1907 = vadd.f32 0.0, %v1906
        %1908 = vmatmul.bf16.gmra.mxu0 %v1856
        %v1909 = vpop.f32.mrf.mxu0
        %v1910 = vadd.f32 0.0, %v1909
        %v1911 = vpop.f32.mrf.mxu0
        %v1912 = vadd.f32 0.0, %v1911
        %1913 = vmatmul.bf16.gmra.mxu0 %v1858
        %v1914 = vpop.f32.mrf.mxu0
        %v1915 = vadd.f32 0.0, %v1914
        %v1916 = vpop.f32.mrf.mxu0
        %v1917 = vadd.f32 0.0, %v1916
        %1918 = vmatmul.bf16.gmra.mxu0 %v1860
        %v1919 = vpop.f32.mrf.mxu0
        %v1920 = vadd.f32 0.0, %v1919
        %v1921 = vpop.f32.mrf.mxu0
        %v1922 = vadd.f32 0.0, %v1921
        %1923 = vmatmul.bf16.gmra.mxu0 %v1862
        %v1924 = vpop.f32.mrf.mxu0
        %v1925 = vadd.f32 0.0, %v1924
        %v1926 = vpop.f32.mrf.mxu0
        %v1927 = vadd.f32 0.0, %v1926
        %1928 = vmatmul.bf16.gmra.mxu0 %v1864
        %v1929 = vpop.f32.mrf.mxu0
        %v1930 = vadd.f32 0.0, %v1929
        %v1931 = vpop.f32.mrf.mxu0
        %1932 = vdwg.mxu0
        %1933 = vmatpush.bf16.msra.mxu0 0
        %1934 = vmatpush.bf16.msra.mxu0 0
        %1935 = vmatpush.bf16.msra.mxu0 0
        %1936 = vmatpush.bf16.msra.mxu0 0
        %1937 = vmatpush.bf16.msra.mxu0 0
        %1938 = vmatpush.bf16.msra.mxu0 %v1893
        %1939 = vmatpush.bf16.msra.mxu0 %v1808
        %1940 = vmatpush.bf16.msra.mxu0 %v1807
        %1941 = vmatmul.bf16.gmra.mxu0 %v1874
        %v1942 = vpop.f32.mrf.mxu0
        %v1943 = vadd.f32 %v1905, %v1942
        %v1944 = vpop.f32.mrf.mxu0
        %v1945 = vadd.f32 %v1907, %v1944
        %1946 = vmatmul.bf16.gmra.mxu0 %v1877
        %v1947 = vpop.f32.mrf.mxu0
        %v1948 = vadd.f32 %v1910, %v1947
        %v1949 = vpop.f32.mrf.mxu0
        %v1950 = vadd.f32 %v1912, %v1949
        %1951 = vmatmul.bf16.gmra.mxu0 %v1880
        %v1952 = vpop.f32.mrf.mxu0
        %v1953 = vadd.f32 %v1915, %v1952
        %v1954 = vpop.f32.mrf.mxu0
        %v1955 = vadd.f32 %v1917, %v1954
        %1956 = vmatmul.bf16.gmra.mxu0 %v1883
        %v1957 = vpop.f32.mrf.mxu0
        %v1958 = vadd.f32 %v1920, %v1957
        %v1959 = vpop.f32.mrf.mxu0
        %v1960 = vadd.f32 %v1922, %v1959
        %1961 = vmatmul.bf16.gmra.mxu0 %v1886
        %v1962 = vpop.f32.mrf.mxu0
        %v1963 = vadd.f32 %v1925, %v1962
        %v1964 = vpop.f32.mrf.mxu0
        %v1965 = vadd.f32 %v1927, %v1964
        %1966 = vmatmul.bf16.gmra.mxu0 %v1889
        %v1967 = vpop.f32.mrf.mxu0
        %v1968 = vadd.f32 %v1930, %v1967
        %v1969 = vpop.f32.mrf.mxu0
        %1970 = vdwg.mxu0
        %s1971 = scalar_lea.vmem %s3, 88
        %v1972 = vld [vmem:[%s1971] sm:$0xff]
        %v1973 = vld [vmem:[%s1971 + $0x8] sm:$0xff]
        %v1974 = vld [vmem:[%s1971 + $0x10] sm:$0xff]
        %v1975 = vld [vmem:[%s1971 + $0x18] sm:$0xff]
        %v1976 = vld [vmem:[%s1971 + $0x20] sm:$0xff]
        %v1977 = vld [vmem:[%s1971 + $0x28] sm:$0xff]
        %v1978 = vld [vmem:[%s1971 + $0x30] sm:$0xff]
        %v1979 = vld [vmem:[%s1971 + $0x38] sm:$0xff]
        %v1980 = vld [vmem:[%s1971 + $0x40] sm:$0xff]
        %v1981 = vld [vmem:[%s1971 + $0x48] sm:$0xff]
        %v1982 = vld [vmem:[%s1971 + $0x50] sm:$0x33]
        %v1994 = vunpack.c.l.b16 %v1972
        %v1995 = vunpack.c.h.b16 %v1972
        %v1996 = vunpack.c.l.b16 %v1973
        %v1997 = vunpack.c.h.b16 %v1973
        %v1998 = vunpack.c.l.b16 %v1974
        %v1999 = vunpack.c.h.b16 %v1974
        %v2000 = vunpack.c.l.b16 %v1975
        %v2001 = vunpack.c.h.b16 %v1975
        %v2002 = vunpack.c.l.b16 %v1976
        %v2003 = vunpack.c.h.b16 %v1976
        %v2004 = vunpack.c.l.b16 %v1977
        %v2005 = vunpack.c.h.b16 %v1977
        %v2006 = vunpack.c.l.b16 %v1978
        %v2007 = vunpack.c.h.b16 %v1978
        %v2008 = vunpack.c.l.b16 %v1979
        %v2009 = vunpack.c.h.b16 %v1979
        %v2010 = vunpack.c.l.b16 %v1980
        %v2011 = vunpack.c.h.b16 %v1980
        %v2012 = vunpack.c.l.b16 %v1981
        %v2013 = vunpack.c.h.b16 %v1981
        %v2014 = vunpack.c.l.b16 %v1982
        %v2015 = vunpack.c.h.b16 %v1982
        %v2016 = vpack.c.b16 %v1996, %v1994
        %v2017 = vpack.c.b16 %v1997, %v1995
        %v2018 = vpack.c.b16 %v2000, %v1998
        %v2019 = vpack.c.b16 %v2001, %v1999
        %v2020 = vpack.c.b16 %v2004, %v2002
        %v2021 = vpack.c.b16 %v2005, %v2003
        %v2022 = vpack.c.b16 %v2008, %v2006
        %v2023 = vpack.c.b16 %v2009, %v2007
        %v2024 = vpack.c.b16 %v2012, %v2010
        %v2025 = vpack.c.b16 %v2013, %v2011
        %v2026 = vpack.c.b16 %v2014, %v2014
        %v2027 = vpack.c.b16 %v2015, %v2015
        %v2035 = vsel %vm1872, %v2017, 0
        %v2038 = vsel %vm1872, %v2019, 0
        %v2041 = vsel %vm1872, %v2021, 0
        %v2044 = vsel %vm1872, %v2023, 0
        %v2047 = vsel %vm1872, %v2025, 0
        %v2050 = vsel %vm1872, %v2027, 0
        %2052 = vmatpush.bf16.msra.mxu0 %v1806
        %2053 = vmatpush.bf16.msra.mxu0 %v1805
        %2054 = vmatpush.bf16.msra.mxu0 %v1804
        %2055 = vmatpush.bf16.msra.mxu0 %v1803
        %2056 = vmatpush.bf16.msra.mxu0 %v1802
        %2057 = vmatpush.bf16.msra.mxu0 %v1801
        %2058 = vmatpush.bf16.msra.mxu0 %v1800
        %2059 = vmatpush.bf16.msra.mxu0 %v1799
        %2060 = vmatmul.bf16.gmra.mxu0 %v2016
        %v2061 = vpop.f32.mrf.mxu0
        %v2062 = vadd.f32 0.0, %v2061
        %v2063 = vpop.f32.mrf.mxu0
        %v2064 = vadd.f32 0.0, %v2063
        %2065 = vmatmul.bf16.gmra.mxu0 %v2018
        %v2066 = vpop.f32.mrf.mxu0
        %v2067 = vadd.f32 0.0, %v2066
        %v2068 = vpop.f32.mrf.mxu0
        %v2069 = vadd.f32 0.0, %v2068
        %2070 = vmatmul.bf16.gmra.mxu0 %v2020
        %v2071 = vpop.f32.mrf.mxu0
        %v2072 = vadd.f32 0.0, %v2071
        %v2073 = vpop.f32.mrf.mxu0
        %v2074 = vadd.f32 0.0, %v2073
        %2075 = vmatmul.bf16.gmra.mxu0 %v2022
        %v2076 = vpop.f32.mrf.mxu0
        %v2077 = vadd.f32 0.0, %v2076
        %v2078 = vpop.f32.mrf.mxu0
        %v2079 = vadd.f32 0.0, %v2078
        %2080 = vmatmul.bf16.gmra.mxu0 %v2024
        %v2081 = vpop.f32.mrf.mxu0
        %v2082 = vadd.f32 0.0, %v2081
        %v2083 = vpop.f32.mrf.mxu0
        %v2084 = vadd.f32 0.0, %v2083
        %2085 = vmatmul.bf16.gmra.mxu0 %v2026
        %v2086 = vpop.f32.mrf.mxu0
        %v2087 = vadd.f32 0.0, %v2086
        %v2088 = vpop.f32.mrf.mxu0
        %2089 = vdwg.mxu0
        %2090 = vmatpush.bf16.msra.mxu0 0
        %2091 = vmatpush.bf16.msra.mxu0 0
        %2092 = vmatpush.bf16.msra.mxu0 0
        %2093 = vmatpush.bf16.msra.mxu0 0
        %2094 = vmatpush.bf16.msra.mxu0 0
        %2095 = vmatpush.bf16.msra.mxu0 %v1893
        %2096 = vmatpush.bf16.msra.mxu0 %v1808
        %2097 = vmatpush.bf16.msra.mxu0 %v1807
        %2098 = vmatmul.bf16.gmra.mxu0 %v2035
        %v2099 = vpop.f32.mrf.mxu0
        %v2100 = vadd.f32 %v2062, %v2099
        %v2101 = vpop.f32.mrf.mxu0
        %v2102 = vadd.f32 %v2064, %v2101
        %2103 = vmatmul.bf16.gmra.mxu0 %v2038
        %v2104 = vpop.f32.mrf.mxu0
        %v2105 = vadd.f32 %v2067, %v2104
        %v2106 = vpop.f32.mrf.mxu0
        %v2107 = vadd.f32 %v2069, %v2106
        %2108 = vmatmul.bf16.gmra.mxu0 %v2041
        %v2109 = vpop.f32.mrf.mxu0
        %v2110 = vadd.f32 %v2072, %v2109
        %v2111 = vpop.f32.mrf.mxu0
        %v2112 = vadd.f32 %v2074, %v2111
        %2113 = vmatmul.bf16.gmra.mxu0 %v2044
        %v2114 = vpop.f32.mrf.mxu0
        %v2115 = vadd.f32 %v2077, %v2114
        %v2116 = vpop.f32.mrf.mxu0
        %v2117 = vadd.f32 %v2079, %v2116
        %2118 = vmatmul.bf16.gmra.mxu0 %v2047
        %v2119 = vpop.f32.mrf.mxu0
        %v2120 = vadd.f32 %v2082, %v2119
        %v2121 = vpop.f32.mrf.mxu0
        %v2122 = vadd.f32 %v2084, %v2121
        %2123 = vmatmul.bf16.gmra.mxu0 %v2050
        %v2124 = vpop.f32.mrf.mxu0
        %v2125 = vadd.f32 %v2087, %v2124
        %v2126 = vpop.f32.mrf.mxu0
        %2127 = vdwg.mxu0
        %v2128 = vmax.f32 %v1943, %v2100
        %v2129 = vmax.f32 %v1945, %v2102
        %v2130 = vmax.f32 %v1948, %v2105
        %v2131 = vmax.f32 %v1950, %v2107
        %v2132 = vmax.f32 %v1953, %v2110
        %v2133 = vmax.f32 %v1955, %v2112
        %v2134 = vmax.f32 %v1958, %v2115
        %v2135 = vmax.f32 %v1960, %v2117
        %v2136 = vmax.f32 %v1963, %v2120
        %v2137 = vmax.f32 %v1965, %v2122
        %v2138 = vmax.f32 %v1968, %v2125
        %v2139 = vpack.c.bf16 %v2129, %v2128
        %v2140 = vpack.c.bf16 %v2131, %v2130
        %v2141 = vpack.c.bf16 %v2133, %v2132
        %v2142 = vpack.c.bf16 %v2135, %v2134
        %v2143 = vpack.c.bf16 %v2137, %v2136
        %v2144 = vpack.c.bf16 %v2138, %v2138
        %v2145 = vld [vmem:[%s4] sm:$0xf]
        %v2146 = vld [vmem:[%s4 + $0x4] sm:$0xf]
        %v2147 = vld [vmem:[%s4 + $0x8] sm:$0xf]
        %v2148 = vld [vmem:[%s4 + $0xc] sm:$0xf]
        %v2149 = vld [vmem:[%s4 + $0x10] sm:$0xf]
        %v2150 = vld [vmem:[%s4 + $0x14] sm:$0xf]
        %v2151 = vld [vmem:[%s4 + $0x18] sm:$0xf]
        %v2152 = vld [vmem:[%s4 + $0x1c] sm:$0x3]
        %v2161 = vunpack.c.l.b16 %v2145
        %v2162 = vunpack.c.l.b16 %v2146
        %v2163 = vunpack.c.l.b16 %v2147
        %v2164 = vunpack.c.l.b16 %v2148
        %v2165 = vunpack.c.l.b16 %v2149
        %v2166 = vunpack.c.l.b16 %v2150
        %v2167 = vunpack.c.l.b16 %v2151
        %v2168 = vunpack.c.l.b16 %v2152
        %v2169 = vpack.c.b16 %v2162, %v2161
        %v2170 = vpack.c.b16 %v2164, %v2163
        %v2171 = vpack.c.b16 %v2166, %v2165
        %v2172 = vpack.c.b16 %v2168, %v2167
        %vm2176 = vcmask 490496
        %v2178 = vsel %vm2176, %v2139, 0
        %v2181 = vsel %vm2176, %v2140, 0
        %v2184 = vsel %vm2176, %v2141, 0
        %v2187 = vsel %vm2176, %v2142, 0
        %v2190 = vsel %vm2176, %v2143, 0
        %v2193 = vsel %vm2176, %v2144, 0
        %vm2195 = vcmask 1045504
        %v2197 = vsel %vm2195, %v2172, 0
        %2199 = vmatpush.bf16.msra.mxu0 0
        %2200 = vmatpush.bf16.msra.mxu0 0
        %2201 = vmatpush.bf16.msra.mxu0 0
        %2202 = vmatpush.bf16.msra.mxu0 0
        %2203 = vmatpush.bf16.msra.mxu0 %v2197
        %2204 = vmatpush.bf16.msra.mxu0 %v2171
        %2205 = vmatpush.bf16.msra.mxu0 %v2170
        %2206 = vmatpush.bf16.msra.mxu0 %v2169
        %2207 = vmatmul.bf16.gmra.mxu0 %v2178
        %v2208 = vpop.f32.mrf.mxu0
        %v2209 = vadd.f32 0.0, %v2208
        %v2210 = vpop.f32.mrf.mxu0
        %v2211 = vadd.f32 0.0, %v2210
        %2212 = vmatmul.bf16.gmra.mxu0 %v2181
        %v2213 = vpop.f32.mrf.mxu0
        %v2214 = vadd.f32 0.0, %v2213
        %v2215 = vpop.f32.mrf.mxu0
        %v2216 = vadd.f32 0.0, %v2215
        %2217 = vmatmul.bf16.gmra.mxu0 %v2184
        %v2218 = vpop.f32.mrf.mxu0
        %v2219 = vadd.f32 0.0, %v2218
        %v2220 = vpop.f32.mrf.mxu0
        %v2221 = vadd.f32 0.0, %v2220
        %2222 = vmatmul.bf16.gmra.mxu0 %v2187
        %v2223 = vpop.f32.mrf.mxu0
        %v2224 = vadd.f32 0.0, %v2223
        %v2225 = vpop.f32.mrf.mxu0
        %v2226 = vadd.f32 0.0, %v2225
        %2227 = vmatmul.bf16.gmra.mxu0 %v2190
        %v2228 = vpop.f32.mrf.mxu0
        %v2229 = vadd.f32 0.0, %v2228
        %v2230 = vpop.f32.mrf.mxu0
        %v2231 = vadd.f32 0.0, %v2230
        %2232 = vmatmul.bf16.gmra.mxu0 %v2193
        %v2233 = vpop.f32.mrf.mxu0
        %v2234 = vadd.f32 0.0, %v2233
        %v2235 = vpop.f32.mrf.mxu0
        %2236 = vdwg.mxu0
        %s2237 = scalar_lea.vmem %s4, 32
        %v2238 = vld [vmem:[%s2237] sm:$0xf]
        %v2239 = vld [vmem:[%s2237 + $0x4] sm:$0xf]
        %v2240 = vld [vmem:[%s2237 + $0x8] sm:$0xf]
        %v2241 = vld [vmem:[%s2237 + $0xc] sm:$0xf]
        %v2242 = vld [vmem:[%s2237 + $0x10] sm:$0xf]
        %v2243 = vld [vmem:[%s2237 + $0x14] sm:$0xf]
        %v2244 = vld [vmem:[%s2237 + $0x18] sm:$0xf]
        %v2245 = vld [vmem:[%s2237 + $0x1c] sm:$0x3]
        %v2254 = vunpack.c.l.b16 %v2238
        %v2255 = vunpack.c.l.b16 %v2239
        %v2256 = vunpack.c.l.b16 %v2240
        %v2257 = vunpack.c.l.b16 %v2241
        %v2258 = vunpack.c.l.b16 %v2242
        %v2259 = vunpack.c.l.b16 %v2243
        %v2260 = vunpack.c.l.b16 %v2244
        %v2261 = vunpack.c.l.b16 %v2245
        %v2262 = vpack.c.b16 %v2255, %v2254
        %v2263 = vpack.c.b16 %v2257, %v2256
        %v2264 = vpack.c.b16 %v2259, %v2258
        %v2265 = vpack.c.b16 %v2261, %v2260
        %v2270 = vsel %vm2195, %v2265, 0
        %2272 = vmatpush.bf16.msra.mxu0 0
        %2273 = vmatpush.bf16.msra.mxu0 0
        %2274 = vmatpush.bf16.msra.mxu0 0
        %2275 = vmatpush.bf16.msra.mxu0 0
        %2276 = vmatpush.bf16.msra.mxu0 %v2270
        %2277 = vmatpush.bf16.msra.mxu0 %v2264
        %2278 = vmatpush.bf16.msra.mxu0 %v2263
        %2279 = vmatpush.bf16.msra.mxu0 %v2262
        %2280 = vmatmul.bf16.gmra.mxu0 %v2178
        %v2281 = vpop.f32.mrf.mxu0
        %v2282 = vadd.f32 0.0, %v2281
        %v2283 = vpop.f32.mrf.mxu0
        %v2284 = vadd.f32 0.0, %v2283
        %2285 = vmatmul.bf16.gmra.mxu0 %v2181
        %v2286 = vpop.f32.mrf.mxu0
        %v2287 = vadd.f32 0.0, %v2286
        %v2288 = vpop.f32.mrf.mxu0
        %v2289 = vadd.f32 0.0, %v2288
        %2290 = vmatmul.bf16.gmra.mxu0 %v2184
        %v2291 = vpop.f32.mrf.mxu0
        %v2292 = vadd.f32 0.0, %v2291
        %v2293 = vpop.f32.mrf.mxu0
        %v2294 = vadd.f32 0.0, %v2293
        %2295 = vmatmul.bf16.gmra.mxu0 %v2187
        %v2296 = vpop.f32.mrf.mxu0
        %v2297 = vadd.f32 0.0, %v2296
        %v2298 = vpop.f32.mrf.mxu0
        %v2299 = vadd.f32 0.0, %v2298
        %2300 = vmatmul.bf16.gmra.mxu0 %v2190
        %v2301 = vpop.f32.mrf.mxu0
        %v2302 = vadd.f32 0.0, %v2301
        %v2303 = vpop.f32.mrf.mxu0
        %v2304 = vadd.f32 0.0, %v2303
        %2305 = vmatmul.bf16.gmra.mxu0 %v2193
        %v2306 = vpop.f32.mrf.mxu0
        %v2307 = vadd.f32 0.0, %v2306
        %v2308 = vpop.f32.mrf.mxu0
        %2309 = vdwg.mxu0
        %v2310 = vmax.f32 %v2209, %v2282
        %v2311 = vmax.f32 %v2211, %v2284
        %v2312 = vmax.f32 %v2214, %v2287
        %v2313 = vmax.f32 %v2216, %v2289
        %v2314 = vmax.f32 %v2219, %v2292
        %v2315 = vmax.f32 %v2221, %v2294
        %v2316 = vmax.f32 %v2224, %v2297
        %v2317 = vmax.f32 %v2226, %v2299
        %v2318 = vmax.f32 %v2229, %v2302
        %v2319 = vmax.f32 %v2231, %v2304
        %v2320 = vmax.f32 %v2234, %v2307
        %v2321 = vpack.c.bf16 %v2310, %v2310
        %v2322 = vpack.c.bf16 %v2311, %v2311
        %v2323 = vpack.c.bf16 %v2312, %v2312
        %v2324 = vpack.c.bf16 %v2313, %v2313
        %v2325 = vpack.c.bf16 %v2314, %v2314
        %v2326 = vpack.c.bf16 %v2315, %v2315
        %v2327 = vpack.c.bf16 %v2316, %v2316
        %v2328 = vpack.c.bf16 %v2317, %v2317
        %v2329 = vpack.c.bf16 %v2318, %v2318
        %v2330 = vpack.c.bf16 %v2319, %v2319
        %v2331 = vpack.c.bf16 %v2320, %v2320
        %v2332 = vld [vmem:[#allocation6] sm:$0xf]
        %v2333 = vld [vmem:[#allocation6 + $0x4] sm:$0xf]
        %v2334 = vld [vmem:[#allocation6 + $0x8] sm:$0xf]
        %v2335 = vld [vmem:[#allocation6 + $0xc] sm:$0xf]
        %v2336 = vld [vmem:[#allocation6 + $0x10] sm:$0xf]
        %v2337 = vld [vmem:[#allocation6 + $0x14] sm:$0xf]
        %v2338 = vld [vmem:[#allocation6 + $0x18] sm:$0xf]
        %v2339 = vld [vmem:[#allocation6 + $0x1c] sm:$0xf]
        %v2340 = vld [vmem:[#allocation6 + $0x20] sm:$0xf]
        %v2341 = vld [vmem:[#allocation6 + $0x24] sm:$0xf]
        %v2342 = vld [vmem:[#allocation6 + $0x28] sm:$0xf]
        %v2343 = vld [vmem:[#allocation6 + $0x2c] sm:$0xf]
        %v2344 = vld [vmem:[#allocation6 + $0x30] sm:$0xf]
        %v2345 = vld [vmem:[#allocation6 + $0x34] sm:$0xf]
        %v2346 = vld [vmem:[#allocation6 + $0x38] sm:$0xf]
        %v2347 = vld [vmem:[#allocation6 + $0x3c] sm:$0xf]
        %v2348 = vld [vmem:[#allocation6 + $0x40] sm:$0xf]
        %v2349 = vld [vmem:[#allocation6 + $0x44] sm:$0xf]
        %v2350 = vld [vmem:[#allocation6 + $0x48] sm:$0xf]
        %v2351 = vld [vmem:[#allocation6 + $0x4c] sm:$0xf]
        %s2352 = scalar_lea.vmem [#allocation6], 80
        %v2353 = vld [vmem:[%s2352] sm:$0xf]
        %v2354 = vld [vmem:[%s2352 + $0x4] sm:$0xf]
        %v2355 = vld [vmem:[%s2352 + $0x8] sm:$0xf]
        %v2356 = vld [vmem:[%s2352 + $0xc] sm:$0xf]
        %v2357 = vld [vmem:[%s2352 + $0x10] sm:$0xf]
        %v2358 = vld [vmem:[%s2352 + $0x14] sm:$0xf]
        %v2359 = vld [vmem:[%s2352 + $0x18] sm:$0xf]
        %v2360 = vld [vmem:[%s2352 + $0x1c] sm:$0xf]
        %v2361 = vld [vmem:[%s2352 + $0x20] sm:$0xf]
        %v2362 = vld [vmem:[%s2352 + $0x24] sm:$0xf]
        %v2363 = vld [vmem:[%s2352 + $0x28] sm:$0xf]
        %v2364 = vld [vmem:[%s2352 + $0x2c] sm:$0xf]
        %v2365 = vld [vmem:[%s2352 + $0x30] sm:$0xf]
        %v2366 = vld [vmem:[%s2352 + $0x34] sm:$0xf]
        %v2367 = vld [vmem:[%s2352 + $0x38] sm:$0xf]
        %v2368 = vld [vmem:[%s2352 + $0x3c] sm:$0xf]
        %v2369 = vld [vmem:[%s2352 + $0x40] sm:$0xf]
        %v2370 = vld [vmem:[%s2352 + $0x44] sm:$0xf]
        %v2371 = vld [vmem:[%s2352 + $0x48] sm:$0xf]
        %v2372 = vld [vmem:[%s2352 + $0x4c] sm:$0xf]
        %v2393 = vunpack.c.l.b16 %v2353
        %v2394 = vunpack.c.l.b16 %v2354
        %v2395 = vunpack.c.l.b16 %v2355
        %v2396 = vunpack.c.l.b16 %v2356
        %v2397 = vunpack.c.l.b16 %v2357
        %v2398 = vunpack.c.l.b16 %v2358
        %v2399 = vunpack.c.l.b16 %v2359
        %v2400 = vunpack.c.l.b16 %v2360
        %v2401 = vunpack.c.l.b16 %v2361
        %v2402 = vunpack.c.l.b16 %v2362
        %v2403 = vunpack.c.l.b16 %v2363
        %v2404 = vunpack.c.l.b16 %v2364
        %v2405 = vunpack.c.l.b16 %v2365
        %v2406 = vunpack.c.l.b16 %v2366
        %v2407 = vunpack.c.l.b16 %v2367
        %v2408 = vunpack.c.l.b16 %v2368
        %v2409 = vunpack.c.l.b16 %v2369
        %v2410 = vunpack.c.l.b16 %v2370
        %v2411 = vunpack.c.l.b16 %v2371
        %v2412 = vunpack.c.l.b16 %v2372
        %v2413 = vpack.c.b16 %v2394, %v2393
        %v2414 = vpack.c.b16 %v2396, %v2395
        %v2415 = vpack.c.b16 %v2398, %v2397
        %v2416 = vpack.c.b16 %v2400, %v2399
        %v2417 = vpack.c.b16 %v2402, %v2401
        %v2418 = vpack.c.b16 %v2404, %v2403
        %v2419 = vpack.c.b16 %v2406, %v2405
        %v2420 = vpack.c.b16 %v2408, %v2407
        %v2421 = vpack.c.b16 %v2410, %v2409
        %v2422 = vpack.c.b16 %v2412, %v2411
        %v2434 = vunpack.c.l.b16 %v2321
        %v2435 = vunpack.c.l.b16 %v2322
        %v2436 = vunpack.c.l.b16 %v2323
        %v2437 = vunpack.c.l.b16 %v2324
        %v2438 = vunpack.c.l.b16 %v2325
        %v2439 = vunpack.c.l.b16 %v2326
        %v2440 = vunpack.c.l.b16 %v2327
        %v2441 = vunpack.c.l.b16 %v2328
        %v2442 = vunpack.c.l.b16 %v2329
        %v2443 = vunpack.c.l.b16 %v2330
        %v2444 = vunpack.c.l.b16 %v2331
        %v2445 = vpack.c.b16 %v2435, %v2434
        %v2446 = vpack.c.b16 %v2437, %v2436
        %v2447 = vpack.c.b16 %v2439, %v2438
        %v2448 = vpack.c.b16 %v2441, %v2440
        %v2449 = vpack.c.b16 %v2443, %v2442
        %v2450 = vpack.c.b16 %v2444, %v2444
        %2451 = vrot.lane.b32.xlu0 %v2445, 127
        %v2452 = vpop.permute.xlu0 %2451
        %2453 = vrot.lane.b32.xlu0 %v2446, 127
        %v2454 = vpop.permute.xlu0 %2453
        %2455 = vrot.lane.b32.xlu0 %v2447, 127
        %v2456 = vpop.permute.xlu0 %2455
        %2457 = vrot.lane.b32.xlu0 %v2448, 127
        %v2458 = vpop.permute.xlu0 %2457
        %2459 = vrot.lane.b32.xlu0 %v2449, 127
        %v2460 = vpop.permute.xlu0 %2459
        %2461 = vrot.lane.b32.xlu0 %v2450, 127
        %v2462 = vpop.permute.xlu0 %2461
        %vm2468 = vcmask 687104
        %v2470 = vsel %vm2468, %v2413, 0
        %v2473 = vsel %vm2468, %v2414, 0
        %v2476 = vsel %vm2468, %v2415, 0
        %v2479 = vsel %vm2468, %v2416, 0
        %v2482 = vsel %vm2468, %v2417, 0
        %v2485 = vsel %vm2468, %v2418, 0
        %v2488 = vsel %vm2468, %v2419, 0
        %v2491 = vsel %vm2468, %v2420, 0
        %v2494 = vsel %vm2468, %v2421, 0
        %v2497 = vsel %vm2468, %v2422, 0
        %vm2499 = vcmask 1041408
        %v2501 = vsel %vm2499, %v2462, 0
        %2503 = vmatpush.bf16.msra.mxu0 0
        %2504 = vmatpush.bf16.msra.mxu0 0
        %2505 = vmatpush.bf16.msra.mxu0 %v2501
        %2506 = vmatpush.bf16.msra.mxu0 %v2460
        %2507 = vmatpush.bf16.msra.mxu0 %v2458
        %2508 = vmatpush.bf16.msra.mxu0 %v2456
        %2509 = vmatpush.bf16.msra.mxu0 %v2454
        %2510 = vmatpush.bf16.msra.mxu0 %v2452
        %2511 = vmatmul.bf16.gmra.mxu0 %v2470
        %v2512 = vpop.f32.mrf.mxu0
        %v2513 = vadd.f32 0.0, %v2512
        %v2514 = vpop.f32.mrf.mxu0
        %v2515 = vadd.f32 0.0, %v2514
        %2516 = vmatmul.bf16.gmra.mxu0 %v2473
        %v2517 = vpop.f32.mrf.mxu0
        %v2518 = vadd.f32 0.0, %v2517
        %v2519 = vpop.f32.mrf.mxu0
        %v2520 = vadd.f32 0.0, %v2519
        %2521 = vmatmul.bf16.gmra.mxu0 %v2476
        %v2522 = vpop.f32.mrf.mxu0
        %v2523 = vadd.f32 0.0, %v2522
        %v2524 = vpop.f32.mrf.mxu0
        %v2525 = vadd.f32 0.0, %v2524
        %2526 = vmatmul.bf16.gmra.mxu0 %v2479
        %v2527 = vpop.f32.mrf.mxu0
        %v2528 = vadd.f32 0.0, %v2527
        %v2529 = vpop.f32.mrf.mxu0
        %v2530 = vadd.f32 0.0, %v2529
        %2531 = vmatmul.bf16.gmra.mxu0 %v2482
        %v2532 = vpop.f32.mrf.mxu0
        %v2533 = vadd.f32 0.0, %v2532
        %v2534 = vpop.f32.mrf.mxu0
        %v2535 = vadd.f32 0.0, %v2534
        %2536 = vmatmul.bf16.gmra.mxu0 %v2485
        %v2537 = vpop.f32.mrf.mxu0
        %v2538 = vadd.f32 0.0, %v2537
        %v2539 = vpop.f32.mrf.mxu0
        %v2540 = vadd.f32 0.0, %v2539
        %2541 = vmatmul.bf16.gmra.mxu0 %v2488
        %v2542 = vpop.f32.mrf.mxu0
        %v2543 = vadd.f32 0.0, %v2542
        %v2544 = vpop.f32.mrf.mxu0
        %v2545 = vadd.f32 0.0, %v2544
        %2546 = vmatmul.bf16.gmra.mxu0 %v2491
        %v2547 = vpop.f32.mrf.mxu0
        %v2548 = vadd.f32 0.0, %v2547
        %v2549 = vpop.f32.mrf.mxu0
        %v2550 = vadd.f32 0.0, %v2549
        %2551 = vmatmul.bf16.gmra.mxu0 %v2494
        %v2552 = vpop.f32.mrf.mxu0
        %v2553 = vadd.f32 0.0, %v2552
        %v2554 = vpop.f32.mrf.mxu0
        %v2555 = vadd.f32 0.0, %v2554
        %2556 = vmatmul.bf16.gmra.mxu0 %v2497
        %v2557 = vpop.f32.mrf.mxu0
        %v2558 = vadd.f32 0.0, %v2557
        %v2559 = vpop.f32.mrf.mxu0
        %v2560 = vadd.f32 0.0, %v2559
        %2561 = vdwg.mxu0
        %v2582 = vunpack.c.l.b16 %v2332
        %v2583 = vunpack.c.l.b16 %v2333
        %v2584 = vunpack.c.l.b16 %v2334
        %v2585 = vunpack.c.l.b16 %v2335
        %v2586 = vunpack.c.l.b16 %v2336
        %v2587 = vunpack.c.l.b16 %v2337
        %v2588 = vunpack.c.l.b16 %v2338
        %v2589 = vunpack.c.l.b16 %v2339
        %v2590 = vunpack.c.l.b16 %v2340
        %v2591 = vunpack.c.l.b16 %v2341
        %v2592 = vunpack.c.l.b16 %v2342
        %v2593 = vunpack.c.l.b16 %v2343
        %v2594 = vunpack.c.l.b16 %v2344
        %v2595 = vunpack.c.l.b16 %v2345
        %v2596 = vunpack.c.l.b16 %v2346
        %v2597 = vunpack.c.l.b16 %v2347
        %v2598 = vunpack.c.l.b16 %v2348
        %v2599 = vunpack.c.l.b16 %v2349
        %v2600 = vunpack.c.l.b16 %v2350
        %v2601 = vunpack.c.l.b16 %v2351
        %v2602 = vpack.c.b16 %v2583, %v2582
        %v2603 = vpack.c.b16 %v2585, %v2584
        %v2604 = vpack.c.b16 %v2587, %v2586
        %v2605 = vpack.c.b16 %v2589, %v2588
        %v2606 = vpack.c.b16 %v2591, %v2590
        %v2607 = vpack.c.b16 %v2593, %v2592
        %v2608 = vpack.c.b16 %v2595, %v2594
        %v2609 = vpack.c.b16 %v2597, %v2596
        %v2610 = vpack.c.b16 %v2599, %v2598
        %v2611 = vpack.c.b16 %v2601, %v2600
        %v2618 = vsel %vm2468, %v2602, 0
        %v2621 = vsel %vm2468, %v2603, 0
        %v2624 = vsel %vm2468, %v2604, 0
        %v2627 = vsel %vm2468, %v2605, 0
        %v2630 = vsel %vm2468, %v2606, 0
        %v2633 = vsel %vm2468, %v2607, 0
        %v2636 = vsel %vm2468, %v2608, 0
        %v2639 = vsel %vm2468, %v2609, 0
        %v2642 = vsel %vm2468, %v2610, 0
        %v2645 = vsel %vm2468, %v2611, 0
        %v2648 = vsel %vm2499, %v2450, 0
        %2650 = vmatpush.bf16.msra.mxu0 0
        %2651 = vmatpush.bf16.msra.mxu0 0
        %2652 = vmatpush.bf16.msra.mxu0 %v2648
        %2653 = vmatpush.bf16.msra.mxu0 %v2449
        %2654 = vmatpush.bf16.msra.mxu0 %v2448
        %2655 = vmatpush.bf16.msra.mxu0 %v2447
        %2656 = vmatpush.bf16.msra.mxu0 %v2446
        %2657 = vmatpush.bf16.msra.mxu0 %v2445
        %2658 = vmatmul.bf16.gmra.mxu0 %v2618
        %v2659 = vpop.f32.mrf.mxu0
        %v2660 = vadd.f32 %v2513, %v2659
        %v2661 = vpop.f32.mrf.mxu0
        %v2662 = vadd.f32 %v2515, %v2661
        %2663 = vmatmul.bf16.gmra.mxu0 %v2621
        %v2664 = vpop.f32.mrf.mxu0
        %v2665 = vadd.f32 %v2518, %v2664
        %v2666 = vpop.f32.mrf.mxu0
        %v2667 = vadd.f32 %v2520, %v2666
        %2668 = vmatmul.bf16.gmra.mxu0 %v2624
        %v2669 = vpop.f32.mrf.mxu0
        %v2670 = vadd.f32 %v2523, %v2669
        %v2671 = vpop.f32.mrf.mxu0
        %v2672 = vadd.f32 %v2525, %v2671
        %2673 = vmatmul.bf16.gmra.mxu0 %v2627
        %v2674 = vpop.f32.mrf.mxu0
        %v2675 = vadd.f32 %v2528, %v2674
        %v2676 = vpop.f32.mrf.mxu0
        %v2677 = vadd.f32 %v2530, %v2676
        %2678 = vmatmul.bf16.gmra.mxu0 %v2630
        %v2679 = vpop.f32.mrf.mxu0
        %v2680 = vadd.f32 %v2533, %v2679
        %v2681 = vpop.f32.mrf.mxu0
        %v2682 = vadd.f32 %v2535, %v2681
        %2683 = vmatmul.bf16.gmra.mxu0 %v2633
        %v2684 = vpop.f32.mrf.mxu0
        %v2685 = vadd.f32 %v2538, %v2684
        %v2686 = vpop.f32.mrf.mxu0
        %v2687 = vadd.f32 %v2540, %v2686
        %2688 = vmatmul.bf16.gmra.mxu0 %v2636
        %v2689 = vpop.f32.mrf.mxu0
        %v2690 = vadd.f32 %v2543, %v2689
        %v2691 = vpop.f32.mrf.mxu0
        %v2692 = vadd.f32 %v2545, %v2691
        %2693 = vmatmul.bf16.gmra.mxu0 %v2639
        %v2694 = vpop.f32.mrf.mxu0
        %v2695 = vadd.f32 %v2548, %v2694
        %v2696 = vpop.f32.mrf.mxu0
        %v2697 = vadd.f32 %v2550, %v2696
        %2698 = vmatmul.bf16.gmra.mxu0 %v2642
        %v2699 = vpop.f32.mrf.mxu0
        %v2700 = vadd.f32 %v2553, %v2699
        %v2701 = vpop.f32.mrf.mxu0
        %v2702 = vadd.f32 %v2555, %v2701
        %2703 = vmatmul.bf16.gmra.mxu0 %v2645
        %v2704 = vpop.f32.mrf.mxu0
        %v2705 = vadd.f32 %v2558, %v2704
        %v2706 = vpop.f32.mrf.mxu0
        %v2707 = vadd.f32 %v2560, %v2706
        %2708 = vdwg.mxu0
        %s2709 = scalar_lea.vmem [#allocation6], 160
        %v2710 = vld [vmem:[%s2709] sm:$0xf]
        %v2711 = vld [vmem:[%s2709 + $0x4] sm:$0xf]
        %v2712 = vld [vmem:[%s2709 + $0x8] sm:$0xf]
        %v2713 = vld [vmem:[%s2709 + $0xc] sm:$0xf]
        %v2714 = vld [vmem:[%s2709 + $0x10] sm:$0xf]
        %v2715 = vld [vmem:[%s2709 + $0x14] sm:$0xf]
        %v2716 = vld [vmem:[%s2709 + $0x18] sm:$0xf]
        %v2717 = vld [vmem:[%s2709 + $0x1c] sm:$0xf]
        %v2718 = vld [vmem:[%s2709 + $0x20] sm:$0xf]
        %v2719 = vld [vmem:[%s2709 + $0x24] sm:$0xf]
        %v2720 = vld [vmem:[%s2709 + $0x28] sm:$0xf]
        %v2721 = vld [vmem:[%s2709 + $0x2c] sm:$0xf]
        %v2722 = vld [vmem:[%s2709 + $0x30] sm:$0xf]
        %v2723 = vld [vmem:[%s2709 + $0x34] sm:$0xf]
        %v2724 = vld [vmem:[%s2709 + $0x38] sm:$0xf]
        %v2725 = vld [vmem:[%s2709 + $0x3c] sm:$0xf]
        %v2726 = vld [vmem:[%s2709 + $0x40] sm:$0xf]
        %v2727 = vld [vmem:[%s2709 + $0x44] sm:$0xf]
        %v2728 = vld [vmem:[%s2709 + $0x48] sm:$0xf]
        %v2729 = vld [vmem:[%s2709 + $0x4c] sm:$0xf]
        %v2750 = vunpack.c.l.b16 %v2710
        %v2751 = vunpack.c.l.b16 %v2711
        %v2752 = vunpack.c.l.b16 %v2712
        %v2753 = vunpack.c.l.b16 %v2713
        %v2754 = vunpack.c.l.b16 %v2714
        %v2755 = vunpack.c.l.b16 %v2715
        %v2756 = vunpack.c.l.b16 %v2716
        %v2757 = vunpack.c.l.b16 %v2717
        %v2758 = vunpack.c.l.b16 %v2718
        %v2759 = vunpack.c.l.b16 %v2719
        %v2760 = vunpack.c.l.b16 %v2720
        %v2761 = vunpack.c.l.b16 %v2721
        %v2762 = vunpack.c.l.b16 %v2722
        %v2763 = vunpack.c.l.b16 %v2723
        %v2764 = vunpack.c.l.b16 %v2724
        %v2765 = vunpack.c.l.b16 %v2725
        %v2766 = vunpack.c.l.b16 %v2726
        %v2767 = vunpack.c.l.b16 %v2727
        %v2768 = vunpack.c.l.b16 %v2728
        %v2769 = vunpack.c.l.b16 %v2729
        %v2770 = vpack.c.b16 %v2751, %v2750
        %v2771 = vpack.c.b16 %v2753, %v2752
        %v2772 = vpack.c.b16 %v2755, %v2754
        %v2773 = vpack.c.b16 %v2757, %v2756
        %v2774 = vpack.c.b16 %v2759, %v2758
        %v2775 = vpack.c.b16 %v2761, %v2760
        %v2776 = vpack.c.b16 %v2763, %v2762
        %v2777 = vpack.c.b16 %v2765, %v2764
        %v2778 = vpack.c.b16 %v2767, %v2766
        %v2779 = vpack.c.b16 %v2769, %v2768
        %2780 = vrot.lane.b32.xlu0 %v2445, 126
        %v2781 = vpop.permute.xlu0 %2780
        %2782 = vrot.lane.b32.xlu0 %v2446, 126
        %v2783 = vpop.permute.xlu0 %2782
        %2784 = vrot.lane.b32.xlu0 %v2447, 126
        %v2785 = vpop.permute.xlu0 %2784
        %2786 = vrot.lane.b32.xlu0 %v2448, 126
        %v2787 = vpop.permute.xlu0 %2786
        %2788 = vrot.lane.b32.xlu0 %v2449, 126
        %v2789 = vpop.permute.xlu0 %2788
        %2790 = vrot.lane.b32.xlu0 %v2450, 126
        %v2791 = vpop.permute.xlu0 %2790
        %v2798 = vsel %vm2468, %v2770, 0
        %v2801 = vsel %vm2468, %v2771, 0
        %v2804 = vsel %vm2468, %v2772, 0
        %v2807 = vsel %vm2468, %v2773, 0
        %v2810 = vsel %vm2468, %v2774, 0
        %v2813 = vsel %vm2468, %v2775, 0
        %v2816 = vsel %vm2468, %v2776, 0
        %v2819 = vsel %vm2468, %v2777, 0
        %v2822 = vsel %vm2468, %v2778, 0
        %v2825 = vsel %vm2468, %v2779, 0
        %v2828 = vsel %vm2499, %v2791, 0
        %2830 = vmatpush.bf16.msra.mxu0 0
        %2831 = vmatpush.bf16.msra.mxu0 0
        %2832 = vmatpush.bf16.msra.mxu0 %v2828
        %2833 = vmatpush.bf16.msra.mxu0 %v2789
        %2834 = vmatpush.bf16.msra.mxu0 %v2787
        %2835 = vmatpush.bf16.msra.mxu0 %v2785
        %2836 = vmatpush.bf16.msra.mxu0 %v2783
        %2837 = vmatpush.bf16.msra.mxu0 %v2781
        %2838 = vmatmul.bf16.gmra.mxu0 %v2798
        %v2839 = vpop.f32.mrf.mxu0
        %v2840 = vadd.f32 0.0, %v2839
        %v2841 = vpop.f32.mrf.mxu0
        %v2842 = vadd.f32 0.0, %v2841
        %2843 = vmatmul.bf16.gmra.mxu0 %v2801
        %v2844 = vpop.f32.mrf.mxu0
        %v2845 = vadd.f32 0.0, %v2844
        %v2846 = vpop.f32.mrf.mxu0
        %v2847 = vadd.f32 0.0, %v2846
        %2848 = vmatmul.bf16.gmra.mxu0 %v2804
        %v2849 = vpop.f32.mrf.mxu0
        %v2850 = vadd.f32 0.0, %v2849
        %v2851 = vpop.f32.mrf.mxu0
        %v2852 = vadd.f32 0.0, %v2851
        %2853 = vmatmul.bf16.gmra.mxu0 %v2807
        %v2854 = vpop.f32.mrf.mxu0
        %v2855 = vadd.f32 0.0, %v2854
        %v2856 = vpop.f32.mrf.mxu0
        %v2857 = vadd.f32 0.0, %v2856
        %2858 = vmatmul.bf16.gmra.mxu0 %v2810
        %v2859 = vpop.f32.mrf.mxu0
        %v2860 = vadd.f32 0.0, %v2859
        %v2861 = vpop.f32.mrf.mxu0
        %v2862 = vadd.f32 0.0, %v2861
        %2863 = vmatmul.bf16.gmra.mxu0 %v2813
        %v2864 = vpop.f32.mrf.mxu0
        %v2865 = vadd.f32 0.0, %v2864
        %v2866 = vpop.f32.mrf.mxu0
        %v2867 = vadd.f32 0.0, %v2866
        %2868 = vmatmul.bf16.gmra.mxu0 %v2816
        %v2869 = vpop.f32.mrf.mxu0
        %v2870 = vadd.f32 0.0, %v2869
        %v2871 = vpop.f32.mrf.mxu0
        %v2872 = vadd.f32 0.0, %v2871
        %2873 = vmatmul.bf16.gmra.mxu0 %v2819
        %v2874 = vpop.f32.mrf.mxu0
        %v2875 = vadd.f32 0.0, %v2874
        %v2876 = vpop.f32.mrf.mxu0
        %v2877 = vadd.f32 0.0, %v2876
        %2878 = vmatmul.bf16.gmra.mxu0 %v2822
        %v2879 = vpop.f32.mrf.mxu0
        %v2880 = vadd.f32 0.0, %v2879
        %v2881 = vpop.f32.mrf.mxu0
        %v2882 = vadd.f32 0.0, %v2881
        %2883 = vmatmul.bf16.gmra.mxu0 %v2825
        %v2884 = vpop.f32.mrf.mxu0
        %v2885 = vadd.f32 0.0, %v2884
        %v2886 = vpop.f32.mrf.mxu0
        %v2887 = vadd.f32 0.0, %v2886
        %2888 = vdwg.mxu0
        %v2889 = vadd.f32 %v2660, %v2840
        %v2890 = vadd.f32 %v2662, %v2842
        %v2891 = vadd.f32 %v2665, %v2845
        %v2892 = vadd.f32 %v2667, %v2847
        %v2893 = vadd.f32 %v2670, %v2850
        %v2894 = vadd.f32 %v2672, %v2852
        %v2895 = vadd.f32 %v2675, %v2855
        %v2896 = vadd.f32 %v2677, %v2857
        %v2897 = vadd.f32 %v2680, %v2860
        %v2898 = vadd.f32 %v2682, %v2862
        %v2899 = vadd.f32 %v2685, %v2865
        %v2900 = vadd.f32 %v2687, %v2867
        %v2901 = vadd.f32 %v2690, %v2870
        %v2902 = vadd.f32 %v2692, %v2872
        %v2903 = vadd.f32 %v2695, %v2875
        %v2904 = vadd.f32 %v2697, %v2877
        %v2905 = vadd.f32 %v2700, %v2880
        %v2906 = vadd.f32 %v2702, %v2882
        %v2907 = vadd.f32 %v2705, %v2885
        %v2908 = vadd.f32 %v2707, %v2887
        %s2909 = scalar_lea.vmem [#allocation6], 240
        %v2910 = vld [vmem:[%s2909] sm:$0xf]
        %v2911 = vld [vmem:[%s2909 + $0x4] sm:$0xf]
        %v2912 = vld [vmem:[%s2909 + $0x8] sm:$0xf]
        %v2913 = vld [vmem:[%s2909 + $0xc] sm:$0xf]
        %v2914 = vld [vmem:[%s2909 + $0x10] sm:$0xf]
        %v2915 = vld [vmem:[%s2909 + $0x14] sm:$0xf]
        %v2916 = vld [vmem:[%s2909 + $0x18] sm:$0xf]
        %v2917 = vld [vmem:[%s2909 + $0x1c] sm:$0xf]
        %v2918 = vld [vmem:[%s2909 + $0x20] sm:$0xf]
        %v2919 = vld [vmem:[%s2909 + $0x24] sm:$0xf]
        %v2920 = vld [vmem:[%s2909 + $0x28] sm:$0xf]
        %v2921 = vld [vmem:[%s2909 + $0x2c] sm:$0xf]
        %v2922 = vld [vmem:[%s2909 + $0x30] sm:$0xf]
        %v2923 = vld [vmem:[%s2909 + $0x34] sm:$0xf]
        %v2924 = vld [vmem:[%s2909 + $0x38] sm:$0xf]
        %v2925 = vld [vmem:[%s2909 + $0x3c] sm:$0xf]
        %v2926 = vld [vmem:[%s2909 + $0x40] sm:$0xf]
        %v2927 = vld [vmem:[%s2909 + $0x44] sm:$0xf]
        %v2928 = vld [vmem:[%s2909 + $0x48] sm:$0xf]
        %v2929 = vld [vmem:[%s2909 + $0x4c] sm:$0xf]
        %v2950 = vunpack.c.l.b16 %v2910
        %v2951 = vunpack.c.l.b16 %v2911
        %v2952 = vunpack.c.l.b16 %v2912
        %v2953 = vunpack.c.l.b16 %v2913
        %v2954 = vunpack.c.l.b16 %v2914
        %v2955 = vunpack.c.l.b16 %v2915
        %v2956 = vunpack.c.l.b16 %v2916
        %v2957 = vunpack.c.l.b16 %v2917
        %v2958 = vunpack.c.l.b16 %v2918
        %v2959 = vunpack.c.l.b16 %v2919
        %v2960 = vunpack.c.l.b16 %v2920
        %v2961 = vunpack.c.l.b16 %v2921
        %v2962 = vunpack.c.l.b16 %v2922
        %v2963 = vunpack.c.l.b16 %v2923
        %v2964 = vunpack.c.l.b16 %v2924
        %v2965 = vunpack.c.l.b16 %v2925
        %v2966 = vunpack.c.l.b16 %v2926
        %v2967 = vunpack.c.l.b16 %v2927
        %v2968 = vunpack.c.l.b16 %v2928
        %v2969 = vunpack.c.l.b16 %v2929
        %v2970 = vpack.c.b16 %v2951, %v2950
        %v2971 = vpack.c.b16 %v2953, %v2952
        %v2972 = vpack.c.b16 %v2955, %v2954
        %v2973 = vpack.c.b16 %v2957, %v2956
        %v2974 = vpack.c.b16 %v2959, %v2958
        %v2975 = vpack.c.b16 %v2961, %v2960
        %v2976 = vpack.c.b16 %v2963, %v2962
        %v2977 = vpack.c.b16 %v2965, %v2964
        %v2978 = vpack.c.b16 %v2967, %v2966
        %v2979 = vpack.c.b16 %v2969, %v2968
        %2980 = vrot.lane.b32.xlu0 %v2445, 125
        %v2981 = vpop.permute.xlu0 %2980
        %2982 = vrot.lane.b32.xlu0 %v2446, 125
        %v2983 = vpop.permute.xlu0 %2982
        %2984 = vrot.lane.b32.xlu0 %v2447, 125
        %v2985 = vpop.permute.xlu0 %2984
        %2986 = vrot.lane.b32.xlu0 %v2448, 125
        %v2987 = vpop.permute.xlu0 %2986
        %2988 = vrot.lane.b32.xlu0 %v2449, 125
        %v2989 = vpop.permute.xlu0 %2988
        %2990 = vrot.lane.b32.xlu0 %v2450, 125
        %v2991 = vpop.permute.xlu0 %2990
        %v2998 = vsel %vm2468, %v2970, 0
        %v3001 = vsel %vm2468, %v2971, 0
        %v3004 = vsel %vm2468, %v2972, 0
        %v3007 = vsel %vm2468, %v2973, 0
        %v3010 = vsel %vm2468, %v2974, 0
        %v3013 = vsel %vm2468, %v2975, 0
        %v3016 = vsel %vm2468, %v2976, 0
        %v3019 = vsel %vm2468, %v2977, 0
        %v3022 = vsel %vm2468, %v2978, 0
        %v3025 = vsel %vm2468, %v2979, 0
        %v3028 = vsel %vm2499, %v2991, 0
        %3030 = vmatpush.bf16.msra.mxu0 0
        %3031 = vmatpush.bf16.msra.mxu0 0
        %3032 = vmatpush.bf16.msra.mxu0 %v3028
        %3033 = vmatpush.bf16.msra.mxu0 %v2989
        %3034 = vmatpush.bf16.msra.mxu0 %v2987
        %3035 = vmatpush.bf16.msra.mxu0 %v2985
        %3036 = vmatpush.bf16.msra.mxu0 %v2983
        %3037 = vmatpush.bf16.msra.mxu0 %v2981
        %3038 = vmatmul.bf16.gmra.mxu0 %v2998
        %v3039 = vpop.f32.mrf.mxu0
        %v3040 = vadd.f32 0.0, %v3039
        %v3041 = vpop.f32.mrf.mxu0
        %v3042 = vadd.f32 0.0, %v3041
        %3043 = vmatmul.bf16.gmra.mxu0 %v3001
        %v3044 = vpop.f32.mrf.mxu0
        %v3045 = vadd.f32 0.0, %v3044
        %v3046 = vpop.f32.mrf.mxu0
        %v3047 = vadd.f32 0.0, %v3046
        %3048 = vmatmul.bf16.gmra.mxu0 %v3004
        %v3049 = vpop.f32.mrf.mxu0
        %v3050 = vadd.f32 0.0, %v3049
        %v3051 = vpop.f32.mrf.mxu0
        %v3052 = vadd.f32 0.0, %v3051
        %3053 = vmatmul.bf16.gmra.mxu0 %v3007
        %v3054 = vpop.f32.mrf.mxu0
        %v3055 = vadd.f32 0.0, %v3054
        %v3056 = vpop.f32.mrf.mxu0
        %v3057 = vadd.f32 0.0, %v3056
        %3058 = vmatmul.bf16.gmra.mxu0 %v3010
        %v3059 = vpop.f32.mrf.mxu0
        %v3060 = vadd.f32 0.0, %v3059
        %v3061 = vpop.f32.mrf.mxu0
        %v3062 = vadd.f32 0.0, %v3061
        %3063 = vmatmul.bf16.gmra.mxu0 %v3013
        %v3064 = vpop.f32.mrf.mxu0
        %v3065 = vadd.f32 0.0, %v3064
        %v3066 = vpop.f32.mrf.mxu0
        %v3067 = vadd.f32 0.0, %v3066
        %3068 = vmatmul.bf16.gmra.mxu0 %v3016
        %v3069 = vpop.f32.mrf.mxu0
        %v3070 = vadd.f32 0.0, %v3069
        %v3071 = vpop.f32.mrf.mxu0
        %v3072 = vadd.f32 0.0, %v3071
        %3073 = vmatmul.bf16.gmra.mxu0 %v3019
        %v3074 = vpop.f32.mrf.mxu0
        %v3075 = vadd.f32 0.0, %v3074
        %v3076 = vpop.f32.mrf.mxu0
        %v3077 = vadd.f32 0.0, %v3076
        %3078 = vmatmul.bf16.gmra.mxu0 %v3022
        %v3079 = vpop.f32.mrf.mxu0
        %v3080 = vadd.f32 0.0, %v3079
        %v3081 = vpop.f32.mrf.mxu0
        %v3082 = vadd.f32 0.0, %v3081
        %3083 = vmatmul.bf16.gmra.mxu0 %v3025
        %v3084 = vpop.f32.mrf.mxu0
        %v3085 = vadd.f32 0.0, %v3084
        %v3086 = vpop.f32.mrf.mxu0
        %v3087 = vadd.f32 0.0, %v3086
        %3088 = vdwg.mxu0
        %v3089 = vadd.f32 %v2889, %v3040
        %v3090 = vadd.f32 %v2890, %v3042
        %v3091 = vadd.f32 %v2891, %v3045
        %v3092 = vadd.f32 %v2892, %v3047
        %v3093 = vadd.f32 %v2893, %v3050
        %v3094 = vadd.f32 %v2894, %v3052
        %v3095 = vadd.f32 %v2895, %v3055
        %v3096 = vadd.f32 %v2896, %v3057
        %v3097 = vadd.f32 %v2897, %v3060
        %v3098 = vadd.f32 %v2898, %v3062
        %v3099 = vadd.f32 %v2899, %v3065
        %v3100 = vadd.f32 %v2900, %v3067
        %v3101 = vadd.f32 %v2901, %v3070
        %v3102 = vadd.f32 %v2902, %v3072
        %v3103 = vadd.f32 %v2903, %v3075
        %v3104 = vadd.f32 %v2904, %v3077
        %v3105 = vadd.f32 %v2905, %v3080
        %v3106 = vadd.f32 %v2906, %v3082
        %v3107 = vadd.f32 %v2907, %v3085
        %v3108 = vadd.f32 %v2908, %v3087
        %s3109 = scalar_lea.vmem [#allocation6], 320
        %v3110 = vld [vmem:[%s3109] sm:$0xf]
        %v3111 = vld [vmem:[%s3109 + $0x4] sm:$0xf]
        %v3112 = vld [vmem:[%s3109 + $0x8] sm:$0xf]
        %v3113 = vld [vmem:[%s3109 + $0xc] sm:$0xf]
        %v3114 = vld [vmem:[%s3109 + $0x10] sm:$0xf]
        %v3115 = vld [vmem:[%s3109 + $0x14] sm:$0xf]
        %v3116 = vld [vmem:[%s3109 + $0x18] sm:$0xf]
        %v3117 = vld [vmem:[%s3109 + $0x1c] sm:$0xf]
        %v3118 = vld [vmem:[%s3109 + $0x20] sm:$0xf]
        %v3119 = vld [vmem:[%s3109 + $0x24] sm:$0xf]
        %v3120 = vld [vmem:[%s3109 + $0x28] sm:$0xf]
        %v3121 = vld [vmem:[%s3109 + $0x2c] sm:$0xf]
        %v3122 = vld [vmem:[%s3109 + $0x30] sm:$0xf]
        %v3123 = vld [vmem:[%s3109 + $0x34] sm:$0xf]
        %v3124 = vld [vmem:[%s3109 + $0x38] sm:$0xf]
        %v3125 = vld [vmem:[%s3109 + $0x3c] sm:$0xf]
        %v3126 = vld [vmem:[%s3109 + $0x40] sm:$0xf]
        %v3127 = vld [vmem:[%s3109 + $0x44] sm:$0xf]
        %v3128 = vld [vmem:[%s3109 + $0x48] sm:$0xf]
        %v3129 = vld [vmem:[%s3109 + $0x4c] sm:$0xf]
        %v3150 = vunpack.c.l.b16 %v3110
        %v3151 = vunpack.c.l.b16 %v3111
        %v3152 = vunpack.c.l.b16 %v3112
        %v3153 = vunpack.c.l.b16 %v3113
        %v3154 = vunpack.c.l.b16 %v3114
        %v3155 = vunpack.c.l.b16 %v3115
        %v3156 = vunpack.c.l.b16 %v3116
        %v3157 = vunpack.c.l.b16 %v3117
        %v3158 = vunpack.c.l.b16 %v3118
        %v3159 = vunpack.c.l.b16 %v3119
        %v3160 = vunpack.c.l.b16 %v3120
        %v3161 = vunpack.c.l.b16 %v3121
        %v3162 = vunpack.c.l.b16 %v3122
        %v3163 = vunpack.c.l.b16 %v3123
        %v3164 = vunpack.c.l.b16 %v3124
        %v3165 = vunpack.c.l.b16 %v3125
        %v3166 = vunpack.c.l.b16 %v3126
        %v3167 = vunpack.c.l.b16 %v3127
        %v3168 = vunpack.c.l.b16 %v3128
        %v3169 = vunpack.c.l.b16 %v3129
        %v3170 = vpack.c.b16 %v3151, %v3150
        %v3171 = vpack.c.b16 %v3153, %v3152
        %v3172 = vpack.c.b16 %v3155, %v3154
        %v3173 = vpack.c.b16 %v3157, %v3156
        %v3174 = vpack.c.b16 %v3159, %v3158
        %v3175 = vpack.c.b16 %v3161, %v3160
        %v3176 = vpack.c.b16 %v3163, %v3162
        %v3177 = vpack.c.b16 %v3165, %v3164
        %v3178 = vpack.c.b16 %v3167, %v3166
        %v3179 = vpack.c.b16 %v3169, %v3168
        %3180 = vrot.lane.b32.xlu0 %v2445, 124
        %v3181 = vpop.permute.xlu0 %3180
        %3182 = vrot.lane.b32.xlu0 %v2446, 124
        %v3183 = vpop.permute.xlu0 %3182
        %3184 = vrot.lane.b32.xlu0 %v2447, 124
        %v3185 = vpop.permute.xlu0 %3184
        %3186 = vrot.lane.b32.xlu0 %v2448, 124
        %v3187 = vpop.permute.xlu0 %3186
        %3188 = vrot.lane.b32.xlu0 %v2449, 124
        %v3189 = vpop.permute.xlu0 %3188
        %3190 = vrot.lane.b32.xlu0 %v2450, 124
        %v3191 = vpop.permute.xlu0 %3190
        %v3198 = vsel %vm2468, %v3170, 0
        %v3201 = vsel %vm2468, %v3171, 0
        %v3204 = vsel %vm2468, %v3172, 0
        %v3207 = vsel %vm2468, %v3173, 0
        %v3210 = vsel %vm2468, %v3174, 0
        %v3213 = vsel %vm2468, %v3175, 0
        %v3216 = vsel %vm2468, %v3176, 0
        %v3219 = vsel %vm2468, %v3177, 0
        %v3222 = vsel %vm2468, %v3178, 0
        %v3225 = vsel %vm2468, %v3179, 0
        %v3228 = vsel %vm2499, %v3191, 0
        %3230 = vmatpush.bf16.msra.mxu0 0
        %3231 = vmatpush.bf16.msra.mxu0 0
        %3232 = vmatpush.bf16.msra.mxu0 %v3228
        %3233 = vmatpush.bf16.msra.mxu0 %v3189
        %3234 = vmatpush.bf16.msra.mxu0 %v3187
        %3235 = vmatpush.bf16.msra.mxu0 %v3185
        %3236 = vmatpush.bf16.msra.mxu0 %v3183
        %3237 = vmatpush.bf16.msra.mxu0 %v3181
        %3238 = vmatmul.bf16.gmra.mxu0 %v3198
        %v3239 = vpop.f32.mrf.mxu0
        %v3240 = vadd.f32 0.0, %v3239
        %v3241 = vpop.f32.mrf.mxu0
        %v3242 = vadd.f32 0.0, %v3241
        %3243 = vmatmul.bf16.gmra.mxu0 %v3201
        %v3244 = vpop.f32.mrf.mxu0
        %v3245 = vadd.f32 0.0, %v3244
        %v3246 = vpop.f32.mrf.mxu0
        %v3247 = vadd.f32 0.0, %v3246
        %3248 = vmatmul.bf16.gmra.mxu0 %v3204
        %v3249 = vpop.f32.mrf.mxu0
        %v3250 = vadd.f32 0.0, %v3249
        %v3251 = vpop.f32.mrf.mxu0
        %v3252 = vadd.f32 0.0, %v3251
        %3253 = vmatmul.bf16.gmra.mxu0 %v3207
        %v3254 = vpop.f32.mrf.mxu0
        %v3255 = vadd.f32 0.0, %v3254
        %v3256 = vpop.f32.mrf.mxu0
        %v3257 = vadd.f32 0.0, %v3256
        %3258 = vmatmul.bf16.gmra.mxu0 %v3210
        %v3259 = vpop.f32.mrf.mxu0
        %v3260 = vadd.f32 0.0, %v3259
        %v3261 = vpop.f32.mrf.mxu0
        %v3262 = vadd.f32 0.0, %v3261
        %3263 = vmatmul.bf16.gmra.mxu0 %v3213
        %v3264 = vpop.f32.mrf.mxu0
        %v3265 = vadd.f32 0.0, %v3264
        %v3266 = vpop.f32.mrf.mxu0
        %v3267 = vadd.f32 0.0, %v3266
        %3268 = vmatmul.bf16.gmra.mxu0 %v3216
        %v3269 = vpop.f32.mrf.mxu0
        %v3270 = vadd.f32 0.0, %v3269
        %v3271 = vpop.f32.mrf.mxu0
        %v3272 = vadd.f32 0.0, %v3271
        %3273 = vmatmul.bf16.gmra.mxu0 %v3219
        %v3274 = vpop.f32.mrf.mxu0
        %v3275 = vadd.f32 0.0, %v3274
        %v3276 = vpop.f32.mrf.mxu0
        %v3277 = vadd.f32 0.0, %v3276
        %3278 = vmatmul.bf16.gmra.mxu0 %v3222
        %v3279 = vpop.f32.mrf.mxu0
        %v3280 = vadd.f32 0.0, %v3279
        %v3281 = vpop.f32.mrf.mxu0
        %v3282 = vadd.f32 0.0, %v3281
        %3283 = vmatmul.bf16.gmra.mxu0 %v3225
        %v3284 = vpop.f32.mrf.mxu0
        %v3285 = vadd.f32 0.0, %v3284
        %v3286 = vpop.f32.mrf.mxu0
        %v3287 = vadd.f32 0.0, %v3286
        %3288 = vdwg.mxu0
        %v3289 = vadd.f32 %v3089, %v3240
        %v3290 = vadd.f32 %v3090, %v3242
        %v3291 = vadd.f32 %v3091, %v3245
        %v3292 = vadd.f32 %v3092, %v3247
        %v3293 = vadd.f32 %v3093, %v3250
        %v3294 = vadd.f32 %v3094, %v3252
        %v3295 = vadd.f32 %v3095, %v3255
        %v3296 = vadd.f32 %v3096, %v3257
        %v3297 = vadd.f32 %v3097, %v3260
        %v3298 = vadd.f32 %v3098, %v3262
        %v3299 = vadd.f32 %v3099, %v3265
        %v3300 = vadd.f32 %v3100, %v3267
        %v3301 = vadd.f32 %v3101, %v3270
        %v3302 = vadd.f32 %v3102, %v3272
        %v3303 = vadd.f32 %v3103, %v3275
        %v3304 = vadd.f32 %v3104, %v3277
        %v3305 = vadd.f32 %v3105, %v3280
        %v3306 = vadd.f32 %v3106, %v3282
        %v3307 = vadd.f32 %v3107, %v3285
        %v3308 = vadd.f32 %v3108, %v3287
        %v3309 = vld [vmem:[%s6] sm:$0xff]
        %v3310 = vld [vmem:[%s6 + $0x8] sm:$0xff]
        %v3311 = vld [vmem:[%s6 + $0x10] sm:$0xff]
        %v3312 = vld [vmem:[%s6 + $0x18] sm:$0xff]
        %v3313 = vld [vmem:[%s6 + $0x20] sm:$0xff]
        %v3314 = vld [vmem:[%s6 + $0x28] sm:$0xff]
        %v3315 = vld [vmem:[%s6 + $0x30] sm:$0xff]
        %v3316 = vld [vmem:[%s6 + $0x38] sm:$0xff]
        %v3317 = vld [vmem:[%s6 + $0x40] sm:$0xff]
        %v3318 = vld [vmem:[%s6 + $0x48] sm:$0xff]
        %v3319 = vld [vmem:[%s6 + $0x50] sm:$0xff]
        %v3320 = vld [vmem:[%s6 + $0x58] sm:$0xff]
        %v3321 = vld [vmem:[%s6 + $0x60] sm:$0xff]
        %v3322 = vld [vmem:[%s6 + $0x68] sm:$0xff]
        %v3323 = vld [vmem:[%s6 + $0x70] sm:$0xff]
        %v3324 = vld [vmem:[%s6 + $0x78] sm:$0xff]
        %v3325 = vld [vmem:[%s6 + $0x80] sm:$0xff]
        %v3326 = vld [vmem:[%s6 + $0x88] sm:$0xff]
        %v3327 = vld [vmem:[%s6 + $0x90] sm:$0xff]
        %v3328 = vld [vmem:[%s6 + $0x98] sm:$0xff]
        %3330 = vset.pattern.permute.xlu0 0
        %3331 = vperm.xlu0 %3330, %v3309
        %v3332 = vpop.permute.xlu0 %3331
        %3335 = vset.pattern.permute.xlu0 0
        %3336 = vperm.xlu0 %3335, %v3310
        %v3337 = vpop.permute.xlu0 %3336
        %3340 = vset.pattern.permute.xlu0 0
        %3341 = vperm.xlu0 %3340, %v3311
        %v3342 = vpop.permute.xlu0 %3341
        %3345 = vset.pattern.permute.xlu0 0
        %3346 = vperm.xlu0 %3345, %v3312
        %v3347 = vpop.permute.xlu0 %3346
        %3350 = vset.pattern.permute.xlu0 0
        %3351 = vperm.xlu0 %3350, %v3313
        %v3352 = vpop.permute.xlu0 %3351
        %3355 = vset.pattern.permute.xlu0 0
        %3356 = vperm.xlu0 %3355, %v3314
        %v3357 = vpop.permute.xlu0 %3356
        %3360 = vset.pattern.permute.xlu0 0
        %3361 = vperm.xlu0 %3360, %v3315
        %v3362 = vpop.permute.xlu0 %3361
        %3365 = vset.pattern.permute.xlu0 0
        %3366 = vperm.xlu0 %3365, %v3316
        %v3367 = vpop.permute.xlu0 %3366
        %3370 = vset.pattern.permute.xlu0 0
        %3371 = vperm.xlu0 %3370, %v3317
        %v3372 = vpop.permute.xlu0 %3371
        %3375 = vset.pattern.permute.xlu0 0
        %3376 = vperm.xlu0 %3375, %v3318
        %v3377 = vpop.permute.xlu0 %3376
        %3380 = vset.pattern.permute.xlu0 0
        %3381 = vperm.xlu0 %3380, %v3319
        %v3382 = vpop.permute.xlu0 %3381
        %3385 = vset.pattern.permute.xlu0 0
        %3386 = vperm.xlu0 %3385, %v3320
        %v3387 = vpop.permute.xlu0 %3386
        %3390 = vset.pattern.permute.xlu0 0
        %3391 = vperm.xlu0 %3390, %v3321
        %v3392 = vpop.permute.xlu0 %3391
        %3395 = vset.pattern.permute.xlu0 0
        %3396 = vperm.xlu0 %3395, %v3322
        %v3397 = vpop.permute.xlu0 %3396
        %3400 = vset.pattern.permute.xlu0 0
        %3401 = vperm.xlu0 %3400, %v3323
        %v3402 = vpop.permute.xlu0 %3401
        %3405 = vset.pattern.permute.xlu0 0
        %3406 = vperm.xlu0 %3405, %v3324
        %v3407 = vpop.permute.xlu0 %3406
        %3410 = vset.pattern.permute.xlu0 0
        %3411 = vperm.xlu0 %3410, %v3325
        %v3412 = vpop.permute.xlu0 %3411
        %3415 = vset.pattern.permute.xlu0 0
        %3416 = vperm.xlu0 %3415, %v3326
        %v3417 = vpop.permute.xlu0 %3416
        %3420 = vset.pattern.permute.xlu0 0
        %3421 = vperm.xlu0 %3420, %v3327
        %v3422 = vpop.permute.xlu0 %3421
        %3425 = vset.pattern.permute.xlu0 0
        %3426 = vperm.xlu0 %3425, %v3328
        %v3427 = vpop.permute.xlu0 %3426
        %v3429 = vadd.f32 %v3289, %v3332
        %v3430 = vadd.f32 %v3290, %v3337
        %v3431 = vadd.f32 %v3291, %v3342
        %v3432 = vadd.f32 %v3292, %v3347
        %v3433 = vadd.f32 %v3293, %v3352
        %v3434 = vadd.f32 %v3294, %v3357
        %v3435 = vadd.f32 %v3295, %v3362
        %v3436 = vadd.f32 %v3296, %v3367
        %v3437 = vadd.f32 %v3297, %v3372
        %v3438 = vadd.f32 %v3298, %v3377
        %v3439 = vadd.f32 %v3299, %v3382
        %v3440 = vadd.f32 %v3300, %v3387
        %v3441 = vadd.f32 %v3301, %v3392
        %v3442 = vadd.f32 %v3302, %v3397
        %v3443 = vadd.f32 %v3303, %v3402
        %v3444 = vadd.f32 %v3304, %v3407
        %v3445 = vadd.f32 %v3305, %v3412
        %v3446 = vadd.f32 %v3306, %v3417
        %v3447 = vadd.f32 %v3307, %v3422
        %v3448 = vadd.f32 %v3308, %v3427
        %v3449 = vmax.f32 %v3429, 0.0
        %v3450 = vmax.f32 %v3430, 0.0
        %v3451 = vmax.f32 %v3431, 0.0
        %v3452 = vmax.f32 %v3432, 0.0
        %v3453 = vmax.f32 %v3433, 0.0
        %v3454 = vmax.f32 %v3434, 0.0
        %v3455 = vmax.f32 %v3435, 0.0
        %v3456 = vmax.f32 %v3436, 0.0
        %v3457 = vmax.f32 %v3437, 0.0
        %v3458 = vmax.f32 %v3438, 0.0
        %v3459 = vmax.f32 %v3439, 0.0
        %v3460 = vmax.f32 %v3440, 0.0
        %v3461 = vmax.f32 %v3441, 0.0
        %v3462 = vmax.f32 %v3442, 0.0
        %v3463 = vmax.f32 %v3443, 0.0
        %v3464 = vmax.f32 %v3444, 0.0
        %v3465 = vmax.f32 %v3445, 0.0
        %v3466 = vmax.f32 %v3446, 0.0
        %v3467 = vmax.f32 %v3447, 0.0
        %v3468 = vmax.f32 %v3448, 0.0
        %v3469 = vpack.c.bf16 %v3450, %v3449
        %v3470 = vpack.c.bf16 %v3452, %v3451
        %v3471 = vpack.c.bf16 %v3454, %v3453
        %v3472 = vpack.c.bf16 %v3456, %v3455
        %v3473 = vpack.c.bf16 %v3458, %v3457
        %v3474 = vpack.c.bf16 %v3460, %v3459
        %v3475 = vpack.c.bf16 %v3462, %v3461
        %v3476 = vpack.c.bf16 %v3464, %v3463
        %v3477 = vpack.c.bf16 %v3466, %v3465
        %v3478 = vpack.c.bf16 %v3468, %v3467
        %v3479 = vld [vmem:[%s7] sm:$0xff]
        %v3480 = vld [vmem:[%s7 + $0x8] sm:$0xff]
        %v3481 = vld [vmem:[%s7 + $0x10] sm:$0xff]
        %v3482 = vld [vmem:[%s7 + $0x18] sm:$0xff]
        %v3483 = vld [vmem:[%s7 + $0x20] sm:$0xff]
        %v3484 = vld [vmem:[%s7 + $0x28] sm:$0xff]
        %v3485 = vld [vmem:[%s7 + $0x30] sm:$0xff]
        %v3486 = vld [vmem:[%s7 + $0x38] sm:$0xff]
        %v3487 = vld [vmem:[%s7 + $0x40] sm:$0xff]
        %v3488 = vld [vmem:[%s7 + $0x48] sm:$0xff]
        %v3499 = vunpack.c.l.b16 %v3479
        %v3500 = vunpack.c.h.b16 %v3479
        %v3501 = vunpack.c.l.b16 %v3480
        %v3502 = vunpack.c.h.b16 %v3480
        %v3503 = vunpack.c.l.b16 %v3481
        %v3504 = vunpack.c.h.b16 %v3481
        %v3505 = vunpack.c.l.b16 %v3482
        %v3506 = vunpack.c.h.b16 %v3482
        %v3507 = vunpack.c.l.b16 %v3483
        %v3508 = vunpack.c.h.b16 %v3483
        %v3509 = vunpack.c.l.b16 %v3484
        %v3510 = vunpack.c.h.b16 %v3484
        %v3511 = vunpack.c.l.b16 %v3485
        %v3512 = vunpack.c.h.b16 %v3485
        %v3513 = vunpack.c.l.b16 %v3486
        %v3514 = vunpack.c.h.b16 %v3486
        %v3515 = vunpack.c.l.b16 %v3487
        %v3516 = vunpack.c.h.b16 %v3487
        %v3517 = vunpack.c.l.b16 %v3488
        %v3518 = vunpack.c.h.b16 %v3488
        %v3519 = vpack.c.b16 %v3501, %v3499
        %v3520 = vpack.c.b16 %v3502, %v3500
        %v3521 = vpack.c.b16 %v3505, %v3503
        %v3522 = vpack.c.b16 %v3506, %v3504
        %v3523 = vpack.c.b16 %v3509, %v3507
        %v3524 = vpack.c.b16 %v3510, %v3508
        %v3525 = vpack.c.b16 %v3513, %v3511
        %v3526 = vpack.c.b16 %v3514, %v3512
        %v3527 = vpack.c.b16 %v3517, %v3515
        %v3528 = vpack.c.b16 %v3518, %v3516
        %vm3534 = vcmask 261120
        %v3536 = vsel %vm3534, %v3520, 0
        %v3539 = vsel %vm3534, %v3522, 0
        %v3542 = vsel %vm3534, %v3524, 0
        %v3545 = vsel %vm3534, %v3526, 0
        %v3548 = vsel %vm3534, %v3528, 0
        %3550 = vmatpush.bf16.msra.mxu0 %v3476
        %3551 = vmatpush.bf16.msra.mxu0 %v3475
        %3552 = vmatpush.bf16.msra.mxu0 %v3474
        %3553 = vmatpush.bf16.msra.mxu0 %v3473
        %3554 = vmatpush.bf16.msra.mxu0 %v3472
        %3555 = vmatpush.bf16.msra.mxu0 %v3471
        %3556 = vmatpush.bf16.msra.mxu0 %v3470
        %3557 = vmatpush.bf16.msra.mxu0 %v3469
        %3558 = vmatmul.bf16.gmra.mxu0 %v3519
        %v3559 = vpop.f32.mrf.mxu0
        %v3560 = vadd.f32 0.0, %v3559
        %v3561 = vpop.f32.mrf.mxu0
        %v3562 = vadd.f32 0.0, %v3561
        %3563 = vmatmul.bf16.gmra.mxu0 %v3521
        %v3564 = vpop.f32.mrf.mxu0
        %v3565 = vadd.f32 0.0, %v3564
        %v3566 = vpop.f32.mrf.mxu0
        %v3567 = vadd.f32 0.0, %v3566
        %3568 = vmatmul.bf16.gmra.mxu0 %v3523
        %v3569 = vpop.f32.mrf.mxu0
        %v3570 = vadd.f32 0.0, %v3569
        %v3571 = vpop.f32.mrf.mxu0
        %v3572 = vadd.f32 0.0, %v3571
        %3573 = vmatmul.bf16.gmra.mxu0 %v3525
        %v3574 = vpop.f32.mrf.mxu0
        %v3575 = vadd.f32 0.0, %v3574
        %v3576 = vpop.f32.mrf.mxu0
        %v3577 = vadd.f32 0.0, %v3576
        %3578 = vmatmul.bf16.gmra.mxu0 %v3527
        %v3579 = vpop.f32.mrf.mxu0
        %v3580 = vadd.f32 0.0, %v3579
        %v3581 = vpop.f32.mrf.mxu0
        %v3582 = vadd.f32 0.0, %v3581
        %3583 = vdwg.mxu0
        %3584 = vmatpush.bf16.msra.mxu0 0
        %3585 = vmatpush.bf16.msra.mxu0 0
        %3586 = vmatpush.bf16.msra.mxu0 0
        %3587 = vmatpush.bf16.msra.mxu0 0
        %3588 = vmatpush.bf16.msra.mxu0 0
        %3589 = vmatpush.bf16.msra.mxu0 0
        %3590 = vmatpush.bf16.msra.mxu0 %v3478
        %3591 = vmatpush.bf16.msra.mxu0 %v3477
        %3592 = vmatmul.bf16.gmra.mxu0 %v3536
        %v3593 = vpop.f32.mrf.mxu0
        %v3594 = vadd.f32 %v3560, %v3593
        %v3595 = vpop.f32.mrf.mxu0
        %v3596 = vadd.f32 %v3562, %v3595
        %3597 = vmatmul.bf16.gmra.mxu0 %v3539
        %v3598 = vpop.f32.mrf.mxu0
        %v3599 = vadd.f32 %v3565, %v3598
        %v3600 = vpop.f32.mrf.mxu0
        %v3601 = vadd.f32 %v3567, %v3600
        %3602 = vmatmul.bf16.gmra.mxu0 %v3542
        %v3603 = vpop.f32.mrf.mxu0
        %v3604 = vadd.f32 %v3570, %v3603
        %v3605 = vpop.f32.mrf.mxu0
        %v3606 = vadd.f32 %v3572, %v3605
        %3607 = vmatmul.bf16.gmra.mxu0 %v3545
        %v3608 = vpop.f32.mrf.mxu0
        %v3609 = vadd.f32 %v3575, %v3608
        %v3610 = vpop.f32.mrf.mxu0
        %v3611 = vadd.f32 %v3577, %v3610
        %3612 = vmatmul.bf16.gmra.mxu0 %v3548
        %v3613 = vpop.f32.mrf.mxu0
        %v3614 = vadd.f32 %v3580, %v3613
        %v3615 = vpop.f32.mrf.mxu0
        %v3616 = vadd.f32 %v3582, %v3615
        %3617 = vdwg.mxu0
        %s3618 = scalar_lea.vmem %s7, 80
        %v3619 = vld [vmem:[%s3618] sm:$0xff]
        %v3620 = vld [vmem:[%s3618 + $0x8] sm:$0xff]
        %v3621 = vld [vmem:[%s3618 + $0x10] sm:$0xff]
        %v3622 = vld [vmem:[%s3618 + $0x18] sm:$0xff]
        %v3623 = vld [vmem:[%s3618 + $0x20] sm:$0xff]
        %v3624 = vld [vmem:[%s3618 + $0x28] sm:$0xff]
        %v3625 = vld [vmem:[%s3618 + $0x30] sm:$0xff]
        %v3626 = vld [vmem:[%s3618 + $0x38] sm:$0xff]
        %v3627 = vld [vmem:[%s3618 + $0x40] sm:$0xff]
        %v3628 = vld [vmem:[%s3618 + $0x48] sm:$0xff]
        %v3639 = vunpack.c.l.b16 %v3619
        %v3640 = vunpack.c.h.b16 %v3619
        %v3641 = vunpack.c.l.b16 %v3620
        %v3642 = vunpack.c.h.b16 %v3620
        %v3643 = vunpack.c.l.b16 %v3621
        %v3644 = vunpack.c.h.b16 %v3621
        %v3645 = vunpack.c.l.b16 %v3622
        %v3646 = vunpack.c.h.b16 %v3622
        %v3647 = vunpack.c.l.b16 %v3623
        %v3648 = vunpack.c.h.b16 %v3623
        %v3649 = vunpack.c.l.b16 %v3624
        %v3650 = vunpack.c.h.b16 %v3624
        %v3651 = vunpack.c.l.b16 %v3625
        %v3652 = vunpack.c.h.b16 %v3625
        %v3653 = vunpack.c.l.b16 %v3626
        %v3654 = vunpack.c.h.b16 %v3626
        %v3655 = vunpack.c.l.b16 %v3627
        %v3656 = vunpack.c.h.b16 %v3627
        %v3657 = vunpack.c.l.b16 %v3628
        %v3658 = vunpack.c.h.b16 %v3628
        %v3659 = vpack.c.b16 %v3641, %v3639
        %v3660 = vpack.c.b16 %v3642, %v3640
        %v3661 = vpack.c.b16 %v3645, %v3643
        %v3662 = vpack.c.b16 %v3646, %v3644
        %v3663 = vpack.c.b16 %v3649, %v3647
        %v3664 = vpack.c.b16 %v3650, %v3648
        %v3665 = vpack.c.b16 %v3653, %v3651
        %v3666 = vpack.c.b16 %v3654, %v3652
        %v3667 = vpack.c.b16 %v3657, %v3655
        %v3668 = vpack.c.b16 %v3658, %v3656
        %v3675 = vsel %vm3534, %v3660, 0
        %v3678 = vsel %vm3534, %v3662, 0
        %v3681 = vsel %vm3534, %v3664, 0
        %v3684 = vsel %vm3534, %v3666, 0
        %v3687 = vsel %vm3534, %v3668, 0
        %3689 = vmatpush.bf16.msra.mxu0 %v3476
        %3690 = vmatpush.bf16.msra.mxu0 %v3475
        %3691 = vmatpush.bf16.msra.mxu0 %v3474
        %3692 = vmatpush.bf16.msra.mxu0 %v3473
        %3693 = vmatpush.bf16.msra.mxu0 %v3472
        %3694 = vmatpush.bf16.msra.mxu0 %v3471
        %3695 = vmatpush.bf16.msra.mxu0 %v3470
        %3696 = vmatpush.bf16.msra.mxu0 %v3469
        %3697 = vmatmul.bf16.gmra.mxu0 %v3659
        %v3698 = vpop.f32.mrf.mxu0
        %v3699 = vadd.f32 0.0, %v3698
        %v3700 = vpop.f32.mrf.mxu0
        %v3701 = vadd.f32 0.0, %v3700
        %3702 = vmatmul.bf16.gmra.mxu0 %v3661
        %v3703 = vpop.f32.mrf.mxu0
        %v3704 = vadd.f32 0.0, %v3703
        %v3705 = vpop.f32.mrf.mxu0
        %v3706 = vadd.f32 0.0, %v3705
        %3707 = vmatmul.bf16.gmra.mxu0 %v3663
        %v3708 = vpop.f32.mrf.mxu0
        %v3709 = vadd.f32 0.0, %v3708
        %v3710 = vpop.f32.mrf.mxu0
        %v3711 = vadd.f32 0.0, %v3710
        %3712 = vmatmul.bf16.gmra.mxu0 %v3665
        %v3713 = vpop.f32.mrf.mxu0
        %v3714 = vadd.f32 0.0, %v3713
        %v3715 = vpop.f32.mrf.mxu0
        %v3716 = vadd.f32 0.0, %v3715
        %3717 = vmatmul.bf16.gmra.mxu0 %v3667
        %v3718 = vpop.f32.mrf.mxu0
        %v3719 = vadd.f32 0.0, %v3718
        %v3720 = vpop.f32.mrf.mxu0
        %v3721 = vadd.f32 0.0, %v3720
        %3722 = vdwg.mxu0
        %3723 = vmatpush.bf16.msra.mxu0 0
        %3724 = vmatpush.bf16.msra.mxu0 0
        %3725 = vmatpush.bf16.msra.mxu0 0
        %3726 = vmatpush.bf16.msra.mxu0 0
        %3727 = vmatpush.bf16.msra.mxu0 0
        %3728 = vmatpush.bf16.msra.mxu0 0
        %3729 = vmatpush.bf16.msra.mxu0 %v3478
        %3730 = vmatpush.bf16.msra.mxu0 %v3477
        %3731 = vmatmul.bf16.gmra.mxu0 %v3675
        %v3732 = vpop.f32.mrf.mxu0
        %v3733 = vadd.f32 %v3699, %v3732
        %v3734 = vpop.f32.mrf.mxu0
        %v3735 = vadd.f32 %v3701, %v3734
        %3736 = vmatmul.bf16.gmra.mxu0 %v3678
        %v3737 = vpop.f32.mrf.mxu0
        %v3738 = vadd.f32 %v3704, %v3737
        %v3739 = vpop.f32.mrf.mxu0
        %v3740 = vadd.f32 %v3706, %v3739
        %3741 = vmatmul.bf16.gmra.mxu0 %v3681
        %v3742 = vpop.f32.mrf.mxu0
        %v3743 = vadd.f32 %v3709, %v3742
        %v3744 = vpop.f32.mrf.mxu0
        %v3745 = vadd.f32 %v3711, %v3744
        %3746 = vmatmul.bf16.gmra.mxu0 %v3684
        %v3747 = vpop.f32.mrf.mxu0
        %v3748 = vadd.f32 %v3714, %v3747
        %v3749 = vpop.f32.mrf.mxu0
        %v3750 = vadd.f32 %v3716, %v3749
        %3751 = vmatmul.bf16.gmra.mxu0 %v3687
        %v3752 = vpop.f32.mrf.mxu0
        %v3753 = vadd.f32 %v3719, %v3752
        %v3754 = vpop.f32.mrf.mxu0
        %v3755 = vadd.f32 %v3721, %v3754
        %3756 = vdwg.mxu0
        %v3757 = vmax.f32 %v3594, %v3733
        %v3758 = vmax.f32 %v3596, %v3735
        %v3759 = vmax.f32 %v3599, %v3738
        %v3760 = vmax.f32 %v3601, %v3740
        %v3761 = vmax.f32 %v3604, %v3743
        %v3762 = vmax.f32 %v3606, %v3745
        %v3763 = vmax.f32 %v3609, %v3748
        %v3764 = vmax.f32 %v3611, %v3750
        %v3765 = vmax.f32 %v3614, %v3753
        %v3766 = vmax.f32 %v3616, %v3755
        %v3767 = vpack.c.bf16 %v3758, %v3757
        %v3768 = vpack.c.bf16 %v3760, %v3759
        %v3769 = vpack.c.bf16 %v3762, %v3761
        %v3770 = vpack.c.bf16 %v3764, %v3763
        %v3771 = vpack.c.bf16 %v3766, %v3765
        %v3772 = vld [vmem:[%s8] sm:$0xf]
        %v3773 = vld [vmem:[%s8 + $0x4] sm:$0xf]
        %v3774 = vld [vmem:[%s8 + $0x8] sm:$0xf]
        %v3775 = vld [vmem:[%s8 + $0xc] sm:$0x1]
        %v3780 = vunpack.c.l.b16 %v3772
        %v3781 = vunpack.c.l.b16 %v3773
        %v3782 = vunpack.c.l.b16 %v3774
        %v3783 = vunpack.c.l.b16 %v3775
        %v3784 = vpack.c.b16 %v3781, %v3780
        %v3785 = vpack.c.b16 %v3783, %v3782
        %vm3787 = vcmask 211968
        %v3789 = vsel %vm3787, %v3767, 0
        %v3792 = vsel %vm3787, %v3768, 0
        %v3795 = vsel %vm3787, %v3769, 0
        %v3798 = vsel %vm3787, %v3770, 0
        %v3801 = vsel %vm3787, %v3771, 0
        %vm3803 = vcmask 1044480
        %v3805 = vsel %vm3803, %v3785, 0
        %3807 = vmatpush.bf16.msra.mxu0 0
        %3808 = vmatpush.bf16.msra.mxu0 0
        %3809 = vmatpush.bf16.msra.mxu0 0
        %3810 = vmatpush.bf16.msra.mxu0 0
        %3811 = vmatpush.bf16.msra.mxu0 0
        %3812 = vmatpush.bf16.msra.mxu0 0
        %3813 = vmatpush.bf16.msra.mxu0 %v3805
        %3814 = vmatpush.bf16.msra.mxu0 %v3784
        %3815 = vmatmul.bf16.gmra.mxu0 %v3789
        %v3816 = vpop.f32.mrf.mxu0
        %v3817 = vadd.f32 0.0, %v3816
        %v3818 = vpop.f32.mrf.mxu0
        %v3819 = vadd.f32 0.0, %v3818
        %3820 = vmatmul.bf16.gmra.mxu0 %v3792
        %v3821 = vpop.f32.mrf.mxu0
        %v3822 = vadd.f32 0.0, %v3821
        %v3823 = vpop.f32.mrf.mxu0
        %v3824 = vadd.f32 0.0, %v3823
        %3825 = vmatmul.bf16.gmra.mxu0 %v3795
        %v3826 = vpop.f32.mrf.mxu0
        %v3827 = vadd.f32 0.0, %v3826
        %v3828 = vpop.f32.mrf.mxu0
        %v3829 = vadd.f32 0.0, %v3828
        %3830 = vmatmul.bf16.gmra.mxu0 %v3798
        %v3831 = vpop.f32.mrf.mxu0
        %v3832 = vadd.f32 0.0, %v3831
        %v3833 = vpop.f32.mrf.mxu0
        %v3834 = vadd.f32 0.0, %v3833
        %3835 = vmatmul.bf16.gmra.mxu0 %v3801
        %v3836 = vpop.f32.mrf.mxu0
        %v3837 = vadd.f32 0.0, %v3836
        %v3838 = vpop.f32.mrf.mxu0
        %v3839 = vadd.f32 0.0, %v3838
        %3840 = vdwg.mxu0
        %s3841 = scalar_lea.vmem %s8, 16
        %v3842 = vld [vmem:[%s3841] sm:$0xf]
        %v3843 = vld [vmem:[%s3841 + $0x4] sm:$0xf]
        %v3844 = vld [vmem:[%s3841 + $0x8] sm:$0xf]
        %v3845 = vld [vmem:[%s3841 + $0xc] sm:$0x1]
        %v3850 = vunpack.c.l.b16 %v3842
        %v3851 = vunpack.c.l.b16 %v3843
        %v3852 = vunpack.c.l.b16 %v3844
        %v3853 = vunpack.c.l.b16 %v3845
        %v3854 = vpack.c.b16 %v3851, %v3850
        %v3855 = vpack.c.b16 %v3853, %v3852
        %v3858 = vsel %vm3803, %v3855, 0
        %3860 = vmatpush.bf16.msra.mxu0 0
        %3861 = vmatpush.bf16.msra.mxu0 0
        %3862 = vmatpush.bf16.msra.mxu0 0
        %3863 = vmatpush.bf16.msra.mxu0 0
        %3864 = vmatpush.bf16.msra.mxu0 0
        %3865 = vmatpush.bf16.msra.mxu0 0
        %3866 = vmatpush.bf16.msra.mxu0 %v3858
        %3867 = vmatpush.bf16.msra.mxu0 %v3854
        %3868 = vmatmul.bf16.gmra.mxu0 %v3789
        %v3869 = vpop.f32.mrf.mxu0
        %v3870 = vadd.f32 0.0, %v3869
        %v3871 = vpop.f32.mrf.mxu0
        %v3872 = vadd.f32 0.0, %v3871
        %3873 = vmatmul.bf16.gmra.mxu0 %v3792
        %v3874 = vpop.f32.mrf.mxu0
        %v3875 = vadd.f32 0.0, %v3874
        %v3876 = vpop.f32.mrf.mxu0
        %v3877 = vadd.f32 0.0, %v3876
        %3878 = vmatmul.bf16.gmra.mxu0 %v3795
        %v3879 = vpop.f32.mrf.mxu0
        %v3880 = vadd.f32 0.0, %v3879
        %v3881 = vpop.f32.mrf.mxu0
        %v3882 = vadd.f32 0.0, %v3881
        %3883 = vmatmul.bf16.gmra.mxu0 %v3798
        %v3884 = vpop.f32.mrf.mxu0
        %v3885 = vadd.f32 0.0, %v3884
        %v3886 = vpop.f32.mrf.mxu0
        %v3887 = vadd.f32 0.0, %v3886
        %3888 = vmatmul.bf16.gmra.mxu0 %v3801
        %v3889 = vpop.f32.mrf.mxu0
        %v3890 = vadd.f32 0.0, %v3889
        %v3891 = vpop.f32.mrf.mxu0
        %v3892 = vadd.f32 0.0, %v3891
        %3893 = vdwg.mxu0
        %v3894 = vmax.f32 %v3817, %v3870
        %v3895 = vmax.f32 %v3819, %v3872
        %v3896 = vmax.f32 %v3822, %v3875
        %v3897 = vmax.f32 %v3824, %v3877
        %v3898 = vmax.f32 %v3827, %v3880
        %v3899 = vmax.f32 %v3829, %v3882
        %v3900 = vmax.f32 %v3832, %v3885
        %v3901 = vmax.f32 %v3834, %v3887
        %v3902 = vmax.f32 %v3837, %v3890
        %v3903 = vmax.f32 %v3839, %v3892
        %v3904 = vlaneseq
        %vm3905 = vcmp.ge.s32.totalorder %v3904, 0
        %vm3906 = vcmp.lt.s32.totalorder %v3904, 13
        %vm3907 = vmand %vm3905, %vm3906
        %3908 = vst.msk [vmem:[#allocation2] sm:$0x1] %vm3907, %v3894
        %3910 = vst [vmem:[#allocation1] sm:$0xff] %v3894
        %s3911 = scalar_lea.vmem [#allocation1], 1
        %v3912 = vld [vmem:[%s3911] ss:$9 sm:$0xff]
        %3913 = vrot.lane.b32.xlu0 %v3912, 13
        %v3914 = vpop.permute.xlu0 %3913
        %vm3916 = vcmp.ge.s32.totalorder %v3904, 13
        %vm3917 = vcmp.lt.s32.totalorder %v3904, 26
        %vm3918 = vmand %vm3916, %vm3917
        %3919 = vst.msk [vmem:[#allocation2] sm:$0x1] %vm3918, %v3914
        %3920 = vst [vmem:[#allocation1] sm:$0xff] %v3894
        %s3921 = scalar_lea.vmem [#allocation1], 2
        %v3922 = vld [vmem:[%s3921] ss:$9 sm:$0xff]
        %3923 = vrot.lane.b32.xlu0 %v3922, 26
        %v3924 = vpop.permute.xlu0 %3923
        %vm3926 = vcmp.ge.s32.totalorder %v3904, 26
        %vm3927 = vcmp.lt.s32.totalorder %v3904, 39
        %vm3928 = vmand %vm3926, %vm3927
        %3929 = vst.msk [vmem:[#allocation2] sm:$0x1] %vm3928, %v3924
        %3930 = vst [vmem:[#allocation1] sm:$0xff] %v3894
        %s3931 = scalar_lea.vmem [#allocation1], 3
        %v3932 = vld [vmem:[%s3931] ss:$9 sm:$0xff]
        %3933 = vrot.lane.b32.xlu0 %v3932, 39
        %v3934 = vpop.permute.xlu0 %3933
        %vm3936 = vcmp.ge.s32.totalorder %v3904, 39
        %vm3937 = vcmp.lt.s32.totalorder %v3904, 52
        %vm3938 = vmand %vm3936, %vm3937
        %3939 = vst.msk [vmem:[#allocation2] sm:$0x1] %vm3938, %v3934
        %3940 = vst [vmem:[#allocation1] sm:$0xff] %v3894
        %s3941 = scalar_lea.vmem [#allocation1], 4
        %v3942 = vld [vmem:[%s3941] ss:$9 sm:$0xff]
        %3943 = vrot.lane.b32.xlu0 %v3942, 52
        %v3944 = vpop.permute.xlu0 %3943
        %vm3946 = vcmp.ge.s32.totalorder %v3904, 52
        %vm3947 = vcmp.lt.s32.totalorder %v3904, 65
        %vm3948 = vmand %vm3946, %vm3947
        %3949 = vst.msk [vmem:[#allocation2] sm:$0x1] %vm3948, %v3944
        %3950 = vst [vmem:[#allocation1] sm:$0xff] %v3894
        %s3951 = scalar_lea.vmem [#allocation1], 5
        %v3952 = vld [vmem:[%s3951] ss:$9 sm:$0xff]
        %3953 = vrot.lane.b32.xlu0 %v3952, 65
        %v3954 = vpop.permute.xlu0 %3953
        %vm3956 = vcmp.ge.s32.totalorder %v3904, 65
        %vm3957 = vcmp.lt.s32.totalorder %v3904, 78
        %vm3958 = vmand %vm3956, %vm3957
        %3959 = vst.msk [vmem:[#allocation2] sm:$0x1] %vm3958, %v3954
        %3960 = vst [vmem:[#allocation1] sm:$0xff] %v3894
        %s3961 = scalar_lea.vmem [#allocation1], 6
        %v3962 = vld [vmem:[%s3961] ss:$9 sm:$0xff]
        %3963 = vrot.lane.b32.xlu0 %v3962, 78
        %v3964 = vpop.permute.xlu0 %3963
        %vm3966 = vcmp.ge.s32.totalorder %v3904, 78
        %vm3967 = vcmp.lt.s32.totalorder %v3904, 91
        %vm3968 = vmand %vm3966, %vm3967
        %3969 = vst.msk [vmem:[#allocation2] sm:$0x1] %vm3968, %v3964
        %3970 = vst [vmem:[#allocation1] sm:$0xff] %v3894
        %s3971 = scalar_lea.vmem [#allocation1], 7
        %v3972 = vld [vmem:[%s3971] ss:$9 sm:$0xff]
        %3973 = vrot.lane.b32.xlu0 %v3972, 91
        %v3974 = vpop.permute.xlu0 %3973
        %vm3976 = vcmp.ge.s32.totalorder %v3904, 91
        %vm3977 = vcmp.lt.s32.totalorder %v3904, 104
        %vm3978 = vmand %vm3976, %vm3977
        %3979 = vst.msk [vmem:[#allocation2] sm:$0x1] %vm3978, %v3974
        %3981 = vrot.lane.b32.xlu0 %v3895, 104
        %v3982 = vpop.permute.xlu0 %3981
        %vm3984 = vcmp.ge.s32.totalorder %v3904, 104
        %vm3985 = vcmp.lt.s32.totalorder %v3904, 117
        %vm3986 = vmand %vm3984, %vm3985
        %3987 = vst.msk [vmem:[#allocation2] sm:$0x1] %vm3986, %v3982
        %3988 = vst [vmem:[#allocation1] sm:$0xff] %v3895
        %s3989 = scalar_lea.vmem [#allocation1], 1
        %v3990 = vld [vmem:[%s3989] ss:$9 sm:$0xff]
        %3991 = vrot.lane.b32.xlu0 %v3990, 117
        %v3992 = vpop.permute.xlu0 %3991
        %v3993 = vrot.slane %v3992, 7
        %vm3994 = vcmask 957440
        %v3995 = vsel %vm3994, %v3993, %v3992
        %vm3997 = vcmp.ge.s32.totalorder %v3904, 117
        %vm3998 = vcmp.lt.s32.totalorder %v3904, 130
        %vm3999 = vmand %vm3997, %vm3998
        %4000 = vst.msk [vmem:[#allocation2] sm:$0x3] %vm3999, %v3995
        %4001 = vst [vmem:[#allocation1] sm:$0xff] %v3895
        %s4002 = scalar_lea.vmem [#allocation1], 2
        %v4003 = vld [vmem:[%s4002] ss:$9 sm:$0xff]
        %4004 = vrot.lane.b32.xlu0 %v4003, 2
        %v4005 = vpop.permute.xlu0 %4004
        %vm4007 = vcmp.ge.s32.totalorder %v3904, 2
        %vm4008 = vcmp.lt.s32.totalorder %v3904, 15
        %vm4009 = vmand %vm4007, %vm4008
        %4010 = vst.msk [vmem:[#allocation2 + $0x1] sm:$0x1] %vm4009, %v4005
        %4011 = vst [vmem:[#allocation1] sm:$0xff] %v3895
        %s4012 = scalar_lea.vmem [#allocation1], 3
        %v4013 = vld [vmem:[%s4012] ss:$9 sm:$0xff]
        %4014 = vrot.lane.b32.xlu0 %v4013, 15
        %v4015 = vpop.permute.xlu0 %4014
        %vm4017 = vcmp.ge.s32.totalorder %v3904, 15
        %vm4018 = vcmp.lt.s32.totalorder %v3904, 28
        %vm4019 = vmand %vm4017, %vm4018
        %4020 = vst.msk [vmem:[#allocation2 + $0x1] sm:$0x1] %vm4019, %v4015
        %4021 = vst [vmem:[#allocation1] sm:$0xff] %v3895
        %s4022 = scalar_lea.vmem [#allocation1], 4
        %v4023 = vld [vmem:[%s4022] ss:$9 sm:$0xff]
        %4024 = vrot.lane.b32.xlu0 %v4023, 28
        %v4025 = vpop.permute.xlu0 %4024
        %vm4027 = vcmp.ge.s32.totalorder %v3904, 28
        %vm4028 = vcmp.lt.s32.totalorder %v3904, 41
        %vm4029 = vmand %vm4027, %vm4028
        %4030 = vst.msk [vmem:[#allocation2 + $0x1] sm:$0x1] %vm4029, %v4025
        %4031 = vst [vmem:[#allocation1] sm:$0xff] %v3895
        %s4032 = scalar_lea.vmem [#allocation1], 5
        %v4033 = vld [vmem:[%s4032] ss:$9 sm:$0xff]
        %4034 = vrot.lane.b32.xlu0 %v4033, 41
        %v4035 = vpop.permute.xlu0 %4034
        %vm4037 = vcmp.ge.s32.totalorder %v3904, 41
        %vm4038 = vcmp.lt.s32.totalorder %v3904, 54
        %vm4039 = vmand %vm4037, %vm4038
        %4040 = vst.msk [vmem:[#allocation2 + $0x1] sm:$0x1] %vm4039, %v4035
        %4041 = vst [vmem:[#allocation1] sm:$0xff] %v3895
        %s4042 = scalar_lea.vmem [#allocation1], 6
        %v4043 = vld [vmem:[%s4042] ss:$9 sm:$0xff]
        %4044 = vrot.lane.b32.xlu0 %v4043, 54
        %v4045 = vpop.permute.xlu0 %4044
        %vm4047 = vcmp.ge.s32.totalorder %v3904, 54
        %vm4048 = vcmp.lt.s32.totalorder %v3904, 67
        %vm4049 = vmand %vm4047, %vm4048
        %4050 = vst.msk [vmem:[#allocation2 + $0x1] sm:$0x1] %vm4049, %v4045
        %4051 = vst [vmem:[#allocation1] sm:$0xff] %v3895
        %s4052 = scalar_lea.vmem [#allocation1], 7
        %v4053 = vld [vmem:[%s4052] ss:$9 sm:$0xff]
        %4054 = vrot.lane.b32.xlu0 %v4053, 67
        %v4055 = vpop.permute.xlu0 %4054
        %vm4057 = vcmp.ge.s32.totalorder %v3904, 67
        %vm4058 = vcmp.lt.s32.totalorder %v3904, 80
        %vm4059 = vmand %vm4057, %vm4058
        %4060 = vst.msk [vmem:[#allocation2 + $0x1] sm:$0x1] %vm4059, %v4055
        %4062 = vrot.lane.b32.xlu0 %v3896, 80
        %v4063 = vpop.permute.xlu0 %4062
        %vm4065 = vcmp.ge.s32.totalorder %v3904, 80
        %vm4066 = vcmp.lt.s32.totalorder %v3904, 93
        %vm4067 = vmand %vm4065, %vm4066
        %4068 = vst.msk [vmem:[#allocation2 + $0x1] sm:$0x1] %vm4067, %v4063
        %4069 = vst [vmem:[#allocation1] sm:$0xff] %v3896
        %s4070 = scalar_lea.vmem [#allocation1], 1
        %v4071 = vld [vmem:[%s4070] ss:$9 sm:$0xff]
        %4072 = vrot.lane.b32.xlu0 %v4071, 93
        %v4073 = vpop.permute.xlu0 %4072
        %vm4075 = vcmp.ge.s32.totalorder %v3904, 93
        %vm4076 = vcmp.lt.s32.totalorder %v3904, 106
        %vm4077 = vmand %vm4075, %vm4076
        %4078 = vst.msk [vmem:[#allocation2 + $0x1] sm:$0x1] %vm4077, %v4073
        %4079 = vst [vmem:[#allocation1] sm:$0xff] %v3896
        %s4080 = scalar_lea.vmem [#allocation1], 2
        %v4081 = vld [vmem:[%s4080] ss:$9 sm:$0xff]
        %4082 = vrot.lane.b32.xlu0 %v4081, 106
        %v4083 = vpop.permute.xlu0 %4082
        %vm4085 = vcmp.ge.s32.totalorder %v3904, 106
        %vm4086 = vcmp.lt.s32.totalorder %v3904, 119
        %vm4087 = vmand %vm4085, %vm4086
        %4088 = vst.msk [vmem:[#allocation2 + $0x1] sm:$0x1] %vm4087, %v4083
        %4089 = vst [vmem:[#allocation1] sm:$0xff] %v3896
        %s4090 = scalar_lea.vmem [#allocation1], 3
        %v4091 = vld [vmem:[%s4090] ss:$9 sm:$0xff]
        %4092 = vrot.lane.b32.xlu0 %v4091, 119
        %v4093 = vpop.permute.xlu0 %4092
        %v4094 = vrot.slane %v4093, 7
        %vm4095 = vcmask 973824
        %v4096 = vsel %vm4095, %v4094, %v4093
        %vm4098 = vcmp.ge.s32.totalorder %v3904, 119
        %vm4099 = vcmp.lt.s32.totalorder %v3904, 132
        %vm4100 = vmand %vm4098, %vm4099
        %4101 = vst.msk [vmem:[#allocation2 + $0x1] sm:$0x3] %vm4100, %v4096
        %4102 = vst [vmem:[#allocation1] sm:$0xff] %v3896
        %s4103 = scalar_lea.vmem [#allocation1], 4
        %v4104 = vld [vmem:[%s4103] ss:$9 sm:$0xff]
        %4105 = vrot.lane.b32.xlu0 %v4104, 4
        %v4106 = vpop.permute.xlu0 %4105
        %vm4108 = vcmp.ge.s32.totalorder %v3904, 4
        %vm4109 = vcmp.lt.s32.totalorder %v3904, 17
        %vm4110 = vmand %vm4108, %vm4109
        %4111 = vst.msk [vmem:[#allocation2 + $0x2] sm:$0x1] %vm4110, %v4106
        %4112 = vst [vmem:[#allocation1] sm:$0xff] %v3896
        %s4113 = scalar_lea.vmem [#allocation1], 5
        %v4114 = vld [vmem:[%s4113] ss:$9 sm:$0xff]
        %4115 = vrot.lane.b32.xlu0 %v4114, 17
        %v4116 = vpop.permute.xlu0 %4115
        %vm4118 = vcmp.ge.s32.totalorder %v3904, 17
        %vm4119 = vcmp.lt.s32.totalorder %v3904, 30
        %vm4120 = vmand %vm4118, %vm4119
        %4121 = vst.msk [vmem:[#allocation2 + $0x2] sm:$0x1] %vm4120, %v4116
        %4122 = vst [vmem:[#allocation1] sm:$0xff] %v3896
        %s4123 = scalar_lea.vmem [#allocation1], 6
        %v4124 = vld [vmem:[%s4123] ss:$9 sm:$0xff]
        %4125 = vrot.lane.b32.xlu0 %v4124, 30
        %v4126 = vpop.permute.xlu0 %4125
        %vm4128 = vcmp.ge.s32.totalorder %v3904, 30
        %vm4129 = vcmp.lt.s32.totalorder %v3904, 43
        %vm4130 = vmand %vm4128, %vm4129
        %4131 = vst.msk [vmem:[#allocation2 + $0x2] sm:$0x1] %vm4130, %v4126
        %4132 = vst [vmem:[#allocation1] sm:$0xff] %v3896
        %s4133 = scalar_lea.vmem [#allocation1], 7
        %v4134 = vld [vmem:[%s4133] ss:$9 sm:$0xff]
        %4135 = vrot.lane.b32.xlu0 %v4134, 43
        %v4136 = vpop.permute.xlu0 %4135
        %vm4138 = vcmp.ge.s32.totalorder %v3904, 43
        %vm4139 = vcmp.lt.s32.totalorder %v3904, 56
        %vm4140 = vmand %vm4138, %vm4139
        %4141 = vst.msk [vmem:[#allocation2 + $0x2] sm:$0x1] %vm4140, %v4136
        %4143 = vrot.lane.b32.xlu0 %v3897, 56
        %v4144 = vpop.permute.xlu0 %4143
        %vm4146 = vcmp.ge.s32.totalorder %v3904, 56
        %vm4147 = vcmp.lt.s32.totalorder %v3904, 69
        %vm4148 = vmand %vm4146, %vm4147
        %4149 = vst.msk [vmem:[#allocation2 + $0x2] sm:$0x1] %vm4148, %v4144
        %4150 = vst [vmem:[#allocation1] sm:$0xff] %v3897
        %s4151 = scalar_lea.vmem [#allocation1], 1
        %v4152 = vld [vmem:[%s4151] ss:$9 sm:$0xff]
        %4153 = vrot.lane.b32.xlu0 %v4152, 69
        %v4154 = vpop.permute.xlu0 %4153
        %vm4156 = vcmp.ge.s32.totalorder %v3904, 69
        %vm4157 = vcmp.lt.s32.totalorder %v3904, 82
        %vm4158 = vmand %vm4156, %vm4157
        %4159 = vst.msk [vmem:[#allocation2 + $0x2] sm:$0x1] %vm4158, %v4154
        %4160 = vst [vmem:[#allocation1] sm:$0xff] %v3897
        %s4161 = scalar_lea.vmem [#allocation1], 2
        %v4162 = vld [vmem:[%s4161] ss:$9 sm:$0xff]
        %4163 = vrot.lane.b32.xlu0 %v4162, 82
        %v4164 = vpop.permute.xlu0 %4163
        %vm4166 = vcmp.ge.s32.totalorder %v3904, 82
        %vm4167 = vcmp.lt.s32.totalorder %v3904, 95
        %vm4168 = vmand %vm4166, %vm4167
        %4169 = vst.msk [vmem:[#allocation2 + $0x2] sm:$0x1] %vm4168, %v4164
        %4170 = vst [vmem:[#allocation1] sm:$0xff] %v3897
        %s4171 = scalar_lea.vmem [#allocation1], 3
        %v4172 = vld [vmem:[%s4171] ss:$9 sm:$0xff]
        %4173 = vrot.lane.b32.xlu0 %v4172, 95
        %v4174 = vpop.permute.xlu0 %4173
        %vm4176 = vcmp.ge.s32.totalorder %v3904, 95
        %vm4177 = vcmp.lt.s32.totalorder %v3904, 108
        %vm4178 = vmand %vm4176, %vm4177
        %4179 = vst.msk [vmem:[#allocation2 + $0x2] sm:$0x1] %vm4178, %v4174
        %4180 = vst [vmem:[#allocation1] sm:$0xff] %v3897
        %s4181 = scalar_lea.vmem [#allocation1], 4
        %v4182 = vld [vmem:[%s4181] ss:$9 sm:$0xff]
        %4183 = vrot.lane.b32.xlu0 %v4182, 108
        %v4184 = vpop.permute.xlu0 %4183
        %vm4186 = vcmp.ge.s32.totalorder %v3904, 108
        %vm4187 = vcmp.lt.s32.totalorder %v3904, 121
        %vm4188 = vmand %vm4186, %vm4187
        %4189 = vst.msk [vmem:[#allocation2 + $0x2] sm:$0x1] %vm4188, %v4184
        %4190 = vst [vmem:[#allocation1] sm:$0xff] %v3897
        %s4191 = scalar_lea.vmem [#allocation1], 5
        %v4192 = vld [vmem:[%s4191] ss:$9 sm:$0xff]
        %4193 = vrot.lane.b32.xlu0 %v4192, 121
        %v4194 = vpop.permute.xlu0 %4193
        %v4195 = vrot.slane %v4194, 7
        %vm4196 = vcmask 990208
        %v4197 = vsel %vm4196, %v4195, %v4194
        %vm4199 = vcmp.ge.s32.totalorder %v3904, 121
        %vm4200 = vcmp.lt.s32.totalorder %v3904, 134
        %vm4201 = vmand %vm4199, %vm4200
        %4202 = vst.msk [vmem:[#allocation2 + $0x2] sm:$0x3] %vm4201, %v4197
        %4203 = vst [vmem:[#allocation1] sm:$0xff] %v3897
        %s4204 = scalar_lea.vmem [#allocation1], 6
        %v4205 = vld [vmem:[%s4204] ss:$9 sm:$0xff]
        %4206 = vrot.lane.b32.xlu0 %v4205, 6
        %v4207 = vpop.permute.xlu0 %4206
        %vm4209 = vcmp.ge.s32.totalorder %v3904, 6
        %vm4210 = vcmp.lt.s32.totalorder %v3904, 19
        %vm4211 = vmand %vm4209, %vm4210
        %4212 = vst.msk [vmem:[#allocation2 + $0x3] sm:$0x1] %vm4211, %v4207
        %4213 = vst [vmem:[#allocation1] sm:$0xff] %v3897
        %s4214 = scalar_lea.vmem [#allocation1], 7
        %v4215 = vld [vmem:[%s4214] ss:$9 sm:$0xff]
        %4216 = vrot.lane.b32.xlu0 %v4215, 19
        %v4217 = vpop.permute.xlu0 %4216
        %vm4219 = vcmp.ge.s32.totalorder %v3904, 19
        %vm4220 = vcmp.lt.s32.totalorder %v3904, 32
        %vm4221 = vmand %vm4219, %vm4220
        %4222 = vst.msk [vmem:[#allocation2 + $0x3] sm:$0x1] %vm4221, %v4217
        %4224 = vrot.lane.b32.xlu0 %v3898, 32
        %v4225 = vpop.permute.xlu0 %4224
        %vm4227 = vcmp.ge.s32.totalorder %v3904, 32
        %vm4228 = vcmp.lt.s32.totalorder %v3904, 45
        %vm4229 = vmand %vm4227, %vm4228
        %4230 = vst.msk [vmem:[#allocation2 + $0x3] sm:$0x1] %vm4229, %v4225
        %4231 = vst [vmem:[#allocation1] sm:$0xff] %v3898
        %s4232 = scalar_lea.vmem [#allocation1], 1
        %v4233 = vld [vmem:[%s4232] ss:$9 sm:$0xff]
        %4234 = vrot.lane.b32.xlu0 %v4233, 45
        %v4235 = vpop.permute.xlu0 %4234
        %vm4237 = vcmp.ge.s32.totalorder %v3904, 45
        %vm4238 = vcmp.lt.s32.totalorder %v3904, 58
        %vm4239 = vmand %vm4237, %vm4238
        %4240 = vst.msk [vmem:[#allocation2 + $0x3] sm:$0x1] %vm4239, %v4235
        %4241 = vst [vmem:[#allocation1] sm:$0xff] %v3898
        %s4242 = scalar_lea.vmem [#allocation1], 2
        %v4243 = vld [vmem:[%s4242] ss:$9 sm:$0xff]
        %4244 = vrot.lane.b32.xlu0 %v4243, 58
        %v4245 = vpop.permute.xlu0 %4244
        %vm4247 = vcmp.ge.s32.totalorder %v3904, 58
        %vm4248 = vcmp.lt.s32.totalorder %v3904, 71
        %vm4249 = vmand %vm4247, %vm4248
        %4250 = vst.msk [vmem:[#allocation2 + $0x3] sm:$0x1] %vm4249, %v4245
        %4251 = vst [vmem:[#allocation1] sm:$0xff] %v3898
        %s4252 = scalar_lea.vmem [#allocation1], 3
        %v4253 = vld [vmem:[%s4252] ss:$9 sm:$0xff]
        %4254 = vrot.lane.b32.xlu0 %v4253, 71
        %v4255 = vpop.permute.xlu0 %4254
        %vm4257 = vcmp.ge.s32.totalorder %v3904, 71
        %vm4258 = vcmp.lt.s32.totalorder %v3904, 84
        %vm4259 = vmand %vm4257, %vm4258
        %4260 = vst.msk [vmem:[#allocation2 + $0x3] sm:$0x1] %vm4259, %v4255
        %4261 = vst [vmem:[#allocation1] sm:$0xff] %v3898
        %s4262 = scalar_lea.vmem [#allocation1], 4
        %v4263 = vld [vmem:[%s4262] ss:$9 sm:$0xff]
        %4264 = vrot.lane.b32.xlu0 %v4263, 84
        %v4265 = vpop.permute.xlu0 %4264
        %vm4267 = vcmp.ge.s32.totalorder %v3904, 84
        %vm4268 = vcmp.lt.s32.totalorder %v3904, 97
        %vm4269 = vmand %vm4267, %vm4268
        %4270 = vst.msk [vmem:[#allocation2 + $0x3] sm:$0x1] %vm4269, %v4265
        %4271 = vst [vmem:[#allocation1] sm:$0xff] %v3898
        %s4272 = scalar_lea.vmem [#allocation1], 5
        %v4273 = vld [vmem:[%s4272] ss:$9 sm:$0xff]
        %4274 = vrot.lane.b32.xlu0 %v4273, 97
        %v4275 = vpop.permute.xlu0 %4274
        %vm4277 = vcmp.ge.s32.totalorder %v3904, 97
        %vm4278 = vcmp.lt.s32.totalorder %v3904, 110
        %vm4279 = vmand %vm4277, %vm4278
        %4280 = vst.msk [vmem:[#allocation2 + $0x3] sm:$0x1] %vm4279, %v4275
        %4281 = vst [vmem:[#allocation1] sm:$0xff] %v3898
        %s4282 = scalar_lea.vmem [#allocation1], 6
        %v4283 = vld [vmem:[%s4282] ss:$9 sm:$0xff]
        %4284 = vrot.lane.b32.xlu0 %v4283, 110
        %v4285 = vpop.permute.xlu0 %4284
        %vm4287 = vcmp.ge.s32.totalorder %v3904, 110
        %vm4288 = vcmp.lt.s32.totalorder %v3904, 123
        %vm4289 = vmand %vm4287, %vm4288
        %4290 = vst.msk [vmem:[#allocation2 + $0x3] sm:$0x1] %vm4289, %v4285
        %4291 = vst [vmem:[#allocation1] sm:$0xff] %v3898
        %s4292 = scalar_lea.vmem [#allocation1], 7
        %v4293 = vld [vmem:[%s4292] ss:$9 sm:$0xff]
        %4294 = vrot.lane.b32.xlu0 %v4293, 123
        %v4295 = vpop.permute.xlu0 %4294
        %v4296 = vrot.slane %v4295, 7
        %vm4297 = vcmask 1006592
        %v4298 = vsel %vm4297, %v4296, %v4295
        %vm4300 = vcmp.ge.s32.totalorder %v3904, 123
        %vm4301 = vcmp.lt.s32.totalorder %v3904, 136
        %vm4302 = vmand %vm4300, %vm4301
        %4303 = vst.msk [vmem:[#allocation2 + $0x3] sm:$0x3] %vm4302, %v4298
        %4305 = vrot.lane.b32.xlu0 %v3899, 8
        %v4306 = vpop.permute.xlu0 %4305
        %vm4308 = vcmp.ge.s32.totalorder %v3904, 8
        %vm4309 = vcmp.lt.s32.totalorder %v3904, 21
        %vm4310 = vmand %vm4308, %vm4309
        %4311 = vst.msk [vmem:[#allocation2 + $0x4] sm:$0x1] %vm4310, %v4306
        %4312 = vst [vmem:[#allocation1] sm:$0xff] %v3899
        %s4313 = scalar_lea.vmem [#allocation1], 1
        %v4314 = vld [vmem:[%s4313] ss:$9 sm:$0xff]
        %4315 = vrot.lane.b32.xlu0 %v4314, 21
        %v4316 = vpop.permute.xlu0 %4315
        %vm4318 = vcmp.ge.s32.totalorder %v3904, 21
        %vm4319 = vcmp.lt.s32.totalorder %v3904, 34
        %vm4320 = vmand %vm4318, %vm4319
        %4321 = vst.msk [vmem:[#allocation2 + $0x4] sm:$0x1] %vm4320, %v4316
        %4322 = vst [vmem:[#allocation1] sm:$0xff] %v3899
        %s4323 = scalar_lea.vmem [#allocation1], 2
        %v4324 = vld [vmem:[%s4323] ss:$9 sm:$0xff]
        %4325 = vrot.lane.b32.xlu0 %v4324, 34
        %v4326 = vpop.permute.xlu0 %4325
        %vm4328 = vcmp.ge.s32.totalorder %v3904, 34
        %vm4329 = vcmp.lt.s32.totalorder %v3904, 47
        %vm4330 = vmand %vm4328, %vm4329
        %4331 = vst.msk [vmem:[#allocation2 + $0x4] sm:$0x1] %vm4330, %v4326
        %4332 = vst [vmem:[#allocation1] sm:$0xff] %v3899
        %s4333 = scalar_lea.vmem [#allocation1], 3
        %v4334 = vld [vmem:[%s4333] ss:$9 sm:$0xff]
        %4335 = vrot.lane.b32.xlu0 %v4334, 47
        %v4336 = vpop.permute.xlu0 %4335
        %vm4338 = vcmp.ge.s32.totalorder %v3904, 47
        %vm4339 = vcmp.lt.s32.totalorder %v3904, 60
        %vm4340 = vmand %vm4338, %vm4339
        %4341 = vst.msk [vmem:[#allocation2 + $0x4] sm:$0x1] %vm4340, %v4336
        %4342 = vst [vmem:[#allocation1] sm:$0xff] %v3899
        %s4343 = scalar_lea.vmem [#allocation1], 4
        %v4344 = vld [vmem:[%s4343] ss:$9 sm:$0xff]
        %4345 = vrot.lane.b32.xlu0 %v4344, 60
        %v4346 = vpop.permute.xlu0 %4345
        %vm4348 = vcmp.ge.s32.totalorder %v3904, 60
        %vm4349 = vcmp.lt.s32.totalorder %v3904, 73
        %vm4350 = vmand %vm4348, %vm4349
        %4351 = vst.msk [vmem:[#allocation2 + $0x4] sm:$0x1] %vm4350, %v4346
        %4352 = vst [vmem:[#allocation1] sm:$0xff] %v3899
        %s4353 = scalar_lea.vmem [#allocation1], 5
        %v4354 = vld [vmem:[%s4353] ss:$9 sm:$0xff]
        %4355 = vrot.lane.b32.xlu0 %v4354, 73
        %v4356 = vpop.permute.xlu0 %4355
        %vm4358 = vcmp.ge.s32.totalorder %v3904, 73
        %vm4359 = vcmp.lt.s32.totalorder %v3904, 86
        %vm4360 = vmand %vm4358, %vm4359
        %4361 = vst.msk [vmem:[#allocation2 + $0x4] sm:$0x1] %vm4360, %v4356
        %4362 = vst [vmem:[#allocation1] sm:$0xff] %v3899
        %s4363 = scalar_lea.vmem [#allocation1], 6
        %v4364 = vld [vmem:[%s4363] ss:$9 sm:$0xff]
        %4365 = vrot.lane.b32.xlu0 %v4364, 86
        %v4366 = vpop.permute.xlu0 %4365
        %vm4368 = vcmp.ge.s32.totalorder %v3904, 86
        %vm4369 = vcmp.lt.s32.totalorder %v3904, 99
        %vm4370 = vmand %vm4368, %vm4369
        %4371 = vst.msk [vmem:[#allocation2 + $0x4] sm:$0x1] %vm4370, %v4366
        %4372 = vst [vmem:[#allocation1] sm:$0xff] %v3899
        %s4373 = scalar_lea.vmem [#allocation1], 7
        %v4374 = vld [vmem:[%s4373] ss:$9 sm:$0xff]
        %4375 = vrot.lane.b32.xlu0 %v4374, 99
        %v4376 = vpop.permute.xlu0 %4375
        %vm4378 = vcmp.ge.s32.totalorder %v3904, 99
        %vm4379 = vcmp.lt.s32.totalorder %v3904, 112
        %vm4380 = vmand %vm4378, %vm4379
        %4381 = vst.msk [vmem:[#allocation2 + $0x4] sm:$0x1] %vm4380, %v4376
        %4383 = vrot.lane.b32.xlu0 %v3900, 112
        %v4384 = vpop.permute.xlu0 %4383
        %vm4386 = vcmp.ge.s32.totalorder %v3904, 112
        %vm4387 = vcmp.lt.s32.totalorder %v3904, 125
        %vm4388 = vmand %vm4386, %vm4387
        %4389 = vst.msk [vmem:[#allocation2 + $0x4] sm:$0x1] %vm4388, %v4384
        %4390 = vst [vmem:[#allocation1] sm:$0xff] %v3900
        %s4391 = scalar_lea.vmem [#allocation1], 1
        %v4392 = vld [vmem:[%s4391] ss:$9 sm:$0xff]
        %4393 = vrot.lane.b32.xlu0 %v4392, 125
        %v4394 = vpop.permute.xlu0 %4393
        %v4395 = vrot.slane %v4394, 7
        %vm4396 = vcmask 1022976
        %v4397 = vsel %vm4396, %v4395, %v4394
        %vm4399 = vcmp.ge.s32.totalorder %v3904, 125
        %vm4400 = vcmp.lt.s32.totalorder %v3904, 138
        %vm4401 = vmand %vm4399, %vm4400
        %4402 = vst.msk [vmem:[#allocation2 + $0x4] sm:$0x3] %vm4401, %v4397
        %4403 = vst [vmem:[#allocation1] sm:$0xff] %v3900
        %s4404 = scalar_lea.vmem [#allocation1], 2
        %v4405 = vld [vmem:[%s4404] ss:$9 sm:$0xff]
        %4406 = vrot.lane.b32.xlu0 %v4405, 10
        %v4407 = vpop.permute.xlu0 %4406
        %vm4409 = vcmp.ge.s32.totalorder %v3904, 10
        %vm4410 = vcmp.lt.s32.totalorder %v3904, 23
        %vm4411 = vmand %vm4409, %vm4410
        %4412 = vst.msk [vmem:[#allocation2 + $0x5] sm:$0x1] %vm4411, %v4407
        %4413 = vst [vmem:[#allocation1] sm:$0xff] %v3900
        %s4414 = scalar_lea.vmem [#allocation1], 3
        %v4415 = vld [vmem:[%s4414] ss:$9 sm:$0xff]
        %4416 = vrot.lane.b32.xlu0 %v4415, 23
        %v4417 = vpop.permute.xlu0 %4416
        %vm4419 = vcmp.ge.s32.totalorder %v3904, 23
        %vm4420 = vcmp.lt.s32.totalorder %v3904, 36
        %vm4421 = vmand %vm4419, %vm4420
        %4422 = vst.msk [vmem:[#allocation2 + $0x5] sm:$0x1] %vm4421, %v4417
        %4423 = vst [vmem:[#allocation1] sm:$0xff] %v3900
        %s4424 = scalar_lea.vmem [#allocation1], 4
        %v4425 = vld [vmem:[%s4424] ss:$9 sm:$0xff]
        %4426 = vrot.lane.b32.xlu0 %v4425, 36
        %v4427 = vpop.permute.xlu0 %4426
        %vm4429 = vcmp.ge.s32.totalorder %v3904, 36
        %vm4430 = vcmp.lt.s32.totalorder %v3904, 49
        %vm4431 = vmand %vm4429, %vm4430
        %4432 = vst.msk [vmem:[#allocation2 + $0x5] sm:$0x1] %vm4431, %v4427
        %4433 = vst [vmem:[#allocation1] sm:$0xff] %v3900
        %s4434 = scalar_lea.vmem [#allocation1], 5
        %v4435 = vld [vmem:[%s4434] ss:$9 sm:$0xff]
        %4436 = vrot.lane.b32.xlu0 %v4435, 49
        %v4437 = vpop.permute.xlu0 %4436
        %vm4439 = vcmp.ge.s32.totalorder %v3904, 49
        %vm4440 = vcmp.lt.s32.totalorder %v3904, 62
        %vm4441 = vmand %vm4439, %vm4440
        %4442 = vst.msk [vmem:[#allocation2 + $0x5] sm:$0x1] %vm4441, %v4437
        %4443 = vst [vmem:[#allocation1] sm:$0xff] %v3900
        %s4444 = scalar_lea.vmem [#allocation1], 6
        %v4445 = vld [vmem:[%s4444] ss:$9 sm:$0xff]
        %4446 = vrot.lane.b32.xlu0 %v4445, 62
        %v4447 = vpop.permute.xlu0 %4446
        %vm4449 = vcmp.ge.s32.totalorder %v3904, 62
        %vm4450 = vcmp.lt.s32.totalorder %v3904, 75
        %vm4451 = vmand %vm4449, %vm4450
        %4452 = vst.msk [vmem:[#allocation2 + $0x5] sm:$0x1] %vm4451, %v4447
        %4453 = vst [vmem:[#allocation1] sm:$0xff] %v3900
        %s4454 = scalar_lea.vmem [#allocation1], 7
        %v4455 = vld [vmem:[%s4454] ss:$9 sm:$0xff]
        %4456 = vrot.lane.b32.xlu0 %v4455, 75
        %v4457 = vpop.permute.xlu0 %4456
        %vm4459 = vcmp.ge.s32.totalorder %v3904, 75
        %vm4460 = vcmp.lt.s32.totalorder %v3904, 88
        %vm4461 = vmand %vm4459, %vm4460
        %4462 = vst.msk [vmem:[#allocation2 + $0x5] sm:$0x1] %vm4461, %v4457
        %4464 = vrot.lane.b32.xlu0 %v3901, 88
        %v4465 = vpop.permute.xlu0 %4464
        %vm4467 = vcmp.ge.s32.totalorder %v3904, 88
        %vm4468 = vcmp.lt.s32.totalorder %v3904, 101
        %vm4469 = vmand %vm4467, %vm4468
        %4470 = vst.msk [vmem:[#allocation2 + $0x5] sm:$0x1] %vm4469, %v4465
        %4471 = vst [vmem:[#allocation1] sm:$0xff] %v3901
        %s4472 = scalar_lea.vmem [#allocation1], 1
        %v4473 = vld [vmem:[%s4472] ss:$9 sm:$0xff]
        %4474 = vrot.lane.b32.xlu0 %v4473, 101
        %v4475 = vpop.permute.xlu0 %4474
        %vm4477 = vcmp.ge.s32.totalorder %v3904, 101
        %vm4478 = vcmp.lt.s32.totalorder %v3904, 114
        %vm4479 = vmand %vm4477, %vm4478
        %4480 = vst.msk [vmem:[#allocation2 + $0x5] sm:$0x1] %vm4479, %v4475
        %4481 = vst [vmem:[#allocation1] sm:$0xff] %v3901
        %s4482 = scalar_lea.vmem [#allocation1], 2
        %v4483 = vld [vmem:[%s4482] ss:$9 sm:$0xff]
        %4484 = vrot.lane.b32.xlu0 %v4483, 114
        %v4485 = vpop.permute.xlu0 %4484
        %vm4487 = vcmp.ge.s32.totalorder %v3904, 114
        %vm4488 = vcmp.lt.s32.totalorder %v3904, 127
        %vm4489 = vmand %vm4487, %vm4488
        %4490 = vst.msk [vmem:[#allocation2 + $0x5] sm:$0x1] %vm4489, %v4485
        %4491 = vst [vmem:[#allocation1] sm:$0xff] %v3901
        %s4492 = scalar_lea.vmem [#allocation1], 3
        %v4493 = vld [vmem:[%s4492] ss:$9 sm:$0xff]
        %4494 = vrot.lane.b32.xlu0 %v4493, 127
        %v4495 = vpop.permute.xlu0 %4494
        %v4496 = vrot.slane %v4495, 7
        %vm4497 = vcmask 1039360
        %v4498 = vsel %vm4497, %v4496, %v4495
        %vm4500 = vcmp.ge.s32.totalorder %v3904, 127
        %vm4501 = vcmp.lt.s32.totalorder %v3904, 140
        %vm4502 = vmand %vm4500, %vm4501
        %4503 = vst.msk [vmem:[#allocation2 + $0x5] sm:$0x3] %vm4502, %v4498
        %4504 = vst [vmem:[#allocation1] sm:$0xff] %v3901
        %s4505 = scalar_lea.vmem [#allocation1], 4
        %v4506 = vld [vmem:[%s4505] ss:$9 sm:$0xff]
        %4507 = vrot.lane.b32.xlu0 %v4506, 12
        %v4508 = vpop.permute.xlu0 %4507
        %vm4510 = vcmp.ge.s32.totalorder %v3904, 12
        %vm4511 = vcmp.lt.s32.totalorder %v3904, 25
        %vm4512 = vmand %vm4510, %vm4511
        %4513 = vst.msk [vmem:[#allocation2 + $0x6] sm:$0x1] %vm4512, %v4508
        %4514 = vst [vmem:[#allocation1] sm:$0xff] %v3901
        %s4515 = scalar_lea.vmem [#allocation1], 5
        %v4516 = vld [vmem:[%s4515] ss:$9 sm:$0xff]
        %4517 = vrot.lane.b32.xlu0 %v4516, 25
        %v4518 = vpop.permute.xlu0 %4517
        %vm4520 = vcmp.ge.s32.totalorder %v3904, 25
        %vm4521 = vcmp.lt.s32.totalorder %v3904, 38
        %vm4522 = vmand %vm4520, %vm4521
        %4523 = vst.msk [vmem:[#allocation2 + $0x6] sm:$0x1] %vm4522, %v4518
        %4524 = vst [vmem:[#allocation1] sm:$0xff] %v3901
        %s4525 = scalar_lea.vmem [#allocation1], 6
        %v4526 = vld [vmem:[%s4525] ss:$9 sm:$0xff]
        %4527 = vrot.lane.b32.xlu0 %v4526, 38
        %v4528 = vpop.permute.xlu0 %4527
        %vm4530 = vcmp.ge.s32.totalorder %v3904, 38
        %vm4531 = vcmp.lt.s32.totalorder %v3904, 51
        %vm4532 = vmand %vm4530, %vm4531
        %4533 = vst.msk [vmem:[#allocation2 + $0x6] sm:$0x1] %vm4532, %v4528
        %4534 = vst [vmem:[#allocation1] sm:$0xff] %v3901
        %s4535 = scalar_lea.vmem [#allocation1], 7
        %v4536 = vld [vmem:[%s4535] ss:$9 sm:$0xff]
        %4537 = vrot.lane.b32.xlu0 %v4536, 51
        %v4538 = vpop.permute.xlu0 %4537
        %vm4540 = vcmp.ge.s32.totalorder %v3904, 51
        %vm4541 = vcmp.lt.s32.totalorder %v3904, 64
        %vm4542 = vmand %vm4540, %vm4541
        %4543 = vst.msk [vmem:[#allocation2 + $0x6] sm:$0x1] %vm4542, %v4538
        %4545 = vrot.lane.b32.xlu0 %v3902, 64
        %v4546 = vpop.permute.xlu0 %4545
        %vm4548 = vcmp.ge.s32.totalorder %v3904, 64
        %vm4549 = vcmp.lt.s32.totalorder %v3904, 77
        %vm4550 = vmand %vm4548, %vm4549
        %4551 = vst.msk [vmem:[#allocation2 + $0x6] sm:$0x1] %vm4550, %v4546
        %4552 = vst [vmem:[#allocation1] sm:$0xff] %v3902
        %s4553 = scalar_lea.vmem [#allocation1], 1
        %v4554 = vld [vmem:[%s4553] ss:$9 sm:$0xff]
        %4555 = vrot.lane.b32.xlu0 %v4554, 77
        %v4556 = vpop.permute.xlu0 %4555
        %vm4558 = vcmp.ge.s32.totalorder %v3904, 77
        %vm4559 = vcmp.lt.s32.totalorder %v3904, 90
        %vm4560 = vmand %vm4558, %vm4559
        %4561 = vst.msk [vmem:[#allocation2 + $0x6] sm:$0x1] %vm4560, %v4556
        %4562 = vst [vmem:[#allocation1] sm:$0xff] %v3902
        %s4563 = scalar_lea.vmem [#allocation1], 2
        %v4564 = vld [vmem:[%s4563] ss:$9 sm:$0xff]
        %4565 = vrot.lane.b32.xlu0 %v4564, 90
        %v4566 = vpop.permute.xlu0 %4565
        %vm4568 = vcmp.ge.s32.totalorder %v3904, 90
        %vm4569 = vcmp.lt.s32.totalorder %v3904, 103
        %vm4570 = vmand %vm4568, %vm4569
        %4571 = vst.msk [vmem:[#allocation2 + $0x6] sm:$0x1] %vm4570, %v4566
        %4572 = vst [vmem:[#allocation1] sm:$0xff] %v3902
        %s4573 = scalar_lea.vmem [#allocation1], 3
        %v4574 = vld [vmem:[%s4573] ss:$9 sm:$0xff]
        %4575 = vrot.lane.b32.xlu0 %v4574, 103
        %v4576 = vpop.permute.xlu0 %4575
        %vm4578 = vcmp.ge.s32.totalorder %v3904, 103
        %vm4579 = vcmp.lt.s32.totalorder %v3904, 116
        %vm4580 = vmand %vm4578, %vm4579
        %4581 = vst.msk [vmem:[#allocation2 + $0x6] sm:$0x1] %vm4580, %v4576
        %4582 = vst [vmem:[#allocation1] sm:$0xff] %v3902
        %s4583 = scalar_lea.vmem [#allocation1], 4
        %v4584 = vld [vmem:[%s4583] ss:$9 sm:$0xff]
        %4585 = vrot.lane.b32.xlu0 %v4584, 116
        %v4586 = vpop.permute.xlu0 %4585
        %v4587 = vrot.slane %v4586, 7
        %vm4588 = vcmask 949248
        %v4589 = vsel %vm4588, %v4587, %v4586
        %vm4591 = vcmp.ge.s32.totalorder %v3904, 116
        %vm4592 = vcmp.lt.s32.totalorder %v3904, 129
        %vm4593 = vmand %vm4591, %vm4592
        %4594 = vst.msk [vmem:[#allocation2 + $0x6] sm:$0x3] %vm4593, %v4589
        %4595 = vst [vmem:[#allocation1] sm:$0xff] %v3902
        %s4596 = scalar_lea.vmem [#allocation1], 5
        %v4597 = vld [vmem:[%s4596] ss:$9 sm:$0xff]
        %4598 = vrot.lane.b32.xlu0 %v4597, 1
        %v4599 = vpop.permute.xlu0 %4598
        %vm4601 = vcmp.ge.s32.totalorder %v3904, 1
        %vm4602 = vcmp.lt.s32.totalorder %v3904, 14
        %vm4603 = vmand %vm4601, %vm4602
        %4604 = vst.msk [vmem:[#allocation2 + $0x7] sm:$0x1] %vm4603, %v4599
        %4605 = vst [vmem:[#allocation1] sm:$0xff] %v3902
        %s4606 = scalar_lea.vmem [#allocation1], 6
        %v4607 = vld [vmem:[%s4606] ss:$9 sm:$0xff]
        %4608 = vrot.lane.b32.xlu0 %v4607, 14
        %v4609 = vpop.permute.xlu0 %4608
        %vm4611 = vcmp.ge.s32.totalorder %v3904, 14
        %vm4612 = vcmp.lt.s32.totalorder %v3904, 27
        %vm4613 = vmand %vm4611, %vm4612
        %4614 = vst.msk [vmem:[#allocation2 + $0x7] sm:$0x1] %vm4613, %v4609
        %4615 = vst [vmem:[#allocation1] sm:$0xff] %v3902
        %s4616 = scalar_lea.vmem [#allocation1], 7
        %v4617 = vld [vmem:[%s4616] ss:$9 sm:$0xff]
        %4618 = vrot.lane.b32.xlu0 %v4617, 27
        %v4619 = vpop.permute.xlu0 %4618
        %vm4621 = vcmp.ge.s32.totalorder %v3904, 27
        %vm4622 = vcmp.lt.s32.totalorder %v3904, 40
        %vm4623 = vmand %vm4621, %vm4622
        %4624 = vst.msk [vmem:[#allocation2 + $0x7] sm:$0x1] %vm4623, %v4619
        %4626 = vrot.lane.b32.xlu0 %v3903, 40
        %v4627 = vpop.permute.xlu0 %4626
        %vm4629 = vcmp.ge.s32.totalorder %v3904, 40
        %vm4630 = vcmp.lt.s32.totalorder %v3904, 53
        %vm4631 = vmand %vm4629, %vm4630
        %4632 = vst.msk [vmem:[#allocation2 + $0x7] sm:$0x1] %vm4631, %v4627
        %4633 = vst [vmem:[#allocation1] sm:$0xff] %v3903
        %s4634 = scalar_lea.vmem [#allocation1], 1
        %v4635 = vld [vmem:[%s4634] ss:$9 sm:$0xff]
        %4636 = vrot.lane.b32.xlu0 %v4635, 53
        %v4637 = vpop.permute.xlu0 %4636
        %vm4639 = vcmp.ge.s32.totalorder %v3904, 53
        %vm4640 = vcmp.lt.s32.totalorder %v3904, 66
        %vm4641 = vmand %vm4639, %vm4640
        %4642 = vst.msk [vmem:[#allocation2 + $0x7] sm:$0x1] %vm4641, %v4637
        %4643 = vst [vmem:[#allocation1] sm:$0xff] %v3903
        %s4644 = scalar_lea.vmem [#allocation1], 2
        %v4645 = vld [vmem:[%s4644] ss:$9 sm:$0xff]
        %4646 = vrot.lane.b32.xlu0 %v4645, 66
        %v4647 = vpop.permute.xlu0 %4646
        %vm4649 = vcmp.ge.s32.totalorder %v3904, 66
        %vm4650 = vcmp.lt.s32.totalorder %v3904, 79
        %vm4651 = vmand %vm4649, %vm4650
        %4652 = vst.msk [vmem:[#allocation2 + $0x7] sm:$0x1] %vm4651, %v4647
        %4653 = vst [vmem:[#allocation1] sm:$0xff] %v3903
        %s4654 = scalar_lea.vmem [#allocation1], 3
        %v4655 = vld [vmem:[%s4654] ss:$9 sm:$0xff]
        %4656 = vrot.lane.b32.xlu0 %v4655, 79
        %v4657 = vpop.permute.xlu0 %4656
        %vm4659 = vcmp.ge.s32.totalorder %v3904, 79
        %vm4660 = vcmp.lt.s32.totalorder %v3904, 92
        %vm4661 = vmand %vm4659, %vm4660
        %4662 = vst.msk [vmem:[#allocation2 + $0x7] sm:$0x1] %vm4661, %v4657
        %4663 = vst [vmem:[#allocation1] sm:$0xff] %v3903
        %s4664 = scalar_lea.vmem [#allocation1], 4
        %v4665 = vld [vmem:[%s4664] ss:$9 sm:$0xff]
        %4666 = vrot.lane.b32.xlu0 %v4665, 92
        %v4667 = vpop.permute.xlu0 %4666
        %vm4669 = vcmp.ge.s32.totalorder %v3904, 92
        %vm4670 = vcmp.lt.s32.totalorder %v3904, 105
        %vm4671 = vmand %vm4669, %vm4670
        %4672 = vst.msk [vmem:[#allocation2 + $0x7] sm:$0x1] %vm4671, %v4667
        %4673 = vst [vmem:[#allocation1] sm:$0xff] %v3903
        %s4674 = scalar_lea.vmem [#allocation1], 5
        %v4675 = vld [vmem:[%s4674] ss:$9 sm:$0xff]
        %4676 = vrot.lane.b32.xlu0 %v4675, 105
        %v4677 = vpop.permute.xlu0 %4676
        %vm4679 = vcmp.ge.s32.totalorder %v3904, 105
        %vm4680 = vcmp.lt.s32.totalorder %v3904, 118
        %vm4681 = vmand %vm4679, %vm4680
        %4682 = vst.msk [vmem:[#allocation2 + $0x7] sm:$0x1] %vm4681, %v4677
        %4683 = vst [vmem:[#allocation1] sm:$0xff] %v3903
        %s4684 = scalar_lea.vmem [#allocation1], 6
        %v4685 = vld [vmem:[%s4684] ss:$9 sm:$0xff]
        %4686 = vrot.lane.b32.xlu0 %v4685, 118
        %v4687 = vpop.permute.xlu0 %4686
        %v4688 = vrot.slane %v4687, 7
        %vm4689 = vcmask 965632
        %v4690 = vsel %vm4689, %v4688, %v4687
        %vm4692 = vcmp.ge.s32.totalorder %v3904, 118
        %vm4693 = vcmp.lt.s32.totalorder %v3904, 131
        %vm4694 = vmand %vm4692, %vm4693
        %4695 = vst.msk [vmem:[#allocation2 + $0x7] sm:$0x3] %vm4694, %v4690
        %4696 = vst [vmem:[#allocation1] sm:$0xff] %v3903
        %s4697 = scalar_lea.vmem [#allocation1], 7
        %v4698 = vld [vmem:[%s4697] ss:$9 sm:$0xff]
        %4699 = vrot.lane.b32.xlu0 %v4698, 3
        %v4700 = vpop.permute.xlu0 %4699
        %vm4702 = vcmp.ge.s32.totalorder %v3904, 3
        %vm4703 = vcmp.lt.s32.totalorder %v3904, 16
        %vm4704 = vmand %vm4702, %vm4703
        %4705 = vst.msk [vmem:[#allocation2 + $0x8] sm:$0x1] %vm4704, %v4700
        %v4706 = vld [vmem:[#allocation2] sm:$0xff]
        %v4707 = vld [vmem:[#allocation2 + $0x8] sm:$0x1]
        %v4710 = vperm.slane %v4706, 0
        %v4711 = vperm.slane %v4706, 1
        %v4712 = vperm.slane %v4706, 2
        %v4713 = vperm.slane %v4706, 3
        %v4714 = vperm.slane %v4706, 4
        %v4715 = vperm.slane %v4706, 5
        %v4716 = vperm.slane %v4706, 6
        %v4717 = vperm.slane %v4706, 7
        %v4718 = vperm.slane %v4707, 0
        %v4728 = vpack.c.bf16 %v4710, %v4710
        %v4729 = vpack.c.bf16 %v4711, %v4711
        %v4730 = vpack.c.bf16 %v4712, %v4712
        %v4731 = vpack.c.bf16 %v4713, %v4713
        %v4732 = vpack.c.bf16 %v4714, %v4714
        %v4733 = vpack.c.bf16 %v4715, %v4715
        %v4734 = vpack.c.bf16 %v4716, %v4716
        %v4735 = vpack.c.bf16 %v4717, %v4717
        %v4736 = vpack.c.bf16 %v4718, %v4718
        %v4737 = vld [vmem:[#allocation8] sm:$0xf]
        %v4738 = vld [vmem:[#allocation8 + $0x4] sm:$0xf]
        %v4739 = vld [vmem:[#allocation8 + $0x8] sm:$0xf]
        %v4740 = vld [vmem:[#allocation8 + $0xc] sm:$0xf]
        %v4741 = vld [vmem:[#allocation8 + $0x10] sm:$0xf]
        %v4742 = vld [vmem:[#allocation8 + $0x14] sm:$0xf]
        %v4743 = vld [vmem:[#allocation8 + $0x18] sm:$0xf]
        %v4744 = vld [vmem:[#allocation8 + $0x1c] sm:$0xf]
        %v4745 = vld [vmem:[#allocation8 + $0x20] sm:$0xf]
        %v4746 = vld [vmem:[#allocation8 + $0x24] sm:$0xf]
        %v4747 = vld [vmem:[#allocation8 + $0x28] sm:$0xf]
        %v4748 = vld [vmem:[#allocation8 + $0x2c] sm:$0xf]
        %v4749 = vld [vmem:[#allocation8 + $0x30] sm:$0xf]
        %v4750 = vld [vmem:[#allocation8 + $0x34] sm:$0xf]
        %v4751 = vld [vmem:[#allocation8 + $0x38] sm:$0xf]
        %v4752 = vld [vmem:[#allocation8 + $0x3c] sm:$0xf]
        %v4753 = vld [vmem:[#allocation8 + $0x40] sm:$0xf]
        %v4754 = vld [vmem:[#allocation8 + $0x44] sm:$0xf]
        %v4755 = vld [vmem:[#allocation8 + $0x48] sm:$0xf]
        %v4756 = vld [vmem:[#allocation8 + $0x4c] sm:$0xf]
        %v4757 = vld [vmem:[#allocation8 + $0x50] sm:$0xf]
        %v4758 = vld [vmem:[#allocation8 + $0x54] sm:$0xf]
        %v4759 = vld [vmem:[#allocation8 + $0x58] sm:$0xf]
        %v4760 = vld [vmem:[#allocation8 + $0x5c] sm:$0xf]
        %v4761 = vld [vmem:[#allocation8 + $0x60] sm:$0xf]
        %v4762 = vld [vmem:[#allocation8 + $0x64] sm:$0xf]
        %v4763 = vld [vmem:[#allocation8 + $0x68] sm:$0xf]
        %v4764 = vld [vmem:[#allocation8 + $0x6c] sm:$0xf]
        %v4765 = vld [vmem:[#allocation8 + $0x70] sm:$0xf]
        %v4766 = vld [vmem:[#allocation8 + $0x74] sm:$0xf]
        %v4767 = vld [vmem:[#allocation8 + $0x78] sm:$0xf]
        %v4768 = vld [vmem:[#allocation8 + $0x7c] sm:$0xf]
        %v4769 = vld [vmem:[#allocation8 + $0x80] sm:$0xf]
        %v4770 = vld [vmem:[#allocation8 + $0x84] sm:$0xf]
        %v4771 = vld [vmem:[#allocation8 + $0x88] sm:$0xf]
        %v4772 = vld [vmem:[#allocation8 + $0x8c] sm:$0xf]
        %v4773 = vld [vmem:[#allocation8 + $0x90] sm:$0xf]
        %v4774 = vld [vmem:[#allocation8 + $0x94] sm:$0xf]
        %v4775 = vld [vmem:[#allocation8 + $0x98] sm:$0xf]
        %v4776 = vld [vmem:[#allocation8 + $0x9c] sm:$0xf]
        %v4777 = vld [vmem:[#allocation8 + $0xa0] sm:$0xf]
        %v4778 = vld [vmem:[#allocation8 + $0xa4] sm:$0xf]
        %v4779 = vld [vmem:[#allocation8 + $0xa8] sm:$0xf]
        %v4780 = vld [vmem:[#allocation8 + $0xac] sm:$0xf]
        %v4781 = vld [vmem:[#allocation8 + $0xb0] sm:$0xf]
        %v4782 = vld [vmem:[#allocation8 + $0xb4] sm:$0xf]
        %v4783 = vld [vmem:[#allocation8 + $0xb8] sm:$0xf]
        %v4784 = vld [vmem:[#allocation8 + $0xbc] sm:$0xf]
        %v4785 = vld [vmem:[#allocation8 + $0xc0] sm:$0xf]
        %v4786 = vld [vmem:[#allocation8 + $0xc4] sm:$0xf]
        %v4787 = vld [vmem:[#allocation8 + $0xc8] sm:$0xf]
        %v4788 = vld [vmem:[#allocation8 + $0xcc] sm:$0xf]
        %v4789 = vld [vmem:[#allocation8 + $0xd0] sm:$0xf]
        %v4790 = vld [vmem:[#allocation8 + $0xd4] sm:$0xf]
        %v4791 = vld [vmem:[#allocation8 + $0xd8] sm:$0xf]
        %v4792 = vld [vmem:[#allocation8 + $0xdc] sm:$0xf]
        %v4793 = vld [vmem:[#allocation8 + $0xe0] sm:$0xf]
        %v4794 = vld [vmem:[#allocation8 + $0xe4] sm:$0xf]
        %v4795 = vld [vmem:[#allocation8 + $0xe8] sm:$0xf]
        %v4796 = vld [vmem:[#allocation8 + $0xec] sm:$0xf]
        %v4797 = vld [vmem:[#allocation8 + $0xf0] sm:$0xf]
        %v4798 = vld [vmem:[#allocation8 + $0xf4] sm:$0xf]
        %v4799 = vld [vmem:[#allocation8 + $0xf8] sm:$0xf]
        %v4800 = vld [vmem:[#allocation8 + $0xfc] sm:$0xf]
        %v4801 = vld [vmem:[#allocation8 + $0x100] sm:$0xf]
        %v4802 = vld [vmem:[#allocation8 + $0x104] sm:$0xf]
        %v4803 = vld [vmem:[#allocation8 + $0x108] sm:$0xf]
        %v4804 = vld [vmem:[#allocation8 + $0x10c] sm:$0xf]
        %v4805 = vld [vmem:[#allocation8 + $0x110] sm:$0xf]
        %v4806 = vld [vmem:[#allocation8 + $0x114] sm:$0xf]
        %v4807 = vld [vmem:[#allocation8 + $0x118] sm:$0xf]
        %v4808 = vld [vmem:[#allocation8 + $0x11c] sm:$0xf]
        %v4809 = vld [vmem:[#allocation8 + $0x120] sm:$0xf]
        %v4810 = vld [vmem:[#allocation8 + $0x124] sm:$0xf]
        %v4811 = vld [vmem:[#allocation8 + $0x128] sm:$0xf]
        %v4812 = vld [vmem:[#allocation8 + $0x12c] sm:$0xf]
        %v4813 = vld [vmem:[#allocation8 + $0x130] sm:$0xf]
        %v4814 = vld [vmem:[#allocation8 + $0x134] sm:$0xf]
        %v4815 = vld [vmem:[#allocation8 + $0x138] sm:$0xf]
        %v4816 = vld [vmem:[#allocation8 + $0x13c] sm:$0xf]
        %v4817 = vld [vmem:[#allocation8 + $0x140] sm:$0xf]
        %v4818 = vld [vmem:[#allocation8 + $0x144] sm:$0xf]
        %v4819 = vld [vmem:[#allocation8 + $0x148] sm:$0xf]
        %v4820 = vld [vmem:[#allocation8 + $0x14c] sm:$0xf]
        %v4821 = vld [vmem:[#allocation8 + $0x150] sm:$0xf]
        %v4822 = vld [vmem:[#allocation8 + $0x154] sm:$0xf]
        %v4823 = vld [vmem:[#allocation8 + $0x158] sm:$0xf]
        %v4824 = vld [vmem:[#allocation8 + $0x15c] sm:$0xf]
        %v4825 = vld [vmem:[#allocation8 + $0x160] sm:$0xf]
        %v4826 = vld [vmem:[#allocation8 + $0x164] sm:$0xf]
        %v4827 = vld [vmem:[#allocation8 + $0x168] sm:$0xf]
        %v4828 = vld [vmem:[#allocation8 + $0x16c] sm:$0xf]
        %v4829 = vld [vmem:[#allocation8 + $0x170] sm:$0xf]
        %v4830 = vld [vmem:[#allocation8 + $0x174] sm:$0xf]
        %v4831 = vld [vmem:[#allocation8 + $0x178] sm:$0xf]
        %v4832 = vld [vmem:[#allocation8 + $0x17c] sm:$0xf]
        %v4833 = vld [vmem:[#allocation8 + $0x180] sm:$0xf]
        %v4834 = vld [vmem:[#allocation8 + $0x184] sm:$0xf]
        %v4835 = vld [vmem:[#allocation8 + $0x188] sm:$0xf]
        %v4836 = vld [vmem:[#allocation8 + $0x18c] sm:$0xf]
        %v4837 = vld [vmem:[#allocation8 + $0x190] sm:$0xf]
        %v4838 = vld [vmem:[#allocation8 + $0x194] sm:$0xf]
        %v4839 = vld [vmem:[#allocation8 + $0x198] sm:$0xf]
        %v4840 = vld [vmem:[#allocation8 + $0x19c] sm:$0xf]
        %v4841 = vld [vmem:[#allocation8 + $0x1a0] sm:$0xf]
        %v4842 = vld [vmem:[#allocation8 + $0x1a4] sm:$0xf]
        %v4843 = vld [vmem:[#allocation8 + $0x1a8] sm:$0xf]
        %v4844 = vld [vmem:[#allocation8 + $0x1ac] sm:$0xf]
        %v4845 = vld [vmem:[#allocation8 + $0x1b0] sm:$0xf]
        %v4846 = vld [vmem:[#allocation8 + $0x1b4] sm:$0xf]
        %v4847 = vld [vmem:[#allocation8 + $0x1b8] sm:$0xf]
        %v4848 = vld [vmem:[#allocation8 + $0x1bc] sm:$0xf]
        %v4849 = vld [vmem:[#allocation8 + $0x1c0] sm:$0xf]
        %v4850 = vld [vmem:[#allocation8 + $0x1c4] sm:$0xf]
        %v4851 = vld [vmem:[#allocation8 + $0x1c8] sm:$0xf]
        %v4852 = vld [vmem:[#allocation8 + $0x1cc] sm:$0xf]
        %v4853 = vld [vmem:[#allocation8 + $0x1d0] sm:$0xf]
        %v4854 = vld [vmem:[#allocation8 + $0x1d4] sm:$0xf]
        %v4855 = vld [vmem:[#allocation8 + $0x1d8] sm:$0xf]
        %v4856 = vld [vmem:[#allocation8 + $0x1dc] sm:$0xf]
        %v4857 = vld [vmem:[#allocation8 + $0x1e0] sm:$0xf]
        %v4858 = vld [vmem:[#allocation8 + $0x1e4] sm:$0xf]
        %v4859 = vld [vmem:[#allocation8 + $0x1e8] sm:$0xf]
        %v4860 = vld [vmem:[#allocation8 + $0x1ec] sm:$0xf]
        %v4861 = vld [vmem:[#allocation8 + $0x1f0] sm:$0xf]
        %v4862 = vld [vmem:[#allocation8 + $0x1f4] sm:$0xf]
        %v4863 = vld [vmem:[#allocation8 + $0x1f8] sm:$0xf]
        %v4864 = vld [vmem:[#allocation8 + $0x1fc] sm:$0xf]
        %v4865 = vld [vmem:[#allocation8 + $0x200] sm:$0xf]
        %v4866 = vld [vmem:[#allocation8 + $0x204] sm:$0xf]
        %v4867 = vld [vmem:[%s10] sm:$0x1]
        %v4998 = vunpack.c.l.b16 %v4737
        %v4999 = vunpack.c.l.b16 %v4738
        %v5000 = vunpack.c.l.b16 %v4739
        %v5001 = vunpack.c.l.b16 %v4740
        %v5002 = vunpack.c.l.b16 %v4741
        %v5003 = vunpack.c.l.b16 %v4742
        %v5004 = vunpack.c.l.b16 %v4743
        %v5005 = vunpack.c.l.b16 %v4744
        %v5006 = vunpack.c.l.b16 %v4745
        %v5007 = vunpack.c.l.b16 %v4746
        %v5008 = vunpack.c.l.b16 %v4747
        %v5009 = vunpack.c.l.b16 %v4748
        %v5010 = vunpack.c.l.b16 %v4749
        %v5011 = vunpack.c.l.b16 %v4750
        %v5012 = vunpack.c.l.b16 %v4751
        %v5013 = vunpack.c.l.b16 %v4752
        %v5014 = vunpack.c.l.b16 %v4753
        %v5015 = vunpack.c.l.b16 %v4754
        %v5016 = vunpack.c.l.b16 %v4755
        %v5017 = vunpack.c.l.b16 %v4756
        %v5018 = vunpack.c.l.b16 %v4757
        %v5019 = vunpack.c.l.b16 %v4758
        %v5020 = vunpack.c.l.b16 %v4759
        %v5021 = vunpack.c.l.b16 %v4760
        %v5022 = vunpack.c.l.b16 %v4761
        %v5023 = vunpack.c.l.b16 %v4762
        %v5024 = vunpack.c.l.b16 %v4763
        %v5025 = vunpack.c.l.b16 %v4764
        %v5026 = vunpack.c.l.b16 %v4765
        %v5027 = vunpack.c.l.b16 %v4766
        %v5028 = vunpack.c.l.b16 %v4767
        %v5029 = vunpack.c.l.b16 %v4768
        %v5030 = vunpack.c.l.b16 %v4769
        %v5031 = vunpack.c.l.b16 %v4770
        %v5032 = vunpack.c.l.b16 %v4771
        %v5033 = vunpack.c.l.b16 %v4772
        %v5034 = vunpack.c.l.b16 %v4773
        %v5035 = vunpack.c.l.b16 %v4774
        %v5036 = vunpack.c.l.b16 %v4775
        %v5037 = vunpack.c.l.b16 %v4776
        %v5038 = vunpack.c.l.b16 %v4777
        %v5039 = vunpack.c.l.b16 %v4778
        %v5040 = vunpack.c.l.b16 %v4779
        %v5041 = vunpack.c.l.b16 %v4780
        %v5042 = vunpack.c.l.b16 %v4781
        %v5043 = vunpack.c.l.b16 %v4782
        %v5044 = vunpack.c.l.b16 %v4783
        %v5045 = vunpack.c.l.b16 %v4784
        %v5046 = vunpack.c.l.b16 %v4785
        %v5047 = vunpack.c.l.b16 %v4786
        %v5048 = vunpack.c.l.b16 %v4787
        %v5049 = vunpack.c.l.b16 %v4788
        %v5050 = vunpack.c.l.b16 %v4789
        %v5051 = vunpack.c.l.b16 %v4790
        %v5052 = vunpack.c.l.b16 %v4791
        %v5053 = vunpack.c.l.b16 %v4792
        %v5054 = vunpack.c.l.b16 %v4793
        %v5055 = vunpack.c.l.b16 %v4794
        %v5056 = vunpack.c.l.b16 %v4795
        %v5057 = vunpack.c.l.b16 %v4796
        %v5058 = vunpack.c.l.b16 %v4797
        %v5059 = vunpack.c.l.b16 %v4798
        %v5060 = vunpack.c.l.b16 %v4799
        %v5061 = vunpack.c.l.b16 %v4800
        %v5062 = vunpack.c.l.b16 %v4801
        %v5063 = vunpack.c.l.b16 %v4802
        %v5064 = vunpack.c.l.b16 %v4803
        %v5065 = vunpack.c.l.b16 %v4804
        %v5066 = vunpack.c.l.b16 %v4805
        %v5067 = vunpack.c.l.b16 %v4806
        %v5068 = vunpack.c.l.b16 %v4807
        %v5069 = vunpack.c.l.b16 %v4808
        %v5070 = vunpack.c.l.b16 %v4809
        %v5071 = vunpack.c.l.b16 %v4810
        %v5072 = vunpack.c.l.b16 %v4811
        %v5073 = vunpack.c.l.b16 %v4812
        %v5074 = vunpack.c.l.b16 %v4813
        %v5075 = vunpack.c.l.b16 %v4814
        %v5076 = vunpack.c.l.b16 %v4815
        %v5077 = vunpack.c.l.b16 %v4816
        %v5078 = vunpack.c.l.b16 %v4817
        %v5079 = vunpack.c.l.b16 %v4818
        %v5080 = vunpack.c.l.b16 %v4819
        %v5081 = vunpack.c.l.b16 %v4820
        %v5082 = vunpack.c.l.b16 %v4821
        %v5083 = vunpack.c.l.b16 %v4822
        %v5084 = vunpack.c.l.b16 %v4823
        %v5085 = vunpack.c.l.b16 %v4824
        %v5086 = vunpack.c.l.b16 %v4825
        %v5087 = vunpack.c.l.b16 %v4826
        %v5088 = vunpack.c.l.b16 %v4827
        %v5089 = vunpack.c.l.b16 %v4828
        %v5090 = vunpack.c.l.b16 %v4829
        %v5091 = vunpack.c.l.b16 %v4830
        %v5092 = vunpack.c.l.b16 %v4831
        %v5093 = vunpack.c.l.b16 %v4832
        %v5094 = vunpack.c.l.b16 %v4833
        %v5095 = vunpack.c.l.b16 %v4834
        %v5096 = vunpack.c.l.b16 %v4835
        %v5097 = vunpack.c.l.b16 %v4836
        %v5098 = vunpack.c.l.b16 %v4837
        %v5099 = vunpack.c.l.b16 %v4838
        %v5100 = vunpack.c.l.b16 %v4839
        %v5101 = vunpack.c.l.b16 %v4840
        %v5102 = vunpack.c.l.b16 %v4841
        %v5103 = vunpack.c.l.b16 %v4842
        %v5104 = vunpack.c.l.b16 %v4843
        %v5105 = vunpack.c.l.b16 %v4844
        %v5106 = vunpack.c.l.b16 %v4845
        %v5107 = vunpack.c.l.b16 %v4846
        %v5108 = vunpack.c.l.b16 %v4847
        %v5109 = vunpack.c.l.b16 %v4848
        %v5110 = vunpack.c.l.b16 %v4849
        %v5111 = vunpack.c.l.b16 %v4850
        %v5112 = vunpack.c.l.b16 %v4851
        %v5113 = vunpack.c.l.b16 %v4852
        %v5114 = vunpack.c.l.b16 %v4853
        %v5115 = vunpack.c.l.b16 %v4854
        %v5116 = vunpack.c.l.b16 %v4855
        %v5117 = vunpack.c.l.b16 %v4856
        %v5118 = vunpack.c.l.b16 %v4857
        %v5119 = vunpack.c.l.b16 %v4858
        %v5120 = vunpack.c.l.b16 %v4859
        %v5121 = vunpack.c.l.b16 %v4860
        %v5122 = vunpack.c.l.b16 %v4861
        %v5123 = vunpack.c.l.b16 %v4862
        %v5124 = vunpack.c.l.b16 %v4863
        %v5125 = vunpack.c.l.b16 %v4864
        %v5126 = vunpack.c.l.b16 %v4865
        %v5127 = vunpack.c.l.b16 %v4866
        %v5128 = vpack.c.b16 %v4999, %v4998
        %v5129 = vpack.c.b16 %v5001, %v5000
        %v5130 = vpack.c.b16 %v5003, %v5002
        %v5131 = vpack.c.b16 %v5005, %v5004
        %v5132 = vpack.c.b16 %v5007, %v5006
        %v5133 = vpack.c.b16 %v5009, %v5008
        %v5134 = vpack.c.b16 %v5011, %v5010
        %v5135 = vpack.c.b16 %v5013, %v5012
        %v5136 = vpack.c.b16 %v5015, %v5014
        %v5137 = vpack.c.b16 %v5017, %v5016
        %v5138 = vpack.c.b16 %v5019, %v5018
        %v5139 = vpack.c.b16 %v5021, %v5020
        %v5140 = vpack.c.b16 %v5023, %v5022
        %v5141 = vpack.c.b16 %v5025, %v5024
        %v5142 = vpack.c.b16 %v5027, %v5026
        %v5143 = vpack.c.b16 %v5029, %v5028
        %v5144 = vpack.c.b16 %v5031, %v5030
        %v5145 = vpack.c.b16 %v5033, %v5032
        %v5146 = vpack.c.b16 %v5035, %v5034
        %v5147 = vpack.c.b16 %v5037, %v5036
        %v5148 = vpack.c.b16 %v5039, %v5038
        %v5149 = vpack.c.b16 %v5041, %v5040
        %v5150 = vpack.c.b16 %v5043, %v5042
        %v5151 = vpack.c.b16 %v5045, %v5044
        %v5152 = vpack.c.b16 %v5047, %v5046
        %v5153 = vpack.c.b16 %v5049, %v5048
        %v5154 = vpack.c.b16 %v5051, %v5050
        %v5155 = vpack.c.b16 %v5053, %v5052
        %v5156 = vpack.c.b16 %v5055, %v5054
        %v5157 = vpack.c.b16 %v5057, %v5056
        %v5158 = vpack.c.b16 %v5059, %v5058
        %v5159 = vpack.c.b16 %v5061, %v5060
        %v5160 = vpack.c.b16 %v5063, %v5062
        %v5161 = vpack.c.b16 %v5065, %v5064
        %v5162 = vpack.c.b16 %v5067, %v5066
        %v5163 = vpack.c.b16 %v5069, %v5068
        %v5164 = vpack.c.b16 %v5071, %v5070
        %v5165 = vpack.c.b16 %v5073, %v5072
        %v5166 = vpack.c.b16 %v5075, %v5074
        %v5167 = vpack.c.b16 %v5077, %v5076
        %v5168 = vpack.c.b16 %v5079, %v5078
        %v5169 = vpack.c.b16 %v5081, %v5080
        %v5170 = vpack.c.b16 %v5083, %v5082
        %v5171 = vpack.c.b16 %v5085, %v5084
        %v5172 = vpack.c.b16 %v5087, %v5086
        %v5173 = vpack.c.b16 %v5089, %v5088
        %v5174 = vpack.c.b16 %v5091, %v5090
        %v5175 = vpack.c.b16 %v5093, %v5092
        %v5176 = vpack.c.b16 %v5095, %v5094
        %v5177 = vpack.c.b16 %v5097, %v5096
        %v5178 = vpack.c.b16 %v5099, %v5098
        %v5179 = vpack.c.b16 %v5101, %v5100
        %v5180 = vpack.c.b16 %v5103, %v5102
        %v5181 = vpack.c.b16 %v5105, %v5104
        %v5182 = vpack.c.b16 %v5107, %v5106
        %v5183 = vpack.c.b16 %v5109, %v5108
        %v5184 = vpack.c.b16 %v5111, %v5110
        %v5185 = vpack.c.b16 %v5113, %v5112
        %v5186 = vpack.c.b16 %v5115, %v5114
        %v5187 = vpack.c.b16 %v5117, %v5116
        %v5188 = vpack.c.b16 %v5119, %v5118
        %v5189 = vpack.c.b16 %v5121, %v5120
        %v5190 = vpack.c.b16 %v5123, %v5122
        %v5191 = vpack.c.b16 %v5125, %v5124
        %v5192 = vpack.c.b16 %v5127, %v5126
        %vm5258 = vcmask 130048
        %v5260 = vsel %vm5258, %v4736, 0
        %5262 = vmatpush.bf16.msra.mxu0 %v5135
        %5263 = vmatpush.bf16.msra.mxu0 %v5134
        %5264 = vmatpush.bf16.msra.mxu0 %v5133
        %5265 = vmatpush.bf16.msra.mxu0 %v5132
        %5266 = vmatpush.bf16.msra.mxu0 %v5131
        %5267 = vmatpush.bf16.msra.mxu0 %v5130
        %5268 = vmatpush.bf16.msra.mxu0 %v5129
        %5269 = vmatpush.bf16.msra.mxu0 %v5128
        %5270 = vmatmul.bf16.gmra.mxu0 %v4728
        %v5271 = vpop.f32.mrf.mxu0
        %v5272 = vadd.f32 %v4867, %v5271
        %v5273 = vpop.f32.mrf.mxu0
        %5274 = vdwg.mxu0
        %5275 = vmatpush.bf16.msra.mxu0 %v5143
        %5276 = vmatpush.bf16.msra.mxu0 %v5142
        %5277 = vmatpush.bf16.msra.mxu0 %v5141
        %5278 = vmatpush.bf16.msra.mxu0 %v5140
        %5279 = vmatpush.bf16.msra.mxu0 %v5139
        %5280 = vmatpush.bf16.msra.mxu0 %v5138
        %5281 = vmatpush.bf16.msra.mxu0 %v5137
        %5282 = vmatpush.bf16.msra.mxu0 %v5136
        %5283 = vmatmul.bf16.gmra.mxu0 %v4729
        %v5284 = vpop.f32.mrf.mxu0
        %v5285 = vadd.f32 %v5272, %v5284
        %v5286 = vpop.f32.mrf.mxu0
        %5287 = vdwg.mxu0
        %5288 = vmatpush.bf16.msra.mxu0 %v5151
        %5289 = vmatpush.bf16.msra.mxu0 %v5150
        %5290 = vmatpush.bf16.msra.mxu0 %v5149
        %5291 = vmatpush.bf16.msra.mxu0 %v5148
        %5292 = vmatpush.bf16.msra.mxu0 %v5147
        %5293 = vmatpush.bf16.msra.mxu0 %v5146
        %5294 = vmatpush.bf16.msra.mxu0 %v5145
        %5295 = vmatpush.bf16.msra.mxu0 %v5144
        %5296 = vmatmul.bf16.gmra.mxu0 %v4730
        %v5297 = vpop.f32.mrf.mxu0
        %v5298 = vadd.f32 %v5285, %v5297
        %v5299 = vpop.f32.mrf.mxu0
        %5300 = vdwg.mxu0
        %5301 = vmatpush.bf16.msra.mxu0 %v5159
        %5302 = vmatpush.bf16.msra.mxu0 %v5158
        %5303 = vmatpush.bf16.msra.mxu0 %v5157
        %5304 = vmatpush.bf16.msra.mxu0 %v5156
        %5305 = vmatpush.bf16.msra.mxu0 %v5155
        %5306 = vmatpush.bf16.msra.mxu0 %v5154
        %5307 = vmatpush.bf16.msra.mxu0 %v5153
        %5308 = vmatpush.bf16.msra.mxu0 %v5152
        %5309 = vmatmul.bf16.gmra.mxu0 %v4731
        %v5310 = vpop.f32.mrf.mxu0
        %v5311 = vadd.f32 %v5298, %v5310
        %v5312 = vpop.f32.mrf.mxu0
        %5313 = vdwg.mxu0
        %5314 = vmatpush.bf16.msra.mxu0 %v5167
        %5315 = vmatpush.bf16.msra.mxu0 %v5166
        %5316 = vmatpush.bf16.msra.mxu0 %v5165
        %5317 = vmatpush.bf16.msra.mxu0 %v5164
        %5318 = vmatpush.bf16.msra.mxu0 %v5163
        %5319 = vmatpush.bf16.msra.mxu0 %v5162
        %5320 = vmatpush.bf16.msra.mxu0 %v5161
        %5321 = vmatpush.bf16.msra.mxu0 %v5160
        %5322 = vmatmul.bf16.gmra.mxu0 %v4732
        %v5323 = vpop.f32.mrf.mxu0
        %v5324 = vadd.f32 %v5311, %v5323
        %v5325 = vpop.f32.mrf.mxu0
        %5326 = vdwg.mxu0
        %5327 = vmatpush.bf16.msra.mxu0 %v5175
        %5328 = vmatpush.bf16.msra.mxu0 %v5174
        %5329 = vmatpush.bf16.msra.mxu0 %v5173
        %5330 = vmatpush.bf16.msra.mxu0 %v5172
        %5331 = vmatpush.bf16.msra.mxu0 %v5171
        %5332 = vmatpush.bf16.msra.mxu0 %v5170
        %5333 = vmatpush.bf16.msra.mxu0 %v5169
        %5334 = vmatpush.bf16.msra.mxu0 %v5168
        %5335 = vmatmul.bf16.gmra.mxu0 %v4733
        %v5336 = vpop.f32.mrf.mxu0
        %v5337 = vadd.f32 %v5324, %v5336
        %v5338 = vpop.f32.mrf.mxu0
        %5339 = vdwg.mxu0
        %5340 = vmatpush.bf16.msra.mxu0 %v5183
        %5341 = vmatpush.bf16.msra.mxu0 %v5182
        %5342 = vmatpush.bf16.msra.mxu0 %v5181
        %5343 = vmatpush.bf16.msra.mxu0 %v5180
        %5344 = vmatpush.bf16.msra.mxu0 %v5179
        %5345 = vmatpush.bf16.msra.mxu0 %v5178
        %5346 = vmatpush.bf16.msra.mxu0 %v5177
        %5347 = vmatpush.bf16.msra.mxu0 %v5176
        %5348 = vmatmul.bf16.gmra.mxu0 %v4734
        %v5349 = vpop.f32.mrf.mxu0
        %v5350 = vadd.f32 %v5337, %v5349
        %v5351 = vpop.f32.mrf.mxu0
        %5352 = vdwg.mxu0
        %5353 = vmatpush.bf16.msra.mxu0 %v5191
        %5354 = vmatpush.bf16.msra.mxu0 %v5190
        %5355 = vmatpush.bf16.msra.mxu0 %v5189
        %5356 = vmatpush.bf16.msra.mxu0 %v5188
        %5357 = vmatpush.bf16.msra.mxu0 %v5187
        %5358 = vmatpush.bf16.msra.mxu0 %v5186
        %5359 = vmatpush.bf16.msra.mxu0 %v5185
        %5360 = vmatpush.bf16.msra.mxu0 %v5184
        %5361 = vmatmul.bf16.gmra.mxu0 %v4735
        %v5362 = vpop.f32.mrf.mxu0
        %v5363 = vadd.f32 %v5350, %v5362
        %v5364 = vpop.f32.mrf.mxu0
        %5365 = vdwg.mxu0
        %5366 = vmatpush.bf16.msra.mxu0 0
        %5367 = vmatpush.bf16.msra.mxu0 0
        %5368 = vmatpush.bf16.msra.mxu0 0
        %5369 = vmatpush.bf16.msra.mxu0 0
        %5370 = vmatpush.bf16.msra.mxu0 0
        %5371 = vmatpush.bf16.msra.mxu0 0
        %5372 = vmatpush.bf16.msra.mxu0 0
        %5373 = vmatpush.bf16.msra.mxu0 %v5192
        %5374 = vmatmul.bf16.gmra.mxu0 %v5260
        %v5375 = vpop.f32.mrf.mxu0
        %v5376 = vadd.f32 %v5363, %v5375
        %v5377 = vpop.f32.mrf.mxu0
        %5378 = vdwg.mxu0
        %v5379 = vmax.f32 %v5376, 0.0
        %v5380 = vpack.c.bf16 %v5379, %v5379
        %v5381 = vld [vmem:[#allocation9] sm:$0xf]
        %v5382 = vld [vmem:[#allocation9 + $0x4] sm:$0xf]
        %v5383 = vld [vmem:[#allocation9 + $0x8] sm:$0xf]
        %v5384 = vld [vmem:[#allocation9 + $0xc] sm:$0xf]
        %v5385 = vld [vmem:[#allocation9 + $0x10] sm:$0xf]
        %v5386 = vld [vmem:[#allocation9 + $0x14] sm:$0xf]
        %v5387 = vld [vmem:[#allocation9 + $0x18] sm:$0xf]
        %v5388 = vld [vmem:[#allocation9 + $0x1c] sm:$0xf]
        %v5389 = vld [vmem:[#allocation9 + $0x20] sm:$0xf]
        %v5390 = vld [vmem:[#allocation9 + $0x24] sm:$0xf]
        %v5391 = vld [vmem:[#allocation9 + $0x28] sm:$0xf]
        %v5392 = vld [vmem:[#allocation9 + $0x2c] sm:$0xf]
        %v5393 = vld [vmem:[#allocation9 + $0x30] sm:$0xf]
        %v5394 = vld [vmem:[#allocation9 + $0x34] sm:$0xf]
        %v5395 = vld [vmem:[#allocation9 + $0x38] sm:$0xf]
        %v5396 = vld [vmem:[#allocation9 + $0x3c] sm:$0xf]
        %v5397 = vld [vmem:[%s12] sm:$0x1]
        %v5414 = vunpack.c.l.b16 %v5381
        %v5415 = vunpack.c.l.b16 %v5382
        %v5416 = vunpack.c.l.b16 %v5383
        %v5417 = vunpack.c.l.b16 %v5384
        %v5418 = vunpack.c.l.b16 %v5385
        %v5419 = vunpack.c.l.b16 %v5386
        %v5420 = vunpack.c.l.b16 %v5387
        %v5421 = vunpack.c.l.b16 %v5388
        %v5422 = vunpack.c.l.b16 %v5389
        %v5423 = vunpack.c.l.b16 %v5390
        %v5424 = vunpack.c.l.b16 %v5391
        %v5425 = vunpack.c.l.b16 %v5392
        %v5426 = vunpack.c.l.b16 %v5393
        %v5427 = vunpack.c.l.b16 %v5394
        %v5428 = vunpack.c.l.b16 %v5395
        %v5429 = vunpack.c.l.b16 %v5396
        %v5430 = vpack.c.b16 %v5415, %v5414
        %v5431 = vpack.c.b16 %v5417, %v5416
        %v5432 = vpack.c.b16 %v5419, %v5418
        %v5433 = vpack.c.b16 %v5421, %v5420
        %v5434 = vpack.c.b16 %v5423, %v5422
        %v5435 = vpack.c.b16 %v5425, %v5424
        %v5436 = vpack.c.b16 %v5427, %v5426
        %v5437 = vpack.c.b16 %v5429, %v5428
        %5446 = vmatpush.bf16.msra.mxu0 %v5437
        %5447 = vmatpush.bf16.msra.mxu0 %v5436
        %5448 = vmatpush.bf16.msra.mxu0 %v5435
        %5449 = vmatpush.bf16.msra.mxu0 %v5434
        %5450 = vmatpush.bf16.msra.mxu0 %v5433
        %5451 = vmatpush.bf16.msra.mxu0 %v5432
        %5452 = vmatpush.bf16.msra.mxu0 %v5431
        %5453 = vmatpush.bf16.msra.mxu0 %v5430
        %5454 = vmatmul.bf16.gmra.mxu0 %v5380
        %v5455 = vpop.f32.mrf.mxu0
        %v5456 = vadd.f32 %v5397, %v5455
        %v5457 = vpop.f32.mrf.mxu0
        %5458 = vdwg.mxu0
        %v5459 = vmax.f32 %v5456, 0.0
        %v5460 = vpack.c.bf16 %v5459, %v5459
        %v5461 = vld [vmem:[#allocation11] sm:$0xf]
        %v5462 = vld [vmem:[#allocation11 + $0x4] sm:$0xf]
        %v5463 = vld [vmem:[#allocation11 + $0x8] sm:$0xf]
        %v5464 = vld [vmem:[#allocation11 + $0xc] sm:$0xf]
        %v5465 = vld [vmem:[#allocation11 + $0x10] sm:$0xf]
        %v5466 = vld [vmem:[#allocation11 + $0x14] sm:$0xf]
        %v5467 = vld [vmem:[#allocation11 + $0x18] sm:$0xf]
        %v5468 = vld [vmem:[#allocation11 + $0x1c] sm:$0xf]
        %v5469 = vld [vmem:[#allocation11 + $0x20] sm:$0xf]
        %v5470 = vld [vmem:[#allocation11 + $0x24] sm:$0xf]
        %v5471 = vld [vmem:[#allocation11 + $0x28] sm:$0xf]
        %v5472 = vld [vmem:[#allocation11 + $0x2c] sm:$0xf]
        %v5473 = vld [vmem:[#allocation11 + $0x30] sm:$0xf]
        %v5474 = vld [vmem:[#allocation11 + $0x34] sm:$0xf]
        %v5475 = vld [vmem:[#allocation11 + $0x38] sm:$0xf]
        %v5476 = vld [vmem:[#allocation11 + $0x3c] sm:$0xf]
        %v5477 = vld [vmem:[%s14] sm:$0x1]
        %v5494 = vunpack.c.l.b16 %v5461
        %v5495 = vunpack.c.l.b16 %v5462
        %v5496 = vunpack.c.l.b16 %v5463
        %v5497 = vunpack.c.l.b16 %v5464
        %v5498 = vunpack.c.l.b16 %v5465
        %v5499 = vunpack.c.l.b16 %v5466
        %v5500 = vunpack.c.l.b16 %v5467
        %v5501 = vunpack.c.l.b16 %v5468
        %v5502 = vunpack.c.l.b16 %v5469
        %v5503 = vunpack.c.l.b16 %v5470
        %v5504 = vunpack.c.l.b16 %v5471
        %v5505 = vunpack.c.l.b16 %v5472
        %v5506 = vunpack.c.l.b16 %v5473
        %v5507 = vunpack.c.l.b16 %v5474
        %v5508 = vunpack.c.l.b16 %v5475
        %v5509 = vunpack.c.l.b16 %v5476
        %v5510 = vpack.c.b16 %v5495, %v5494
        %v5511 = vpack.c.b16 %v5497, %v5496
        %v5512 = vpack.c.b16 %v5499, %v5498
        %v5513 = vpack.c.b16 %v5501, %v5500
        %v5514 = vpack.c.b16 %v5503, %v5502
        %v5515 = vpack.c.b16 %v5505, %v5504
        %v5516 = vpack.c.b16 %v5507, %v5506
        %v5517 = vpack.c.b16 %v5509, %v5508
        %5526 = vmatpush.bf16.msra.mxu0 %v5517
        %5527 = vmatpush.bf16.msra.mxu0 %v5516
        %5528 = vmatpush.bf16.msra.mxu0 %v5515
        %5529 = vmatpush.bf16.msra.mxu0 %v5514
        %5530 = vmatpush.bf16.msra.mxu0 %v5513
        %5531 = vmatpush.bf16.msra.mxu0 %v5512
        %5532 = vmatpush.bf16.msra.mxu0 %v5511
        %5533 = vmatpush.bf16.msra.mxu0 %v5510
        %5534 = vmatmul.bf16.gmra.mxu0 %v5460
        %v5535 = vpop.f32.mrf.mxu0
        %v5536 = vadd.f32 %v5477, %v5535
        %v5537 = vpop.f32.mrf.mxu0
        %5538 = vdwg.mxu0
        %5539 = vst [vmem:[%s579] sm:$0x1] %v5536
        %s5540 = sand.u32 %s362, 1
        %s5541 = scalar_lea.sflag [#allocation5], %s5540
        %s5542 = sand.u32 %s362, 1
        %s5543 = scalar_lea.vmem [#allocation12], %s5542
        // Predicated region
        $region101: #{net_forward.1} parent=79 // pred_check
          %p5544 = pneg %p372
        $region102: #{net_forward.1} parent=79 // pred_check_branch
          %5546 = sbr.rel (%p5544) target = $region104
        $region103: #{net_forward.1} parent=79 // pred_region
          %5548 = vsyncadd %s5541, 0
          %s5549 = scalar_lea.hbm %s15, %s34
          %s5551 = sshll.u32 %s5543, 4
          %s5552 = int_to_ptr.vmem [resolvable:$true] %s5551
          %s5553 = sshll.u32 %s5549, 4
          %s5554 = int_to_ptr.hbm [resolvable:$true] %s5553
          %5556 = dma.vmem_to_hbm [thread:$0]  %s5552, 16, %s5554, %s5541
        $region104: #{net_forward.1} parent=79 // pred_fallthru
          _
      $region80: #{net_forward.1} parent=5 // pred_fallthru
        _
      %p5557 = scmp.le.s32.totalorder 2, %s29
      // Predicated region
      $region105: #{net_forward.1} parent=5 // pred_check
        %p5558 = pneg %p5557
      $region106: #{net_forward.1} parent=5 // pred_check_branch
        %5560 = sbr.rel (%p5558) target = $region108
      $region107: #{net_forward.1} parent=5 // pred_region
        %s5561 = ssub.s32 %s29, 2
        // Predicated region
        $region109: #{net_forward.1} parent=107 // pred_check
          %p5562 = pneg %p378
        $region110: #{net_forward.1} parent=107 // pred_check_branch
          %5564 = sbr.rel (%p5562) target = $region112
        $region111: #{net_forward.1} parent=107 // pred_region
          %s5565 = sand.u32 %s363, 1
          %s5566 = scalar_lea.sflag [#allocation5], %s5565
          %s5567 = sand.u32 %s363, 1
          %s5568 = scalar_lea.vmem [#allocation12], %s5567
          %5570 = dma.done %s5566, 16
        $region112: #{net_forward.1} parent=107 // pred_fallthru
          _
      $region108: #{net_forward.1} parent=5 // pred_fallthru
        _
    $region6: #{net_forward.1} parent=1 // loop_footer
      %s33 = sadd.s32 1, %s29
    $region7: #{net_forward.1} parent=1 // loop_footer_branch
      %28 = sbr.rel target = $region3
    $region8: #{net_forward.1} parent=1 // loop_exit
      _
    %5571 = vsyncpa [#allocation4], 1
    %s5572 = scalar_lea.sflag [#allocation4], 1
    %5573 = vsyncpa %s5572, 1
    %5574 = vsyncpa [#allocation7], 1
    %5575 = vsyncpa [#allocation10], 1
    %5576 = vsyncpa [#allocation5], 1
    %s5577 = scalar_lea.sflag [#allocation5], 1
    %5578 = vsyncpa %s5577, 1

</llo_original>
